<compile_context>
chip_gen: v6e
topology: v6e:2x2x1
jax: 0.10.0
libtpu: 0.0.40
codegen_flags: <defaults>
</compile_context>

<pallas_src>
import functools

import jax
import jax.numpy as jnp
import numpy as np
from jax.experimental import pallas as pl
from jax.experimental.pallas import tpu as pltpu


# ------------------------------ fused kernel -------------------------------

def _lenet5_fused_kernel(x_ref, w1_ref, w2_ref, w3_ref, w4_ref, w5_ref, b_ref,
                         o_ref, s1c_ref, stk2_ref, s2_ref, stk3_ref, *, batch):
    W = 28                                  # input spatial width (and height)
    ROW = 32                                # lane stride of one pooled row
    IMG = 12 * ROW                          # lane stride of one image (384)
    L_S1 = (batch - 1) * 784 + 639          # pool-1 sums (original 28-grid)
    L_A1 = L_S1 + W + 1                     # conv1 activations
    L_A2 = (batch - 1) * IMG + 239          # conv2 activations (windowed grid)
    L_S2 = (batch - 1) * IMG + 205          # pool-2 sums   (windowed grid)

    # Per-layer biases, packed column-wise in one small (128, 8) input.
    b1 = b_ref[0:6, 0:1]
    b2 = b_ref[0:16, 1:2]
    b3 = b_ref[0:120, 2:3]
    b4 = b_ref[0:84, 3:4]
    b5 = b_ref[0:1, 4:5]

    # ---- conv1 (1 -> 6, k=5) + tanh: broadcast FMA per tap, init from tap 0
    x = x_ref[...]                          # (1, B*784), positions on lanes
    w1 = w1_ref[...]                        # (6, 25), columns ordered (ki, kj)
    a1 = w1[:, 0:1] * x[:, 0:L_A1]
    for ki in range(5):
        for kj in range(5):
            if ki == 0 and kj == 0:
                continue
            t = ki * 5 + kj
            s = ki * W + kj
            a1 = a1 + w1[:, t:t + 1] * x[:, s:s + L_A1]
    a1 = jnp.tanh(a1 + b1)                  # (6, L_A1)

    # ---- avg-pool 2x2: 4-view sum (the 0.25 scale is folded into w2)
    s1 = (a1[:, 0:L_S1] + a1[:, 1:1 + L_S1] +
          a1[:, W:W + L_S1] + a1[:, W + 1:W + 1 + L_S1])

    # ---- compact pool-1 onto a windowed grid: pooled row (b, i) -> one
    #      32-lane block; value (b, i, j) sits at lane (b*12+i)*32 + 2*j.
    s1c_ref[...] = jnp.zeros_like(s1c_ref)  # pad rows/lanes must stay finite
    for b in range(batch):
        for i in range(12):
            src = b * 784 + 56 * i
            dst = (b * 12 + i) * ROW
            s1c_ref[0:6, dst:dst + 23] = s1[:, src:src + 23]

    # ---- conv2 (6 -> 16, k=5): stack the 25 taps along sublanes (8 rows per
    #      tap, channel-padded -> aligned stores) and issue a single dot.
    for ki in range(5):
        for kj in range(5):
            t = ki * 5 + kj
            off = ROW * ki + 2 * kj
            stk2_ref[8 * t:8 * t + 8, :] = s1c_ref[:, off:off + L_A2]
    a2 = jnp.tanh(jnp.dot(w2_ref[...], stk2_ref[...],
                          preferred_element_type=jnp.float32) + b2)  # (16, L_A2)

    # ---- avg-pool 2x2 on the windowed grid (scale folded into w3)
    s2_ref[...] = (a2[:, 0:L_S2] + a2[:, 2:2 + L_S2] +
                   a2[:, ROW:ROW + L_S2] + a2[:, ROW + 2:ROW + 2 + L_S2])

    # ---- conv3 (16 -> 120, k=4): gather the 16 pooled positions per image
    #      into a (256, B) operand and contract over (pos, cin) in one dot.
    for pos in range(16):
        pi, pj = pos // 4, pos % 4
        for b in range(batch):
            u = b * IMG + 2 * ROW * pi + 4 * pj
            stk3_ref[16 * pos:16 * pos + 16, b:b + 1] = s2_ref[:, u:u + 1]
    a3 = jnp.tanh(jnp.dot(w3_ref[...], stk3_ref[...],
                          preferred_element_type=jnp.float32) + b3)  # (120, B)

    # ---- fc1 (120 -> 84) + tanh, fc2 (84 -> 1) + sigmoid, transposed layout
    a4 = jnp.tanh(jnp.dot(w4_ref[...], a3,
                          preferred_element_type=jnp.float32) + b4)  # (84, B)
    out = jax.nn.sigmoid(jnp.dot(w5_ref[...], a4,
                                 preferred_element_type=jnp.float32) + b5)

    # ---- lane-dense output tile; the wrapper slices [0, :B]
    o_ref[...] = jnp.zeros_like(o_ref)
    o_ref[0:1, 0:batch] = out


def lenet5_forward(x_nchw, params):
    B, C, H, W = x_nchw.shape
    assert (C, H, W) == (1, 28, 28), "LeNet-5 geometry requires 1x28x28 inputs"
    assert 1 <= B <= 128
    f32 = jnp.float32
    L_A2 = (B - 1) * 384 + 239
    L_S2 = (B - 1) * 384 + 205

    # Trace-time repacking (tiny XLA ops outside the kernel).
    xflat = x_nchw.reshape(1, B * 784).astype(f32)
    w1r = params["conv1_w"].reshape(6, 25).astype(f32)
    # conv2 weights: (16,6,5,5) -> (16, 25 taps * 8 padded channels),
    # 0.25 pool-1 scale folded in.
    w2p = jnp.transpose(params["conv2_w"].astype(f32), (0, 2, 3, 1))
    w2p = (0.25 * jnp.pad(w2p, ((0, 0), (0, 0), (0, 0), (0, 2)))).reshape(16, 200)
    # conv3 weights: (120,16,4,4) -> (120, 16 positions * 16 channels),
    # 0.25 pool-2 scale folded in.
    w3p = 0.25 * jnp.transpose(params["conv3_w"].astype(f32),
                               (0, 2, 3, 1)).reshape(120, 256)
    w4 = params["fc1_w"].astype(f32)                     # (84, 120)
    w5 = params["fc2_w"].astype(f32)                     # (1, 84)
    # All 5 biases packed column-wise into one small input (single DMA).
    bias = jnp.zeros((128, 8), f32)
    bias = bias.at[:6, 0].set(params["conv1_b"].astype(f32))
    bias = bias.at[:16, 1].set(params["conv2_b"].astype(f32))
    bias = bias.at[:120, 2].set(params["conv3_b"].astype(f32))
    bias = bias.at[:84, 3].set(params["fc1_b"].astype(f32))
    bias = bias.at[:1, 4].set(params["fc2_b"].astype(f32))

    vmem = pl.BlockSpec(memory_space=pltpu.MemorySpace.VMEM)
    out = pl.pallas_call(
        functools.partial(_lenet5_fused_kernel, batch=B),
        out_shape=jax.ShapeDtypeStruct((8, 128), f32),
        in_specs=[vmem] * 7,
        out_specs=vmem,
        scratch_shapes=[
            pltpu.VMEM((8, B * 384), f32),       # windowed pool-1 sums
            pltpu.VMEM((200, L_A2), f32),        # stacked conv2 operand
            pltpu.VMEM((16, L_S2), f32),         # pool-2 sums
            pltpu.VMEM((256, B), f32),           # stacked conv3 operand
        ],
    )(xflat, w1r, w2p, w3p, w4, w5, bias)
    return out[0, :B]                            # == squeeze(1)


# ----------------------- pure-JAX reference (sanity) ------------------------

def im2col(x, kh, kw):
    B, H, W, C = x.shape
    Ho, Wo = H - kh + 1, W - kw + 1
    cols = []
    for i in range(kh):
        for j in range(kw):
            cols.append(x[:, i:i + Ho, j:j + Wo, :])
    return jnp.concatenate(cols, axis=-1)


def conv_weight_to_matrix(w):
    out_ch, in_ch, kh, kw = w.shape
    return jnp.transpose(w, (2, 3, 1, 0)).reshape(kh * kw * in_ch, out_ch)


def lenet5_reference(x_nchw, params):
    x = jnp.transpose(x_nchw, (0, 2, 3, 1)).astype(jnp.float32)

    def conv(x, w, b, k):
        p = im2col(x, k, k)
        B, Ho, Wo, K = p.shape
        y = p.reshape(B * Ho * Wo, K) @ conv_weight_to_matrix(w) + b
        return y.reshape(B, Ho, Wo, -1)

    def pool(x):
        B, H, W, C = x.shape
        return x.reshape(B, H // 2, 2, W // 2, 2, C).mean(axis=(2, 4))

    y = pool(jnp.tanh(conv(x, params["conv1_w"], params["conv1_b"], 5)))
    y = pool(jnp.tanh(conv(y, params["conv2_w"], params["conv2_b"], 5)))
    y = jnp.tanh(conv(y, params["conv3_w"], params["conv3_b"], 4))
    y = y.reshape(y.shape[0], -1)
    y = jnp.tanh(y @ params["fc1_w"].T + params["fc1_b"])
    y = jax.nn.sigmoid(y @ params["fc2_w"].T + params["fc2_b"])
    return y[:, 0]


# --------------------------- deterministic params ---------------------------

def init_params(key):
    def uniform(k, shape, fan_in):
        bound = 1.0 / np.sqrt(fan_in)
        return jax.random.uniform(k, shape, jnp.float32, -bound, bound)

    keys = jax.random.split(key, 10)
    return {
        "conv1_w": uniform(keys[0], (6, 1, 5, 5), 1 * 5 * 5),
        "conv1_b": uniform(keys[1], (6,), 1 * 5 * 5),
        "conv2_w": uniform(keys[2], (16, 6, 5, 5), 6 * 5 * 5),
        "conv2_b": uniform(keys[3], (16,), 6 * 5 * 5),
        "conv3_w": uniform(keys[4], (120, 16, 4, 4), 16 * 4 * 4),
        "conv3_b": uniform(keys[5], (120,), 16 * 4 * 4),
        "fc1_w": uniform(keys[6], (84, 120), 120),
        "fc1_b": uniform(keys[7], (84,), 120),
        "fc2_w": uniform(keys[8], (1, 84), 84),
        "fc2_b": uniform(keys[9], (1,), 84),
    }


if __name__ == "__main__":
    key = jax.random.PRNGKey(0)
    pkey, xkey = jax.random.split(key)
    params = init_params(pkey)

    # LeNet-5 geometry requires 28x28 single-channel input (NCHW, like PyTorch).
    x = jax.random.normal(xkey, (2, 1, 28, 28), jnp.float32)

    fwd = jax.jit(lenet5_forward)
    out = jax.block_until_ready(fwd(x, params))
    ref = jax.block_until_ready(lenet5_reference(x, params))

    assert out.shape == (2,), out.shape
    assert np.allclose(np.asarray(out), np.asarray(ref), atol=2e-3, rtol=2e-3), (
        np.asarray(out), np.asarray(ref))
    print("KERNEL_OK")
</pallas_src>

<mosaic_0001>
module attributes {stable_mosaic.version = 11 : i64} {
  func.func @_lenet5_fused_kernel(%arg0: memref<1x1568xf32, #tpu.memory_space<vmem>>, %arg1: memref<6x25xf32, #tpu.memory_space<vmem>>, %arg2: memref<16x200xf32, #tpu.memory_space<vmem>>, %arg3: memref<120x256xf32, #tpu.memory_space<vmem>>, %arg4: memref<84x120xf32, #tpu.memory_space<vmem>>, %arg5: memref<1x84xf32, #tpu.memory_space<vmem>>, %arg6: memref<128x8xf32, #tpu.memory_space<vmem>>, %arg7: memref<8x128xf32, #tpu.memory_space<vmem>>, %arg8: memref<8x768xf32, #tpu.memory_space<vmem>>, %arg9: memref<200x623xf32, #tpu.memory_space<vmem>>, %arg10: memref<16x589xf32, #tpu.memory_space<vmem>>, %arg11: memref<256x2xf32, #tpu.memory_space<vmem>>) attributes {dimension_semantics = [], scalar_prefetch = 0 : i64, scratch_operands = 4 : i64, tpu.core_type = #tpu.core_type<tc>} {
    %c0 = arith.constant 0 : index
    %c0_0 = arith.constant 0 : index
    %0 = vector.load %arg6[%c0, %c0_0] : memref<128x8xf32, #tpu.memory_space<vmem>>, vector<6x1xf32>
    %c0_1 = arith.constant 0 : index
    %c1 = arith.constant 1 : index
    %1 = vector.load %arg6[%c0_1, %c1] : memref<128x8xf32, #tpu.memory_space<vmem>>, vector<16x1xf32>
    %c0_2 = arith.constant 0 : index
    %c2 = arith.constant 2 : index
    %2 = vector.load %arg6[%c0_2, %c2] : memref<128x8xf32, #tpu.memory_space<vmem>>, vector<120x1xf32>
    %c0_3 = arith.constant 0 : index
    %c3 = arith.constant 3 : index
    %3 = vector.load %arg6[%c0_3, %c3] : memref<128x8xf32, #tpu.memory_space<vmem>>, vector<84x1xf32>
    %c0_4 = arith.constant 0 : index
    %c4 = arith.constant 4 : index
    %4 = vector.load %arg6[%c0_4, %c4] : memref<128x8xf32, #tpu.memory_space<vmem>>, vector<1x1xf32>
    %c0_5 = arith.constant 0 : index
    %c0_6 = arith.constant 0 : index
    %5 = vector.load %arg0[%c0_5, %c0_6] : memref<1x1568xf32, #tpu.memory_space<vmem>>, vector<1x1568xf32>
    %c0_7 = arith.constant 0 : index
    %c0_8 = arith.constant 0 : index
    %6 = vector.load %arg1[%c0_7, %c0_8] : memref<6x25xf32, #tpu.memory_space<vmem>>, vector<6x25xf32>
    %7 = vector.extract_strided_slice %6 {offsets = [0, 0], sizes = [6, 1], strides = [1, 1]} : vector<6x25xf32> to vector<6x1xf32>
    %8 = vector.extract_strided_slice %5 {offsets = [0, 0], sizes = [1, 1452], strides = [1, 1]} : vector<1x1568xf32> to vector<1x1452xf32>
    %9 = vector.broadcast %7 : vector<6x1xf32> to vector<6x1452xf32>
    %10 = vector.broadcast %8 : vector<1x1452xf32> to vector<6x1452xf32>
    %11 = arith.mulf %9, %10 : vector<6x1452xf32>
    %12 = vector.extract_strided_slice %6 {offsets = [0, 1], sizes = [6, 1], strides = [1, 1]} : vector<6x25xf32> to vector<6x1xf32>
    %13 = vector.extract_strided_slice %5 {offsets = [0, 1], sizes = [1, 1452], strides = [1, 1]} : vector<1x1568xf32> to vector<1x1452xf32>
    %14 = vector.broadcast %12 : vector<6x1xf32> to vector<6x1452xf32>
    %15 = vector.broadcast %13 : vector<1x1452xf32> to vector<6x1452xf32>
    %16 = arith.mulf %14, %15 : vector<6x1452xf32>
    %17 = arith.addf %11, %16 : vector<6x1452xf32>
    %18 = vector.extract_strided_slice %6 {offsets = [0, 2], sizes = [6, 1], strides = [1, 1]} : vector<6x25xf32> to vector<6x1xf32>
    %19 = vector.extract_strided_slice %5 {offsets = [0, 2], sizes = [1, 1452], strides = [1, 1]} : vector<1x1568xf32> to vector<1x1452xf32>
    %20 = vector.broadcast %18 : vector<6x1xf32> to vector<6x1452xf32>
    %21 = vector.broadcast %19 : vector<1x1452xf32> to vector<6x1452xf32>
    %22 = arith.mulf %20, %21 : vector<6x1452xf32>
    %23 = arith.addf %17, %22 : vector<6x1452xf32>
    %24 = vector.extract_strided_slice %6 {offsets = [0, 3], sizes = [6, 1], strides = [1, 1]} : vector<6x25xf32> to vector<6x1xf32>
    %25 = vector.extract_strided_slice %5 {offsets = [0, 3], sizes = [1, 1452], strides = [1, 1]} : vector<1x1568xf32> to vector<1x1452xf32>
    %26 = vector.broadcast %24 : vector<6x1xf32> to vector<6x1452xf32>
    %27 = vector.broadcast %25 : vector<1x1452xf32> to vector<6x1452xf32>
    %28 = arith.mulf %26, %27 : vector<6x1452xf32>
    %29 = arith.addf %23, %28 : vector<6x1452xf32>
    %30 = vector.extract_strided_slice %6 {offsets = [0, 4], sizes = [6, 1], strides = [1, 1]} : vector<6x25xf32> to vector<6x1xf32>
    %31 = vector.extract_strided_slice %5 {offsets = [0, 4], sizes = [1, 1452], strides = [1, 1]} : vector<1x1568xf32> to vector<1x1452xf32>
    %32 = vector.broadcast %30 : vector<6x1xf32> to vector<6x1452xf32>
    %33 = vector.broadcast %31 : vector<1x1452xf32> to vector<6x1452xf32>
    %34 = arith.mulf %32, %33 : vector<6x1452xf32>
    %35 = arith.addf %29, %34 : vector<6x1452xf32>
    %36 = vector.extract_strided_slice %6 {offsets = [0, 5], sizes = [6, 1], strides = [1, 1]} : vector<6x25xf32> to vector<6x1xf32>
    %37 = vector.extract_strided_slice %5 {offsets = [0, 28], sizes = [1, 1452], strides = [1, 1]} : vector<1x1568xf32> to vector<1x1452xf32>
    %38 = vector.broadcast %36 : vector<6x1xf32> to vector<6x1452xf32>
    %39 = vector.broadcast %37 : vector<1x1452xf32> to vector<6x1452xf32>
    %40 = arith.mulf %38, %39 : vector<6x1452xf32>
    %41 = arith.addf %35, %40 : vector<6x1452xf32>
    %42 = vector.extract_strided_slice %6 {offsets = [0, 6], sizes = [6, 1], strides = [1, 1]} : vector<6x25xf32> to vector<6x1xf32>
    %43 = vector.extract_strided_slice %5 {offsets = [0, 29], sizes = [1, 1452], strides = [1, 1]} : vector<1x1568xf32> to vector<1x1452xf32>
    %44 = vector.broadcast %42 : vector<6x1xf32> to vector<6x1452xf32>
    %45 = vector.broadcast %43 : vector<1x1452xf32> to vector<6x1452xf32>
    %46 = arith.mulf %44, %45 : vector<6x1452xf32>
    %47 = arith.addf %41, %46 : vector<6x1452xf32>
    %48 = vector.extract_strided_slice %6 {offsets = [0, 7], sizes = [6, 1], strides = [1, 1]} : vector<6x25xf32> to vector<6x1xf32>
    %49 = vector.extract_strided_slice %5 {offsets = [0, 30], sizes = [1, 1452], strides = [1, 1]} : vector<1x1568xf32> to vector<1x1452xf32>
    %50 = vector.broadcast %48 : vector<6x1xf32> to vector<6x1452xf32>
    %51 = vector.broadcast %49 : vector<1x1452xf32> to vector<6x1452xf32>
    %52 = arith.mulf %50, %51 : vector<6x1452xf32>
    %53 = arith.addf %47, %52 : vector<6x1452xf32>
    %54 = vector.extract_strided_slice %6 {offsets = [0, 8], sizes = [6, 1], strides = [1, 1]} : vector<6x25xf32> to vector<6x1xf32>
    %55 = vector.extract_strided_slice %5 {offsets = [0, 31], sizes = [1, 1452], strides = [1, 1]} : vector<1x1568xf32> to vector<1x1452xf32>
    %56 = vector.broadcast %54 : vector<6x1xf32> to vector<6x1452xf32>
    %57 = vector.broadcast %55 : vector<1x1452xf32> to vector<6x1452xf32>
    %58 = arith.mulf %56, %57 : vector<6x1452xf32>
    %59 = arith.addf %53, %58 : vector<6x1452xf32>
    %60 = vector.extract_strided_slice %6 {offsets = [0, 9], sizes = [6, 1], strides = [1, 1]} : vector<6x25xf32> to vector<6x1xf32>
    %61 = vector.extract_strided_slice %5 {offsets = [0, 32], sizes = [1, 1452], strides = [1, 1]} : vector<1x1568xf32> to vector<1x1452xf32>
    %62 = vector.broadcast %60 : vector<6x1xf32> to vector<6x1452xf32>
    %63 = vector.broadcast %61 : vector<1x1452xf32> to vector<6x1452xf32>
    %64 = arith.mulf %62, %63 : vector<6x1452xf32>
    %65 = arith.addf %59, %64 : vector<6x1452xf32>
    %66 = vector.extract_strided_slice %6 {offsets = [0, 10], sizes = [6, 1], strides = [1, 1]} : vector<6x25xf32> to vector<6x1xf32>
    %67 = vector.extract_strided_slice %5 {offsets = [0, 56], sizes = [1, 1452], strides = [1, 1]} : vector<1x1568xf32> to vector<1x1452xf32>
    %68 = vector.broadcast %66 : vector<6x1xf32> to vector<6x1452xf32>
    %69 = vector.broadcast %67 : vector<1x1452xf32> to vector<6x1452xf32>
    %70 = arith.mulf %68, %69 : vector<6x1452xf32>
    %71 = arith.addf %65, %70 : vector<6x1452xf32>
    %72 = vector.extract_strided_slice %6 {offsets = [0, 11], sizes = [6, 1], strides = [1, 1]} : vector<6x25xf32> to vector<6x1xf32>
    %73 = vector.extract_strided_slice %5 {offsets = [0, 57], sizes = [1, 1452], strides = [1, 1]} : vector<1x1568xf32> to vector<1x1452xf32>
    %74 = vector.broadcast %72 : vector<6x1xf32> to vector<6x1452xf32>
    %75 = vector.broadcast %73 : vector<1x1452xf32> to vector<6x1452xf32>
    %76 = arith.mulf %74, %75 : vector<6x1452xf32>
    %77 = arith.addf %71, %76 : vector<6x1452xf32>
    %78 = vector.extract_strided_slice %6 {offsets = [0, 12], sizes = [6, 1], strides = [1, 1]} : vector<6x25xf32> to vector<6x1xf32>
    %79 = vector.extract_strided_slice %5 {offsets = [0, 58], sizes = [1, 1452], strides = [1, 1]} : vector<1x1568xf32> to vector<1x1452xf32>
    %80 = vector.broadcast %78 : vector<6x1xf32> to vector<6x1452xf32>
    %81 = vector.broadcast %79 : vector<1x1452xf32> to vector<6x1452xf32>
    %82 = arith.mulf %80, %81 : vector<6x1452xf32>
    %83 = arith.addf %77, %82 : vector<6x1452xf32>
    %84 = vector.extract_strided_slice %6 {offsets = [0, 13], sizes = [6, 1], strides = [1, 1]} : vector<6x25xf32> to vector<6x1xf32>
    %85 = vector.extract_strided_slice %5 {offsets = [0, 59], sizes = [1, 1452], strides = [1, 1]} : vector<1x1568xf32> to vector<1x1452xf32>
    %86 = vector.broadcast %84 : vector<6x1xf32> to vector<6x1452xf32>
    %87 = vector.broadcast %85 : vector<1x1452xf32> to vector<6x1452xf32>
    %88 = arith.mulf %86, %87 : vector<6x1452xf32>
    %89 = arith.addf %83, %88 : vector<6x1452xf32>
    %90 = vector.extract_strided_slice %6 {offsets = [0, 14], sizes = [6, 1], strides = [1, 1]} : vector<6x25xf32> to vector<6x1xf32>
    %91 = vector.extract_strided_slice %5 {offsets = [0, 60], sizes = [1, 1452], strides = [1, 1]} : vector<1x1568xf32> to vector<1x1452xf32>
    %92 = vector.broadcast %90 : vector<6x1xf32> to vector<6x1452xf32>
    %93 = vector.broadcast %91 : vector<1x1452xf32> to vector<6x1452xf32>
    %94 = arith.mulf %92, %93 : vector<6x1452xf32>
    %95 = arith.addf %89, %94 : vector<6x1452xf32>
    %96 = vector.extract_strided_slice %6 {offsets = [0, 15], sizes = [6, 1], strides = [1, 1]} : vector<6x25xf32> to vector<6x1xf32>
    %97 = vector.extract_strided_slice %5 {offsets = [0, 84], sizes = [1, 1452], strides = [1, 1]} : vector<1x1568xf32> to vector<1x1452xf32>
    %98 = vector.broadcast %96 : vector<6x1xf32> to vector<6x1452xf32>
    %99 = vector.broadcast %97 : vector<1x1452xf32> to vector<6x1452xf32>
    %100 = arith.mulf %98, %99 : vector<6x1452xf32>
    %101 = arith.addf %95, %100 : vector<6x1452xf32>
    %102 = vector.extract_strided_slice %6 {offsets = [0, 16], sizes = [6, 1], strides = [1, 1]} : vector<6x25xf32> to vector<6x1xf32>
    %103 = vector.extract_strided_slice %5 {offsets = [0, 85], sizes = [1, 1452], strides = [1, 1]} : vector<1x1568xf32> to vector<1x1452xf32>
    %104 = vector.broadcast %102 : vector<6x1xf32> to vector<6x1452xf32>
    %105 = vector.broadcast %103 : vector<1x1452xf32> to vector<6x1452xf32>
    %106 = arith.mulf %104, %105 : vector<6x1452xf32>
    %107 = arith.addf %101, %106 : vector<6x1452xf32>
    %108 = vector.extract_strided_slice %6 {offsets = [0, 17], sizes = [6, 1], strides = [1, 1]} : vector<6x25xf32> to vector<6x1xf32>
    %109 = vector.extract_strided_slice %5 {offsets = [0, 86], sizes = [1, 1452], strides = [1, 1]} : vector<1x1568xf32> to vector<1x1452xf32>
    %110 = vector.broadcast %108 : vector<6x1xf32> to vector<6x1452xf32>
    %111 = vector.broadcast %109 : vector<1x1452xf32> to vector<6x1452xf32>
    %112 = arith.mulf %110, %111 : vector<6x1452xf32>
    %113 = arith.addf %107, %112 : vector<6x1452xf32>
    %114 = vector.extract_strided_slice %6 {offsets = [0, 18], sizes = [6, 1], strides = [1, 1]} : vector<6x25xf32> to vector<6x1xf32>
    %115 = vector.extract_strided_slice %5 {offsets = [0, 87], sizes = [1, 1452], strides = [1, 1]} : vector<1x1568xf32> to vector<1x1452xf32>
    %116 = vector.broadcast %114 : vector<6x1xf32> to vector<6x1452xf32>
    %117 = vector.broadcast %115 : vector<1x1452xf32> to vector<6x1452xf32>
    %118 = arith.mulf %116, %117 : vector<6x1452xf32>
    %119 = arith.addf %113, %118 : vector<6x1452xf32>
    %120 = vector.extract_strided_slice %6 {offsets = [0, 19], sizes = [6, 1], strides = [1, 1]} : vector<6x25xf32> to vector<6x1xf32>
    %121 = vector.extract_strided_slice %5 {offsets = [0, 88], sizes = [1, 1452], strides = [1, 1]} : vector<1x1568xf32> to vector<1x1452xf32>
    %122 = vector.broadcast %120 : vector<6x1xf32> to vector<6x1452xf32>
    %123 = vector.broadcast %121 : vector<1x1452xf32> to vector<6x1452xf32>
    %124 = arith.mulf %122, %123 : vector<6x1452xf32>
    %125 = arith.addf %119, %124 : vector<6x1452xf32>
    %126 = vector.extract_strided_slice %6 {offsets = [0, 20], sizes = [6, 1], strides = [1, 1]} : vector<6x25xf32> to vector<6x1xf32>
    %127 = vector.extract_strided_slice %5 {offsets = [0, 112], sizes = [1, 1452], strides = [1, 1]} : vector<1x1568xf32> to vector<1x1452xf32>
    %128 = vector.broadcast %126 : vector<6x1xf32> to vector<6x1452xf32>
    %129 = vector.broadcast %127 : vector<1x1452xf32> to vector<6x1452xf32>
    %130 = arith.mulf %128, %129 : vector<6x1452xf32>
    %131 = arith.addf %125, %130 : vector<6x1452xf32>
    %132 = vector.extract_strided_slice %6 {offsets = [0, 21], sizes = [6, 1], strides = [1, 1]} : vector<6x25xf32> to vector<6x1xf32>
    %133 = vector.extract_strided_slice %5 {offsets = [0, 113], sizes = [1, 1452], strides = [1, 1]} : vector<1x1568xf32> to vector<1x1452xf32>
    %134 = vector.broadcast %132 : vector<6x1xf32> to vector<6x1452xf32>
    %135 = vector.broadcast %133 : vector<1x1452xf32> to vector<6x1452xf32>
    %136 = arith.mulf %134, %135 : vector<6x1452xf32>
    %137 = arith.addf %131, %136 : vector<6x1452xf32>
    %138 = vector.extract_strided_slice %6 {offsets = [0, 22], sizes = [6, 1], strides = [1, 1]} : vector<6x25xf32> to vector<6x1xf32>
    %139 = vector.extract_strided_slice %5 {offsets = [0, 114], sizes = [1, 1452], strides = [1, 1]} : vector<1x1568xf32> to vector<1x1452xf32>
    %140 = vector.broadcast %138 : vector<6x1xf32> to vector<6x1452xf32>
    %141 = vector.broadcast %139 : vector<1x1452xf32> to vector<6x1452xf32>
    %142 = arith.mulf %140, %141 : vector<6x1452xf32>
    %143 = arith.addf %137, %142 : vector<6x1452xf32>
    %144 = vector.extract_strided_slice %6 {offsets = [0, 23], sizes = [6, 1], strides = [1, 1]} : vector<6x25xf32> to vector<6x1xf32>
    %145 = vector.extract_strided_slice %5 {offsets = [0, 115], sizes = [1, 1452], strides = [1, 1]} : vector<1x1568xf32> to vector<1x1452xf32>
    %146 = vector.broadcast %144 : vector<6x1xf32> to vector<6x1452xf32>
    %147 = vector.broadcast %145 : vector<1x1452xf32> to vector<6x1452xf32>
    %148 = arith.mulf %146, %147 : vector<6x1452xf32>
    %149 = arith.addf %143, %148 : vector<6x1452xf32>
    %150 = vector.extract_strided_slice %6 {offsets = [0, 24], sizes = [6, 1], strides = [1, 1]} : vector<6x25xf32> to vector<6x1xf32>
    %151 = vector.extract_strided_slice %5 {offsets = [0, 116], sizes = [1, 1452], strides = [1, 1]} : vector<1x1568xf32> to vector<1x1452xf32>
    %152 = vector.broadcast %150 : vector<6x1xf32> to vector<6x1452xf32>
    %153 = vector.broadcast %151 : vector<1x1452xf32> to vector<6x1452xf32>
    %154 = arith.mulf %152, %153 : vector<6x1452xf32>
    %155 = arith.addf %149, %154 : vector<6x1452xf32>
    %156 = vector.broadcast %0 : vector<6x1xf32> to vector<6x1452xf32>
    %157 = arith.addf %155, %156 : vector<6x1452xf32>
    %158 = math.tanh %157 : vector<6x1452xf32>
    %159 = vector.extract_strided_slice %158 {offsets = [0, 0], sizes = [6, 1423], strides = [1, 1]} : vector<6x1452xf32> to vector<6x1423xf32>
    %160 = vector.extract_strided_slice %158 {offsets = [0, 1], sizes = [6, 1423], strides = [1, 1]} : vector<6x1452xf32> to vector<6x1423xf32>
    %161 = arith.addf %159, %160 : vector<6x1423xf32>
    %162 = vector.extract_strided_slice %158 {offsets = [0, 28], sizes = [6, 1423], strides = [1, 1]} : vector<6x1452xf32> to vector<6x1423xf32>
    %163 = arith.addf %161, %162 : vector<6x1423xf32>
    %164 = vector.extract_strided_slice %158 {offsets = [0, 29], sizes = [6, 1423], strides = [1, 1]} : vector<6x1452xf32> to vector<6x1423xf32>
    %165 = arith.addf %163, %164 : vector<6x1423xf32>
    %cst = arith.constant 0.000000e+00 : f32
    %166 = vector.broadcast %cst : f32 to vector<8x768xf32>
    %c0_9 = arith.constant 0 : index
    %c0_10 = arith.constant 0 : index
    %167 = vector.load %arg8[%c0_9, %c0_10] : memref<8x768xf32, #tpu.memory_space<vmem>>, vector<8x768xf32>
    tpu.vector_store %arg8[%c0_9, %c0_10], %166 {strides = array<i32>} : memref<8x768xf32, #tpu.memory_space<vmem>>, vector<8x768xf32>,
    %168 = vector.extract_strided_slice %165 {offsets = [0, 0], sizes = [6, 23], strides = [1, 1]} : vector<6x1423xf32> to vector<6x23xf32>
    %c0_11 = arith.constant 0 : index
    %c0_12 = arith.constant 0 : index
    %169 = vector.load %arg8[%c0_11, %c0_12] : memref<8x768xf32, #tpu.memory_space<vmem>>, vector<6x23xf32>
    tpu.vector_store %arg8[%c0_11, %c0_12], %168 {strides = array<i32>} : memref<8x768xf32, #tpu.memory_space<vmem>>, vector<6x23xf32>,
    %170 = vector.extract_strided_slice %165 {offsets = [0, 56], sizes = [6, 23], strides = [1, 1]} : vector<6x1423xf32> to vector<6x23xf32>
    %c0_13 = arith.constant 0 : index
    %c32 = arith.constant 32 : index
    %171 = vector.load %arg8[%c0_13, %c32] : memref<8x768xf32, #tpu.memory_space<vmem>>, vector<6x23xf32>
    tpu.vector_store %arg8[%c0_13, %c32], %170 {strides = array<i32>} : memref<8x768xf32, #tpu.memory_space<vmem>>, vector<6x23xf32>,
    %172 = vector.extract_strided_slice %165 {offsets = [0, 112], sizes = [6, 23], strides = [1, 1]} : vector<6x1423xf32> to vector<6x23xf32>
    %c0_14 = arith.constant 0 : index
    %c64 = arith.constant 64 : index
    %173 = vector.load %arg8[%c0_14, %c64] : memref<8x768xf32, #tpu.memory_space<vmem>>, vector<6x23xf32>
    tpu.vector_store %arg8[%c0_14, %c64], %172 {strides = array<i32>} : memref<8x768xf32, #tpu.memory_space<vmem>>, vector<6x23xf32>,
    %174 = vector.extract_strided_slice %165 {offsets = [0, 168], sizes = [6, 23], strides = [1, 1]} : vector<6x1423xf32> to vector<6x23xf32>
    %c0_15 = arith.constant 0 : index
    %c96 = arith.constant 96 : index
    %175 = vector.load %arg8[%c0_15, %c96] : memref<8x768xf32, #tpu.memory_space<vmem>>, vector<6x23xf32>
    tpu.vector_store %arg8[%c0_15, %c96], %174 {strides = array<i32>} : memref<8x768xf32, #tpu.memory_space<vmem>>, vector<6x23xf32>,
    %176 = vector.extract_strided_slice %165 {offsets = [0, 224], sizes = [6, 23], strides = [1, 1]} : vector<6x1423xf32> to vector<6x23xf32>
    %c0_16 = arith.constant 0 : index
    %c128 = arith.constant 128 : index
    %177 = vector.load %arg8[%c0_16, %c128] : memref<8x768xf32, #tpu.memory_space<vmem>>, vector<6x23xf32>
    tpu.vector_store %arg8[%c0_16, %c128], %176 {strides = array<i32>} : memref<8x768xf32, #tpu.memory_space<vmem>>, vector<6x23xf32>,
    %178 = vector.extract_strided_slice %165 {offsets = [0, 280], sizes = [6, 23], strides = [1, 1]} : vector<6x1423xf32> to vector<6x23xf32>
    %c0_17 = arith.constant 0 : index
    %c160 = arith.constant 160 : index
    %179 = vector.load %arg8[%c0_17, %c160] : memref<8x768xf32, #tpu.memory_space<vmem>>, vector<6x23xf32>
    tpu.vector_store %arg8[%c0_17, %c160], %178 {strides = array<i32>} : memref<8x768xf32, #tpu.memory_space<vmem>>, vector<6x23xf32>,
    %180 = vector.extract_strided_slice %165 {offsets = [0, 336], sizes = [6, 23], strides = [1, 1]} : vector<6x1423xf32> to vector<6x23xf32>
    %c0_18 = arith.constant 0 : index
    %c192 = arith.constant 192 : index
    %181 = vector.load %arg8[%c0_18, %c192] : memref<8x768xf32, #tpu.memory_space<vmem>>, vector<6x23xf32>
    tpu.vector_store %arg8[%c0_18, %c192], %180 {strides = array<i32>} : memref<8x768xf32, #tpu.memory_space<vmem>>, vector<6x23xf32>,
    %182 = vector.extract_strided_slice %165 {offsets = [0, 392], sizes = [6, 23], strides = [1, 1]} : vector<6x1423xf32> to vector<6x23xf32>
    %c0_19 = arith.constant 0 : index
    %c224 = arith.constant 224 : index
    %183 = vector.load %arg8[%c0_19, %c224] : memref<8x768xf32, #tpu.memory_space<vmem>>, vector<6x23xf32>
    tpu.vector_store %arg8[%c0_19, %c224], %182 {strides = array<i32>} : memref<8x768xf32, #tpu.memory_space<vmem>>, vector<6x23xf32>,
    %184 = vector.extract_strided_slice %165 {offsets = [0, 448], sizes = [6, 23], strides = [1, 1]} : vector<6x1423xf32> to vector<6x23xf32>
    %c0_20 = arith.constant 0 : index
    %c256 = arith.constant 256 : index
    %185 = vector.load %arg8[%c0_20, %c256] : memref<8x768xf32, #tpu.memory_space<vmem>>, vector<6x23xf32>
    tpu.vector_store %arg8[%c0_20, %c256], %184 {strides = array<i32>} : memref<8x768xf32, #tpu.memory_space<vmem>>, vector<6x23xf32>,
    %186 = vector.extract_strided_slice %165 {offsets = [0, 504], sizes = [6, 23], strides = [1, 1]} : vector<6x1423xf32> to vector<6x23xf32>
    %c0_21 = arith.constant 0 : index
    %c288 = arith.constant 288 : index
    %187 = vector.load %arg8[%c0_21, %c288] : memref<8x768xf32, #tpu.memory_space<vmem>>, vector<6x23xf32>
    tpu.vector_store %arg8[%c0_21, %c288], %186 {strides = array<i32>} : memref<8x768xf32, #tpu.memory_space<vmem>>, vector<6x23xf32>,
    %188 = vector.extract_strided_slice %165 {offsets = [0, 560], sizes = [6, 23], strides = [1, 1]} : vector<6x1423xf32> to vector<6x23xf32>
    %c0_22 = arith.constant 0 : index
    %c320 = arith.constant 320 : index
    %189 = vector.load %arg8[%c0_22, %c320] : memref<8x768xf32, #tpu.memory_space<vmem>>, vector<6x23xf32>
    tpu.vector_store %arg8[%c0_22, %c320], %188 {strides = array<i32>} : memref<8x768xf32, #tpu.memory_space<vmem>>, vector<6x23xf32>,
    %190 = vector.extract_strided_slice %165 {offsets = [0, 616], sizes = [6, 23], strides = [1, 1]} : vector<6x1423xf32> to vector<6x23xf32>
    %c0_23 = arith.constant 0 : index
    %c352 = arith.constant 352 : index
    %191 = vector.load %arg8[%c0_23, %c352] : memref<8x768xf32, #tpu.memory_space<vmem>>, vector<6x23xf32>
    tpu.vector_store %arg8[%c0_23, %c352], %190 {strides = array<i32>} : memref<8x768xf32, #tpu.memory_space<vmem>>, vector<6x23xf32>,
    %192 = vector.extract_strided_slice %165 {offsets = [0, 784], sizes = [6, 23], strides = [1, 1]} : vector<6x1423xf32> to vector<6x23xf32>
    %c0_24 = arith.constant 0 : index
    %c384 = arith.constant 384 : index
    %193 = vector.load %arg8[%c0_24, %c384] : memref<8x768xf32, #tpu.memory_space<vmem>>, vector<6x23xf32>
    tpu.vector_store %arg8[%c0_24, %c384], %192 {strides = array<i32>} : memref<8x768xf32, #tpu.memory_space<vmem>>, vector<6x23xf32>,
    %194 = vector.extract_strided_slice %165 {offsets = [0, 840], sizes = [6, 23], strides = [1, 1]} : vector<6x1423xf32> to vector<6x23xf32>
    %c0_25 = arith.constant 0 : index
    %c416 = arith.constant 416 : index
    %195 = vector.load %arg8[%c0_25, %c416] : memref<8x768xf32, #tpu.memory_space<vmem>>, vector<6x23xf32>
    tpu.vector_store %arg8[%c0_25, %c416], %194 {strides = array<i32>} : memref<8x768xf32, #tpu.memory_space<vmem>>, vector<6x23xf32>,
    %196 = vector.extract_strided_slice %165 {offsets = [0, 896], sizes = [6, 23], strides = [1, 1]} : vector<6x1423xf32> to vector<6x23xf32>
    %c0_26 = arith.constant 0 : index
    %c448 = arith.constant 448 : index
    %197 = vector.load %arg8[%c0_26, %c448] : memref<8x768xf32, #tpu.memory_space<vmem>>, vector<6x23xf32>
    tpu.vector_store %arg8[%c0_26, %c448], %196 {strides = array<i32>} : memref<8x768xf32, #tpu.memory_space<vmem>>, vector<6x23xf32>,
    %198 = vector.extract_strided_slice %165 {offsets = [0, 952], sizes = [6, 23], strides = [1, 1]} : vector<6x1423xf32> to vector<6x23xf32>
    %c0_27 = arith.constant 0 : index
    %c480 = arith.constant 480 : index
    %199 = vector.load %arg8[%c0_27, %c480] : memref<8x768xf32, #tpu.memory_space<vmem>>, vector<6x23xf32>
    tpu.vector_store %arg8[%c0_27, %c480], %198 {strides = array<i32>} : memref<8x768xf32, #tpu.memory_space<vmem>>, vector<6x23xf32>,
    %200 = vector.extract_strided_slice %165 {offsets = [0, 1008], sizes = [6, 23], strides = [1, 1]} : vector<6x1423xf32> to vector<6x23xf32>
    %c0_28 = arith.constant 0 : index
    %c512 = arith.constant 512 : index
    %201 = vector.load %arg8[%c0_28, %c512] : memref<8x768xf32, #tpu.memory_space<vmem>>, vector<6x23xf32>
    tpu.vector_store %arg8[%c0_28, %c512], %200 {strides = array<i32>} : memref<8x768xf32, #tpu.memory_space<vmem>>, vector<6x23xf32>,
    %202 = vector.extract_strided_slice %165 {offsets = [0, 1064], sizes = [6, 23], strides = [1, 1]} : vector<6x1423xf32> to vector<6x23xf32>
    %c0_29 = arith.constant 0 : index
    %c544 = arith.constant 544 : index
    %203 = vector.load %arg8[%c0_29, %c544] : memref<8x768xf32, #tpu.memory_space<vmem>>, vector<6x23xf32>
    tpu.vector_store %arg8[%c0_29, %c544], %202 {strides = array<i32>} : memref<8x768xf32, #tpu.memory_space<vmem>>, vector<6x23xf32>,
    %204 = vector.extract_strided_slice %165 {offsets = [0, 1120], sizes = [6, 23], strides = [1, 1]} : vector<6x1423xf32> to vector<6x23xf32>
    %c0_30 = arith.constant 0 : index
    %c576 = arith.constant 576 : index
    %205 = vector.load %arg8[%c0_30, %c576] : memref<8x768xf32, #tpu.memory_space<vmem>>, vector<6x23xf32>
    tpu.vector_store %arg8[%c0_30, %c576], %204 {strides = array<i32>} : memref<8x768xf32, #tpu.memory_space<vmem>>, vector<6x23xf32>,
    %206 = vector.extract_strided_slice %165 {offsets = [0, 1176], sizes = [6, 23], strides = [1, 1]} : vector<6x1423xf32> to vector<6x23xf32>
    %c0_31 = arith.constant 0 : index
    %c608 = arith.constant 608 : index
    %207 = vector.load %arg8[%c0_31, %c608] : memref<8x768xf32, #tpu.memory_space<vmem>>, vector<6x23xf32>
    tpu.vector_store %arg8[%c0_31, %c608], %206 {strides = array<i32>} : memref<8x768xf32, #tpu.memory_space<vmem>>, vector<6x23xf32>,
    %208 = vector.extract_strided_slice %165 {offsets = [0, 1232], sizes = [6, 23], strides = [1, 1]} : vector<6x1423xf32> to vector<6x23xf32>
    %c0_32 = arith.constant 0 : index
    %c640 = arith.constant 640 : index
    %209 = vector.load %arg8[%c0_32, %c640] : memref<8x768xf32, #tpu.memory_space<vmem>>, vector<6x23xf32>
    tpu.vector_store %arg8[%c0_32, %c640], %208 {strides = array<i32>} : memref<8x768xf32, #tpu.memory_space<vmem>>, vector<6x23xf32>,
    %210 = vector.extract_strided_slice %165 {offsets = [0, 1288], sizes = [6, 23], strides = [1, 1]} : vector<6x1423xf32> to vector<6x23xf32>
    %c0_33 = arith.constant 0 : index
    %c672 = arith.constant 672 : index
    %211 = vector.load %arg8[%c0_33, %c672] : memref<8x768xf32, #tpu.memory_space<vmem>>, vector<6x23xf32>
    tpu.vector_store %arg8[%c0_33, %c672], %210 {strides = array<i32>} : memref<8x768xf32, #tpu.memory_space<vmem>>, vector<6x23xf32>,
    %212 = vector.extract_strided_slice %165 {offsets = [0, 1344], sizes = [6, 23], strides = [1, 1]} : vector<6x1423xf32> to vector<6x23xf32>
    %c0_34 = arith.constant 0 : index
    %c704 = arith.constant 704 : index
    %213 = vector.load %arg8[%c0_34, %c704] : memref<8x768xf32, #tpu.memory_space<vmem>>, vector<6x23xf32>
    tpu.vector_store %arg8[%c0_34, %c704], %212 {strides = array<i32>} : memref<8x768xf32, #tpu.memory_space<vmem>>, vector<6x23xf32>,
    %214 = vector.extract_strided_slice %165 {offsets = [0, 1400], sizes = [6, 23], strides = [1, 1]} : vector<6x1423xf32> to vector<6x23xf32>
    %c0_35 = arith.constant 0 : index
    %c736 = arith.constant 736 : index
    %215 = vector.load %arg8[%c0_35, %c736] : memref<8x768xf32, #tpu.memory_space<vmem>>, vector<6x23xf32>
    tpu.vector_store %arg8[%c0_35, %c736], %214 {strides = array<i32>} : memref<8x768xf32, #tpu.memory_space<vmem>>, vector<6x23xf32>,
    %c0_36 = arith.constant 0 : index
    %c0_37 = arith.constant 0 : index
    %216 = vector.load %arg8[%c0_36, %c0_37] : memref<8x768xf32, #tpu.memory_space<vmem>>, vector<8x623xf32>
    %c0_38 = arith.constant 0 : index
    %c0_39 = arith.constant 0 : index
    %217 = vector.load %arg9[%c0_38, %c0_39] : memref<200x623xf32, #tpu.memory_space<vmem>>, vector<8x623xf32>
    tpu.vector_store %arg9[%c0_38, %c0_39], %216 {strides = array<i32>} : memref<200x623xf32, #tpu.memory_space<vmem>>, vector<8x623xf32>,
    %c0_40 = arith.constant 0 : index
    %c2_41 = arith.constant 2 : index
    %218 = vector.load %arg8[%c0_40, %c2_41] : memref<8x768xf32, #tpu.memory_space<vmem>>, vector<8x623xf32>
    %c8 = arith.constant 8 : index
    %c0_42 = arith.constant 0 : index
    %219 = vector.load %arg9[%c8, %c0_42] : memref<200x623xf32, #tpu.memory_space<vmem>>, vector<8x623xf32>
    tpu.vector_store %arg9[%c8, %c0_42], %218 {strides = array<i32>} : memref<200x623xf32, #tpu.memory_space<vmem>>, vector<8x623xf32>,
    %c0_43 = arith.constant 0 : index
    %c4_44 = arith.constant 4 : index
    %220 = vector.load %arg8[%c0_43, %c4_44] : memref<8x768xf32, #tpu.memory_space<vmem>>, vector<8x623xf32>
    %c16 = arith.constant 16 : index
    %c0_45 = arith.constant 0 : index
    %221 = vector.load %arg9[%c16, %c0_45] : memref<200x623xf32, #tpu.memory_space<vmem>>, vector<8x623xf32>
    tpu.vector_store %arg9[%c16, %c0_45], %220 {strides = array<i32>} : memref<200x623xf32, #tpu.memory_space<vmem>>, vector<8x623xf32>,
    %c0_46 = arith.constant 0 : index
    %c6 = arith.constant 6 : index
    %222 = vector.load %arg8[%c0_46, %c6] : memref<8x768xf32, #tpu.memory_space<vmem>>, vector<8x623xf32>
    %c24 = arith.constant 24 : index
    %c0_47 = arith.constant 0 : index
    %223 = vector.load %arg9[%c24, %c0_47] : memref<200x623xf32, #tpu.memory_space<vmem>>, vector<8x623xf32>
    tpu.vector_store %arg9[%c24, %c0_47], %222 {strides = array<i32>} : memref<200x623xf32, #tpu.memory_space<vmem>>, vector<8x623xf32>,
    %c0_48 = arith.constant 0 : index
    %c8_49 = arith.constant 8 : index
    %224 = vector.load %arg8[%c0_48, %c8_49] : memref<8x768xf32, #tpu.memory_space<vmem>>, vector<8x623xf32>
    %c32_50 = arith.constant 32 : index
    %c0_51 = arith.constant 0 : index
    %225 = vector.load %arg9[%c32_50, %c0_51] : memref<200x623xf32, #tpu.memory_space<vmem>>, vector<8x623xf32>
    tpu.vector_store %arg9[%c32_50, %c0_51], %224 {strides = array<i32>} : memref<200x623xf32, #tpu.memory_space<vmem>>, vector<8x623xf32>,
    %c0_52 = arith.constant 0 : index
    %c32_53 = arith.constant 32 : index
    %226 = vector.load %arg8[%c0_52, %c32_53] : memref<8x768xf32, #tpu.memory_space<vmem>>, vector<8x623xf32>
    %c40 = arith.constant 40 : index
    %c0_54 = arith.constant 0 : index
    %227 = vector.load %arg9[%c40, %c0_54] : memref<200x623xf32, #tpu.memory_space<vmem>>, vector<8x623xf32>
    tpu.vector_store %arg9[%c40, %c0_54], %226 {strides = array<i32>} : memref<200x623xf32, #tpu.memory_space<vmem>>, vector<8x623xf32>,
    %c0_55 = arith.constant 0 : index
    %c34 = arith.constant 34 : index
    %228 = vector.load %arg8[%c0_55, %c34] : memref<8x768xf32, #tpu.memory_space<vmem>>, vector<8x623xf32>
    %c48 = arith.constant 48 : index
    %c0_56 = arith.constant 0 : index
    %229 = vector.load %arg9[%c48, %c0_56] : memref<200x623xf32, #tpu.memory_space<vmem>>, vector<8x623xf32>
    tpu.vector_store %arg9[%c48, %c0_56], %228 {strides = array<i32>} : memref<200x623xf32, #tpu.memory_space<vmem>>, vector<8x623xf32>,
    %c0_57 = arith.constant 0 : index
    %c36 = arith.constant 36 : index
    %230 = vector.load %arg8[%c0_57, %c36] : memref<8x768xf32, #tpu.memory_space<vmem>>, vector<8x623xf32>
    %c56 = arith.constant 56 : index
    %c0_58 = arith.constant 0 : index
    %231 = vector.load %arg9[%c56, %c0_58] : memref<200x623xf32, #tpu.memory_space<vmem>>, vector<8x623xf32>
    tpu.vector_store %arg9[%c56, %c0_58], %230 {strides = array<i32>} : memref<200x623xf32, #tpu.memory_space<vmem>>, vector<8x623xf32>,
    %c0_59 = arith.constant 0 : index
    %c38 = arith.constant 38 : index
    %232 = vector.load %arg8[%c0_59, %c38] : memref<8x768xf32, #tpu.memory_space<vmem>>, vector<8x623xf32>
    %c64_60 = arith.constant 64 : index
    %c0_61 = arith.constant 0 : index
    %233 = vector.load %arg9[%c64_60, %c0_61] : memref<200x623xf32, #tpu.memory_space<vmem>>, vector<8x623xf32>
    tpu.vector_store %arg9[%c64_60, %c0_61], %232 {strides = array<i32>} : memref<200x623xf32, #tpu.memory_space<vmem>>, vector<8x623xf32>,
    %c0_62 = arith.constant 0 : index
    %c40_63 = arith.constant 40 : index
    %234 = vector.load %arg8[%c0_62, %c40_63] : memref<8x768xf32, #tpu.memory_space<vmem>>, vector<8x623xf32>
    %c72 = arith.constant 72 : index
    %c0_64 = arith.constant 0 : index
    %235 = vector.load %arg9[%c72, %c0_64] : memref<200x623xf32, #tpu.memory_space<vmem>>, vector<8x623xf32>
    tpu.vector_store %arg9[%c72, %c0_64], %234 {strides = array<i32>} : memref<200x623xf32, #tpu.memory_space<vmem>>, vector<8x623xf32>,
    %c0_65 = arith.constant 0 : index
    %c64_66 = arith.constant 64 : index
    %236 = vector.load %arg8[%c0_65, %c64_66] : memref<8x768xf32, #tpu.memory_space<vmem>>, vector<8x623xf32>
    %c80 = arith.constant 80 : index
    %c0_67 = arith.constant 0 : index
    %237 = vector.load %arg9[%c80, %c0_67] : memref<200x623xf32, #tpu.memory_space<vmem>>, vector<8x623xf32>
    tpu.vector_store %arg9[%c80, %c0_67], %236 {strides = array<i32>} : memref<200x623xf32, #tpu.memory_space<vmem>>, vector<8x623xf32>,
    %c0_68 = arith.constant 0 : index
    %c66 = arith.constant 66 : index
    %238 = vector.load %arg8[%c0_68, %c66] : memref<8x768xf32, #tpu.memory_space<vmem>>, vector<8x623xf32>
    %c88 = arith.constant 88 : index
    %c0_69 = arith.constant 0 : index
    %239 = vector.load %arg9[%c88, %c0_69] : memref<200x623xf32, #tpu.memory_space<vmem>>, vector<8x623xf32>
    tpu.vector_store %arg9[%c88, %c0_69], %238 {strides = array<i32>} : memref<200x623xf32, #tpu.memory_space<vmem>>, vector<8x623xf32>,
    %c0_70 = arith.constant 0 : index
    %c68 = arith.constant 68 : index
    %240 = vector.load %arg8[%c0_70, %c68] : memref<8x768xf32, #tpu.memory_space<vmem>>, vector<8x623xf32>
    %c96_71 = arith.constant 96 : index
    %c0_72 = arith.constant 0 : index
    %241 = vector.load %arg9[%c96_71, %c0_72] : memref<200x623xf32, #tpu.memory_space<vmem>>, vector<8x623xf32>
    tpu.vector_store %arg9[%c96_71, %c0_72], %240 {strides = array<i32>} : memref<200x623xf32, #tpu.memory_space<vmem>>, vector<8x623xf32>,
    %c0_73 = arith.constant 0 : index
    %c70 = arith.constant 70 : index
    %242 = vector.load %arg8[%c0_73, %c70] : memref<8x768xf32, #tpu.memory_space<vmem>>, vector<8x623xf32>
    %c104 = arith.constant 104 : index
    %c0_74 = arith.constant 0 : index
    %243 = vector.load %arg9[%c104, %c0_74] : memref<200x623xf32, #tpu.memory_space<vmem>>, vector<8x623xf32>
    tpu.vector_store %arg9[%c104, %c0_74], %242 {strides = array<i32>} : memref<200x623xf32, #tpu.memory_space<vmem>>, vector<8x623xf32>,
    %c0_75 = arith.constant 0 : index
    %c72_76 = arith.constant 72 : index
    %244 = vector.load %arg8[%c0_75, %c72_76] : memref<8x768xf32, #tpu.memory_space<vmem>>, vector<8x623xf32>
    %c112 = arith.constant 112 : index
    %c0_77 = arith.constant 0 : index
    %245 = vector.load %arg9[%c112, %c0_77] : memref<200x623xf32, #tpu.memory_space<vmem>>, vector<8x623xf32>
    tpu.vector_store %arg9[%c112, %c0_77], %244 {strides = array<i32>} : memref<200x623xf32, #tpu.memory_space<vmem>>, vector<8x623xf32>,
    %c0_78 = arith.constant 0 : index
    %c96_79 = arith.constant 96 : index
    %246 = vector.load %arg8[%c0_78, %c96_79] : memref<8x768xf32, #tpu.memory_space<vmem>>, vector<8x623xf32>
    %c120 = arith.constant 120 : index
    %c0_80 = arith.constant 0 : index
    %247 = vector.load %arg9[%c120, %c0_80] : memref<200x623xf32, #tpu.memory_space<vmem>>, vector<8x623xf32>
    tpu.vector_store %arg9[%c120, %c0_80], %246 {strides = array<i32>} : memref<200x623xf32, #tpu.memory_space<vmem>>, vector<8x623xf32>,
    %c0_81 = arith.constant 0 : index
    %c98 = arith.constant 98 : index
    %248 = vector.load %arg8[%c0_81, %c98] : memref<8x768xf32, #tpu.memory_space<vmem>>, vector<8x623xf32>
    %c128_82 = arith.constant 128 : index
    %c0_83 = arith.constant 0 : index
    %249 = vector.load %arg9[%c128_82, %c0_83] : memref<200x623xf32, #tpu.memory_space<vmem>>, vector<8x623xf32>
    tpu.vector_store %arg9[%c128_82, %c0_83], %248 {strides = array<i32>} : memref<200x623xf32, #tpu.memory_space<vmem>>, vector<8x623xf32>,
    %c0_84 = arith.constant 0 : index
    %c100 = arith.constant 100 : index
    %250 = vector.load %arg8[%c0_84, %c100] : memref<8x768xf32, #tpu.memory_space<vmem>>, vector<8x623xf32>
    %c136 = arith.constant 136 : index
    %c0_85 = arith.constant 0 : index
    %251 = vector.load %arg9[%c136, %c0_85] : memref<200x623xf32, #tpu.memory_space<vmem>>, vector<8x623xf32>
    tpu.vector_store %arg9[%c136, %c0_85], %250 {strides = array<i32>} : memref<200x623xf32, #tpu.memory_space<vmem>>, vector<8x623xf32>,
    %c0_86 = arith.constant 0 : index
    %c102 = arith.constant 102 : index
    %252 = vector.load %arg8[%c0_86, %c102] : memref<8x768xf32, #tpu.memory_space<vmem>>, vector<8x623xf32>
    %c144 = arith.constant 144 : index
    %c0_87 = arith.constant 0 : index
    %253 = vector.load %arg9[%c144, %c0_87] : memref<200x623xf32, #tpu.memory_space<vmem>>, vector<8x623xf32>
    tpu.vector_store %arg9[%c144, %c0_87], %252 {strides = array<i32>} : memref<200x623xf32, #tpu.memory_space<vmem>>, vector<8x623xf32>,
    %c0_88 = arith.constant 0 : index
    %c104_89 = arith.constant 104 : index
    %254 = vector.load %arg8[%c0_88, %c104_89] : memref<8x768xf32, #tpu.memory_space<vmem>>, vector<8x623xf32>
    %c152 = arith.constant 152 : index
    %c0_90 = arith.constant 0 : index
    %255 = vector.load %arg9[%c152, %c0_90] : memref<200x623xf32, #tpu.memory_space<vmem>>, vector<8x623xf32>
    tpu.vector_store %arg9[%c152, %c0_90], %254 {strides = array<i32>} : memref<200x623xf32, #tpu.memory_space<vmem>>, vector<8x623xf32>,
    %c0_91 = arith.constant 0 : index
    %c128_92 = arith.constant 128 : index
    %256 = vector.load %arg8[%c0_91, %c128_92] : memref<8x768xf32, #tpu.memory_space<vmem>>, vector<8x623xf32>
    %c160_93 = arith.constant 160 : index
    %c0_94 = arith.constant 0 : index
    %257 = vector.load %arg9[%c160_93, %c0_94] : memref<200x623xf32, #tpu.memory_space<vmem>>, vector<8x623xf32>
    tpu.vector_store %arg9[%c160_93, %c0_94], %256 {strides = array<i32>} : memref<200x623xf32, #tpu.memory_space<vmem>>, vector<8x623xf32>,
    %c0_95 = arith.constant 0 : index
    %c130 = arith.constant 130 : index
    %258 = vector.load %arg8[%c0_95, %c130] : memref<8x768xf32, #tpu.memory_space<vmem>>, vector<8x623xf32>
    %c168 = arith.constant 168 : index
    %c0_96 = arith.constant 0 : index
    %259 = vector.load %arg9[%c168, %c0_96] : memref<200x623xf32, #tpu.memory_space<vmem>>, vector<8x623xf32>
    tpu.vector_store %arg9[%c168, %c0_96], %258 {strides = array<i32>} : memref<200x623xf32, #tpu.memory_space<vmem>>, vector<8x623xf32>,
    %c0_97 = arith.constant 0 : index
    %c132 = arith.constant 132 : index
    %260 = vector.load %arg8[%c0_97, %c132] : memref<8x768xf32, #tpu.memory_space<vmem>>, vector<8x623xf32>
    %c176 = arith.constant 176 : index
    %c0_98 = arith.constant 0 : index
    %261 = vector.load %arg9[%c176, %c0_98] : memref<200x623xf32, #tpu.memory_space<vmem>>, vector<8x623xf32>
    tpu.vector_store %arg9[%c176, %c0_98], %260 {strides = array<i32>} : memref<200x623xf32, #tpu.memory_space<vmem>>, vector<8x623xf32>,
    %c0_99 = arith.constant 0 : index
    %c134 = arith.constant 134 : index
    %262 = vector.load %arg8[%c0_99, %c134] : memref<8x768xf32, #tpu.memory_space<vmem>>, vector<8x623xf32>
    %c184 = arith.constant 184 : index
    %c0_100 = arith.constant 0 : index
    %263 = vector.load %arg9[%c184, %c0_100] : memref<200x623xf32, #tpu.memory_space<vmem>>, vector<8x623xf32>
    tpu.vector_store %arg9[%c184, %c0_100], %262 {strides = array<i32>} : memref<200x623xf32, #tpu.memory_space<vmem>>, vector<8x623xf32>,
    %c0_101 = arith.constant 0 : index
    %c136_102 = arith.constant 136 : index
    %264 = vector.load %arg8[%c0_101, %c136_102] : memref<8x768xf32, #tpu.memory_space<vmem>>, vector<8x623xf32>
    %c192_103 = arith.constant 192 : index
    %c0_104 = arith.constant 0 : index
    %265 = vector.load %arg9[%c192_103, %c0_104] : memref<200x623xf32, #tpu.memory_space<vmem>>, vector<8x623xf32>
    tpu.vector_store %arg9[%c192_103, %c0_104], %264 {strides = array<i32>} : memref<200x623xf32, #tpu.memory_space<vmem>>, vector<8x623xf32>,
    %c0_105 = arith.constant 0 : index
    %c0_106 = arith.constant 0 : index
    %266 = vector.load %arg2[%c0_105, %c0_106] : memref<16x200xf32, #tpu.memory_space<vmem>>, vector<16x200xf32>
    %c0_107 = arith.constant 0 : index
    %c0_108 = arith.constant 0 : index
    %267 = vector.load %arg9[%c0_107, %c0_108] : memref<200x623xf32, #tpu.memory_space<vmem>>, vector<200x623xf32>
    %cst_109 = arith.constant dense<0.000000e+00> : vector<16x623xf32>
    %268 = tpu.matmul %266, %267, %cst_109 {dimension_numbers = #tpu.dot_dimension_numbers<[1], [0], [0], [1], [0, 0, 1, 1], [], []>} : vector<16x200xf32>, vector<200x623xf32>, vector<16x623xf32> -> vector<16x623xf32>
    %269 = vector.broadcast %1 : vector<16x1xf32> to vector<16x623xf32>
    %270 = arith.addf %268, %269 : vector<16x623xf32>
    %271 = math.tanh %270 : vector<16x623xf32>
    %272 = vector.extract_strided_slice %271 {offsets = [0, 0], sizes = [16, 589], strides = [1, 1]} : vector<16x623xf32> to vector<16x589xf32>
    %273 = vector.extract_strided_slice %271 {offsets = [0, 2], sizes = [16, 589], strides = [1, 1]} : vector<16x623xf32> to vector<16x589xf32>
    %274 = arith.addf %272, %273 : vector<16x589xf32>
    %275 = vector.extract_strided_slice %271 {offsets = [0, 32], sizes = [16, 589], strides = [1, 1]} : vector<16x623xf32> to vector<16x589xf32>
    %276 = arith.addf %274, %275 : vector<16x589xf32>
    %277 = vector.extract_strided_slice %271 {offsets = [0, 34], sizes = [16, 589], strides = [1, 1]} : vector<16x623xf32> to vector<16x589xf32>
    %278 = arith.addf %276, %277 : vector<16x589xf32>
    %c0_110 = arith.constant 0 : index
    %c0_111 = arith.constant 0 : index
    %279 = vector.load %arg10[%c0_110, %c0_111] : memref<16x589xf32, #tpu.memory_space<vmem>>, vector<16x589xf32>
    tpu.vector_store %arg10[%c0_110, %c0_111], %278 {strides = array<i32>} : memref<16x589xf32, #tpu.memory_space<vmem>>, vector<16x589xf32>,
    %c0_112 = arith.constant 0 : index
    %c0_113 = arith.constant 0 : index
    %280 = vector.load %arg10[%c0_112, %c0_113] : memref<16x589xf32, #tpu.memory_space<vmem>>, vector<16x1xf32>
    %c0_114 = arith.constant 0 : index
    %c0_115 = arith.constant 0 : index
    %281 = vector.load %arg11[%c0_114, %c0_115] : memref<256x2xf32, #tpu.memory_space<vmem>>, vector<16x1xf32>
    tpu.vector_store %arg11[%c0_114, %c0_115], %280 {strides = array<i32>} : memref<256x2xf32, #tpu.memory_space<vmem>>, vector<16x1xf32>,
    %c0_116 = arith.constant 0 : index
    %c384_117 = arith.constant 384 : index
    %282 = vector.load %arg10[%c0_116, %c384_117] : memref<16x589xf32, #tpu.memory_space<vmem>>, vector<16x1xf32>
    %c0_118 = arith.constant 0 : index
    %c1_119 = arith.constant 1 : index
    %283 = vector.load %arg11[%c0_118, %c1_119] : memref<256x2xf32, #tpu.memory_space<vmem>>, vector<16x1xf32>
    tpu.vector_store %arg11[%c0_118, %c1_119], %282 {strides = array<i32>} : memref<256x2xf32, #tpu.memory_space<vmem>>, vector<16x1xf32>,
    %c0_120 = arith.constant 0 : index
    %c4_121 = arith.constant 4 : index
    %284 = vector.load %arg10[%c0_120, %c4_121] : memref<16x589xf32, #tpu.memory_space<vmem>>, vector<16x1xf32>
    %c16_122 = arith.constant 16 : index
    %c0_123 = arith.constant 0 : index
    %285 = vector.load %arg11[%c16_122, %c0_123] : memref<256x2xf32, #tpu.memory_space<vmem>>, vector<16x1xf32>
    tpu.vector_store %arg11[%c16_122, %c0_123], %284 {strides = array<i32>} : memref<256x2xf32, #tpu.memory_space<vmem>>, vector<16x1xf32>,
    %c0_124 = arith.constant 0 : index
    %c388 = arith.constant 388 : index
    %286 = vector.load %arg10[%c0_124, %c388] : memref<16x589xf32, #tpu.memory_space<vmem>>, vector<16x1xf32>
    %c16_125 = arith.constant 16 : index
    %c1_126 = arith.constant 1 : index
    %287 = vector.load %arg11[%c16_125, %c1_126] : memref<256x2xf32, #tpu.memory_space<vmem>>, vector<16x1xf32>
    tpu.vector_store %arg11[%c16_125, %c1_126], %286 {strides = array<i32>} : memref<256x2xf32, #tpu.memory_space<vmem>>, vector<16x1xf32>,
    %c0_127 = arith.constant 0 : index
    %c8_128 = arith.constant 8 : index
    %288 = vector.load %arg10[%c0_127, %c8_128] : memref<16x589xf32, #tpu.memory_space<vmem>>, vector<16x1xf32>
    %c32_129 = arith.constant 32 : index
    %c0_130 = arith.constant 0 : index
    %289 = vector.load %arg11[%c32_129, %c0_130] : memref<256x2xf32, #tpu.memory_space<vmem>>, vector<16x1xf32>
    tpu.vector_store %arg11[%c32_129, %c0_130], %288 {strides = array<i32>} : memref<256x2xf32, #tpu.memory_space<vmem>>, vector<16x1xf32>,
    %c0_131 = arith.constant 0 : index
    %c392 = arith.constant 392 : index
    %290 = vector.load %arg10[%c0_131, %c392] : memref<16x589xf32, #tpu.memory_space<vmem>>, vector<16x1xf32>
    %c32_132 = arith.constant 32 : index
    %c1_133 = arith.constant 1 : index
    %291 = vector.load %arg11[%c32_132, %c1_133] : memref<256x2xf32, #tpu.memory_space<vmem>>, vector<16x1xf32>
    tpu.vector_store %arg11[%c32_132, %c1_133], %290 {strides = array<i32>} : memref<256x2xf32, #tpu.memory_space<vmem>>, vector<16x1xf32>,
    %c0_134 = arith.constant 0 : index
    %c12 = arith.constant 12 : index
    %292 = vector.load %arg10[%c0_134, %c12] : memref<16x589xf32, #tpu.memory_space<vmem>>, vector<16x1xf32>
    %c48_135 = arith.constant 48 : index
    %c0_136 = arith.constant 0 : index
    %293 = vector.load %arg11[%c48_135, %c0_136] : memref<256x2xf32, #tpu.memory_space<vmem>>, vector<16x1xf32>
    tpu.vector_store %arg11[%c48_135, %c0_136], %292 {strides = array<i32>} : memref<256x2xf32, #tpu.memory_space<vmem>>, vector<16x1xf32>,
    %c0_137 = arith.constant 0 : index
    %c396 = arith.constant 396 : index
    %294 = vector.load %arg10[%c0_137, %c396] : memref<16x589xf32, #tpu.memory_space<vmem>>, vector<16x1xf32>
    %c48_138 = arith.constant 48 : index
    %c1_139 = arith.constant 1 : index
    %295 = vector.load %arg11[%c48_138, %c1_139] : memref<256x2xf32, #tpu.memory_space<vmem>>, vector<16x1xf32>
    tpu.vector_store %arg11[%c48_138, %c1_139], %294 {strides = array<i32>} : memref<256x2xf32, #tpu.memory_space<vmem>>, vector<16x1xf32>,
    %c0_140 = arith.constant 0 : index
    %c64_141 = arith.constant 64 : index
    %296 = vector.load %arg10[%c0_140, %c64_141] : memref<16x589xf32, #tpu.memory_space<vmem>>, vector<16x1xf32>
    %c64_142 = arith.constant 64 : index
    %c0_143 = arith.constant 0 : index
    %297 = vector.load %arg11[%c64_142, %c0_143] : memref<256x2xf32, #tpu.memory_space<vmem>>, vector<16x1xf32>
    tpu.vector_store %arg11[%c64_142, %c0_143], %296 {strides = array<i32>} : memref<256x2xf32, #tpu.memory_space<vmem>>, vector<16x1xf32>,
    %c0_144 = arith.constant 0 : index
    %c448_145 = arith.constant 448 : index
    %298 = vector.load %arg10[%c0_144, %c448_145] : memref<16x589xf32, #tpu.memory_space<vmem>>, vector<16x1xf32>
    %c64_146 = arith.constant 64 : index
    %c1_147 = arith.constant 1 : index
    %299 = vector.load %arg11[%c64_146, %c1_147] : memref<256x2xf32, #tpu.memory_space<vmem>>, vector<16x1xf32>
    tpu.vector_store %arg11[%c64_146, %c1_147], %298 {strides = array<i32>} : memref<256x2xf32, #tpu.memory_space<vmem>>, vector<16x1xf32>,
    %c0_148 = arith.constant 0 : index
    %c68_149 = arith.constant 68 : index
    %300 = vector.load %arg10[%c0_148, %c68_149] : memref<16x589xf32, #tpu.memory_space<vmem>>, vector<16x1xf32>
    %c80_150 = arith.constant 80 : index
    %c0_151 = arith.constant 0 : index
    %301 = vector.load %arg11[%c80_150, %c0_151] : memref<256x2xf32, #tpu.memory_space<vmem>>, vector<16x1xf32>
    tpu.vector_store %arg11[%c80_150, %c0_151], %300 {strides = array<i32>} : memref<256x2xf32, #tpu.memory_space<vmem>>, vector<16x1xf32>,
    %c0_152 = arith.constant 0 : index
    %c452 = arith.constant 452 : index
    %302 = vector.load %arg10[%c0_152, %c452] : memref<16x589xf32, #tpu.memory_space<vmem>>, vector<16x1xf32>
    %c80_153 = arith.constant 80 : index
    %c1_154 = arith.constant 1 : index
    %303 = vector.load %arg11[%c80_153, %c1_154] : memref<256x2xf32, #tpu.memory_space<vmem>>, vector<16x1xf32>
    tpu.vector_store %arg11[%c80_153, %c1_154], %302 {strides = array<i32>} : memref<256x2xf32, #tpu.memory_space<vmem>>, vector<16x1xf32>,
    %c0_155 = arith.constant 0 : index
    %c72_156 = arith.constant 72 : index
    %304 = vector.load %arg10[%c0_155, %c72_156] : memref<16x589xf32, #tpu.memory_space<vmem>>, vector<16x1xf32>
    %c96_157 = arith.constant 96 : index
    %c0_158 = arith.constant 0 : index
    %305 = vector.load %arg11[%c96_157, %c0_158] : memref<256x2xf32, #tpu.memory_space<vmem>>, vector<16x1xf32>
    tpu.vector_store %arg11[%c96_157, %c0_158], %304 {strides = array<i32>} : memref<256x2xf32, #tpu.memory_space<vmem>>, vector<16x1xf32>,
    %c0_159 = arith.constant 0 : index
    %c456 = arith.constant 456 : index
    %306 = vector.load %arg10[%c0_159, %c456] : memref<16x589xf32, #tpu.memory_space<vmem>>, vector<16x1xf32>
    %c96_160 = arith.constant 96 : index
    %c1_161 = arith.constant 1 : index
    %307 = vector.load %arg11[%c96_160, %c1_161] : memref<256x2xf32, #tpu.memory_space<vmem>>, vector<16x1xf32>
    tpu.vector_store %arg11[%c96_160, %c1_161], %306 {strides = array<i32>} : memref<256x2xf32, #tpu.memory_space<vmem>>, vector<16x1xf32>,
    %c0_162 = arith.constant 0 : index
    %c76 = arith.constant 76 : index
    %308 = vector.load %arg10[%c0_162, %c76] : memref<16x589xf32, #tpu.memory_space<vmem>>, vector<16x1xf32>
    %c112_163 = arith.constant 112 : index
    %c0_164 = arith.constant 0 : index
    %309 = vector.load %arg11[%c112_163, %c0_164] : memref<256x2xf32, #tpu.memory_space<vmem>>, vector<16x1xf32>
    tpu.vector_store %arg11[%c112_163, %c0_164], %308 {strides = array<i32>} : memref<256x2xf32, #tpu.memory_space<vmem>>, vector<16x1xf32>,
    %c0_165 = arith.constant 0 : index
    %c460 = arith.constant 460 : index
    %310 = vector.load %arg10[%c0_165, %c460] : memref<16x589xf32, #tpu.memory_space<vmem>>, vector<16x1xf32>
    %c112_166 = arith.constant 112 : index
    %c1_167 = arith.constant 1 : index
    %311 = vector.load %arg11[%c112_166, %c1_167] : memref<256x2xf32, #tpu.memory_space<vmem>>, vector<16x1xf32>
    tpu.vector_store %arg11[%c112_166, %c1_167], %310 {strides = array<i32>} : memref<256x2xf32, #tpu.memory_space<vmem>>, vector<16x1xf32>,
    %c0_168 = arith.constant 0 : index
    %c128_169 = arith.constant 128 : index
    %312 = vector.load %arg10[%c0_168, %c128_169] : memref<16x589xf32, #tpu.memory_space<vmem>>, vector<16x1xf32>
    %c128_170 = arith.constant 128 : index
    %c0_171 = arith.constant 0 : index
    %313 = vector.load %arg11[%c128_170, %c0_171] : memref<256x2xf32, #tpu.memory_space<vmem>>, vector<16x1xf32>
    tpu.vector_store %arg11[%c128_170, %c0_171], %312 {strides = array<i32>} : memref<256x2xf32, #tpu.memory_space<vmem>>, vector<16x1xf32>,
    %c0_172 = arith.constant 0 : index
    %c512_173 = arith.constant 512 : index
    %314 = vector.load %arg10[%c0_172, %c512_173] : memref<16x589xf32, #tpu.memory_space<vmem>>, vector<16x1xf32>
    %c128_174 = arith.constant 128 : index
    %c1_175 = arith.constant 1 : index
    %315 = vector.load %arg11[%c128_174, %c1_175] : memref<256x2xf32, #tpu.memory_space<vmem>>, vector<16x1xf32>
    tpu.vector_store %arg11[%c128_174, %c1_175], %314 {strides = array<i32>} : memref<256x2xf32, #tpu.memory_space<vmem>>, vector<16x1xf32>,
    %c0_176 = arith.constant 0 : index
    %c132_177 = arith.constant 132 : index
    %316 = vector.load %arg10[%c0_176, %c132_177] : memref<16x589xf32, #tpu.memory_space<vmem>>, vector<16x1xf32>
    %c144_178 = arith.constant 144 : index
    %c0_179 = arith.constant 0 : index
    %317 = vector.load %arg11[%c144_178, %c0_179] : memref<256x2xf32, #tpu.memory_space<vmem>>, vector<16x1xf32>
    tpu.vector_store %arg11[%c144_178, %c0_179], %316 {strides = array<i32>} : memref<256x2xf32, #tpu.memory_space<vmem>>, vector<16x1xf32>,
    %c0_180 = arith.constant 0 : index
    %c516 = arith.constant 516 : index
    %318 = vector.load %arg10[%c0_180, %c516] : memref<16x589xf32, #tpu.memory_space<vmem>>, vector<16x1xf32>
    %c144_181 = arith.constant 144 : index
    %c1_182 = arith.constant 1 : index
    %319 = vector.load %arg11[%c144_181, %c1_182] : memref<256x2xf32, #tpu.memory_space<vmem>>, vector<16x1xf32>
    tpu.vector_store %arg11[%c144_181, %c1_182], %318 {strides = array<i32>} : memref<256x2xf32, #tpu.memory_space<vmem>>, vector<16x1xf32>,
    %c0_183 = arith.constant 0 : index
    %c136_184 = arith.constant 136 : index
    %320 = vector.load %arg10[%c0_183, %c136_184] : memref<16x589xf32, #tpu.memory_space<vmem>>, vector<16x1xf32>
    %c160_185 = arith.constant 160 : index
    %c0_186 = arith.constant 0 : index
    %321 = vector.load %arg11[%c160_185, %c0_186] : memref<256x2xf32, #tpu.memory_space<vmem>>, vector<16x1xf32>
    tpu.vector_store %arg11[%c160_185, %c0_186], %320 {strides = array<i32>} : memref<256x2xf32, #tpu.memory_space<vmem>>, vector<16x1xf32>,
    %c0_187 = arith.constant 0 : index
    %c520 = arith.constant 520 : index
    %322 = vector.load %arg10[%c0_187, %c520] : memref<16x589xf32, #tpu.memory_space<vmem>>, vector<16x1xf32>
    %c160_188 = arith.constant 160 : index
    %c1_189 = arith.constant 1 : index
    %323 = vector.load %arg11[%c160_188, %c1_189] : memref<256x2xf32, #tpu.memory_space<vmem>>, vector<16x1xf32>
    tpu.vector_store %arg11[%c160_188, %c1_189], %322 {strides = array<i32>} : memref<256x2xf32, #tpu.memory_space<vmem>>, vector<16x1xf32>,
    %c0_190 = arith.constant 0 : index
    %c140 = arith.constant 140 : index
    %324 = vector.load %arg10[%c0_190, %c140] : memref<16x589xf32, #tpu.memory_space<vmem>>, vector<16x1xf32>
    %c176_191 = arith.constant 176 : index
    %c0_192 = arith.constant 0 : index
    %325 = vector.load %arg11[%c176_191, %c0_192] : memref<256x2xf32, #tpu.memory_space<vmem>>, vector<16x1xf32>
    tpu.vector_store %arg11[%c176_191, %c0_192], %324 {strides = array<i32>} : memref<256x2xf32, #tpu.memory_space<vmem>>, vector<16x1xf32>,
    %c0_193 = arith.constant 0 : index
    %c524 = arith.constant 524 : index
    %326 = vector.load %arg10[%c0_193, %c524] : memref<16x589xf32, #tpu.memory_space<vmem>>, vector<16x1xf32>
    %c176_194 = arith.constant 176 : index
    %c1_195 = arith.constant 1 : index
    %327 = vector.load %arg11[%c176_194, %c1_195] : memref<256x2xf32, #tpu.memory_space<vmem>>, vector<16x1xf32>
    tpu.vector_store %arg11[%c176_194, %c1_195], %326 {strides = array<i32>} : memref<256x2xf32, #tpu.memory_space<vmem>>, vector<16x1xf32>,
    %c0_196 = arith.constant 0 : index
    %c192_197 = arith.constant 192 : index
    %328 = vector.load %arg10[%c0_196, %c192_197] : memref<16x589xf32, #tpu.memory_space<vmem>>, vector<16x1xf32>
    %c192_198 = arith.constant 192 : index
    %c0_199 = arith.constant 0 : index
    %329 = vector.load %arg11[%c192_198, %c0_199] : memref<256x2xf32, #tpu.memory_space<vmem>>, vector<16x1xf32>
    tpu.vector_store %arg11[%c192_198, %c0_199], %328 {strides = array<i32>} : memref<256x2xf32, #tpu.memory_space<vmem>>, vector<16x1xf32>,
    %c0_200 = arith.constant 0 : index
    %c576_201 = arith.constant 576 : index
    %330 = vector.load %arg10[%c0_200, %c576_201] : memref<16x589xf32, #tpu.memory_space<vmem>>, vector<16x1xf32>
    %c192_202 = arith.constant 192 : index
    %c1_203 = arith.constant 1 : index
    %331 = vector.load %arg11[%c192_202, %c1_203] : memref<256x2xf32, #tpu.memory_space<vmem>>, vector<16x1xf32>
    tpu.vector_store %arg11[%c192_202, %c1_203], %330 {strides = array<i32>} : memref<256x2xf32, #tpu.memory_space<vmem>>, vector<16x1xf32>,
    %c0_204 = arith.constant 0 : index
    %c196 = arith.constant 196 : index
    %332 = vector.load %arg10[%c0_204, %c196] : memref<16x589xf32, #tpu.memory_space<vmem>>, vector<16x1xf32>
    %c208 = arith.constant 208 : index
    %c0_205 = arith.constant 0 : index
    %333 = vector.load %arg11[%c208, %c0_205] : memref<256x2xf32, #tpu.memory_space<vmem>>, vector<16x1xf32>
    tpu.vector_store %arg11[%c208, %c0_205], %332 {strides = array<i32>} : memref<256x2xf32, #tpu.memory_space<vmem>>, vector<16x1xf32>,
    %c0_206 = arith.constant 0 : index
    %c580 = arith.constant 580 : index
    %334 = vector.load %arg10[%c0_206, %c580] : memref<16x589xf32, #tpu.memory_space<vmem>>, vector<16x1xf32>
    %c208_207 = arith.constant 208 : index
    %c1_208 = arith.constant 1 : index
    %335 = vector.load %arg11[%c208_207, %c1_208] : memref<256x2xf32, #tpu.memory_space<vmem>>, vector<16x1xf32>
    tpu.vector_store %arg11[%c208_207, %c1_208], %334 {strides = array<i32>} : memref<256x2xf32, #tpu.memory_space<vmem>>, vector<16x1xf32>,
    %c0_209 = arith.constant 0 : index
    %c200 = arith.constant 200 : index
    %336 = vector.load %arg10[%c0_209, %c200] : memref<16x589xf32, #tpu.memory_space<vmem>>, vector<16x1xf32>
    %c224_210 = arith.constant 224 : index
    %c0_211 = arith.constant 0 : index
    %337 = vector.load %arg11[%c224_210, %c0_211] : memref<256x2xf32, #tpu.memory_space<vmem>>, vector<16x1xf32>
    tpu.vector_store %arg11[%c224_210, %c0_211], %336 {strides = array<i32>} : memref<256x2xf32, #tpu.memory_space<vmem>>, vector<16x1xf32>,
    %c0_212 = arith.constant 0 : index
    %c584 = arith.constant 584 : index
    %338 = vector.load %arg10[%c0_212, %c584] : memref<16x589xf32, #tpu.memory_space<vmem>>, vector<16x1xf32>
    %c224_213 = arith.constant 224 : index
    %c1_214 = arith.constant 1 : index
    %339 = vector.load %arg11[%c224_213, %c1_214] : memref<256x2xf32, #tpu.memory_space<vmem>>, vector<16x1xf32>
    tpu.vector_store %arg11[%c224_213, %c1_214], %338 {strides = array<i32>} : memref<256x2xf32, #tpu.memory_space<vmem>>, vector<16x1xf32>,
    %c0_215 = arith.constant 0 : index
    %c204 = arith.constant 204 : index
    %340 = vector.load %arg10[%c0_215, %c204] : memref<16x589xf32, #tpu.memory_space<vmem>>, vector<16x1xf32>
    %c240 = arith.constant 240 : index
    %c0_216 = arith.constant 0 : index
    %341 = vector.load %arg11[%c240, %c0_216] : memref<256x2xf32, #tpu.memory_space<vmem>>, vector<16x1xf32>
    tpu.vector_store %arg11[%c240, %c0_216], %340 {strides = array<i32>} : memref<256x2xf32, #tpu.memory_space<vmem>>, vector<16x1xf32>,
    %c0_217 = arith.constant 0 : index
    %c588 = arith.constant 588 : index
    %342 = vector.load %arg10[%c0_217, %c588] : memref<16x589xf32, #tpu.memory_space<vmem>>, vector<16x1xf32>
    %c240_218 = arith.constant 240 : index
    %c1_219 = arith.constant 1 : index
    %343 = vector.load %arg11[%c240_218, %c1_219] : memref<256x2xf32, #tpu.memory_space<vmem>>, vector<16x1xf32>
    tpu.vector_store %arg11[%c240_218, %c1_219], %342 {strides = array<i32>} : memref<256x2xf32, #tpu.memory_space<vmem>>, vector<16x1xf32>,
    %c0_220 = arith.constant 0 : index
    %c0_221 = arith.constant 0 : index
    %344 = vector.load %arg3[%c0_220, %c0_221] : memref<120x256xf32, #tpu.memory_space<vmem>>, vector<120x256xf32>
    %c0_222 = arith.constant 0 : index
    %c0_223 = arith.constant 0 : index
    %345 = vector.load %arg11[%c0_222, %c0_223] : memref<256x2xf32, #tpu.memory_space<vmem>>, vector<256x2xf32>
    %cst_224 = arith.constant dense<0.000000e+00> : vector<120x2xf32>
    %346 = tpu.matmul %344, %345, %cst_224 {dimension_numbers = #tpu.dot_dimension_numbers<[1], [0], [0], [1], [0, 0, 1, 1], [], []>} : vector<120x256xf32>, vector<256x2xf32>, vector<120x2xf32> -> vector<120x2xf32>
    %347 = vector.broadcast %2 : vector<120x1xf32> to vector<120x2xf32>
    %348 = arith.addf %346, %347 : vector<120x2xf32>
    %349 = math.tanh %348 : vector<120x2xf32>
    %c0_225 = arith.constant 0 : index
    %c0_226 = arith.constant 0 : index
    %350 = vector.load %arg4[%c0_225, %c0_226] : memref<84x120xf32, #tpu.memory_space<vmem>>, vector<84x120xf32>
    %cst_227 = arith.constant dense<0.000000e+00> : vector<84x2xf32>
    %351 = tpu.matmul %350, %349, %cst_227 {dimension_numbers = #tpu.dot_dimension_numbers<[1], [0], [0], [1], [0, 0, 1, 1], [], []>} : vector<84x120xf32>, vector<120x2xf32>, vector<84x2xf32> -> vector<84x2xf32>
    %352 = vector.broadcast %3 : vector<84x1xf32> to vector<84x2xf32>
    %353 = arith.addf %351, %352 : vector<84x2xf32>
    %354 = math.tanh %353 : vector<84x2xf32>
    %c0_228 = arith.constant 0 : index
    %c0_229 = arith.constant 0 : index
    %355 = vector.load %arg5[%c0_228, %c0_229] : memref<1x84xf32, #tpu.memory_space<vmem>>, vector<1x84xf32>
    %cst_230 = arith.constant dense<0.000000e+00> : vector<1x2xf32>
    %356 = tpu.matmul %355, %354, %cst_230 {dimension_numbers = #tpu.dot_dimension_numbers<[1], [0], [0], [1], [0, 0, 1, 1], [], []>} : vector<1x84xf32>, vector<84x2xf32>, vector<1x2xf32> -> vector<1x2xf32>
    %357 = vector.broadcast %4 : vector<1x1xf32> to vector<1x2xf32>
    %358 = arith.addf %356, %357 : vector<1x2xf32>
    %359 = arith.negf %358 : vector<1x2xf32>
    %360 = math.exp %359 : vector<1x2xf32>
    %cst_231 = arith.constant 1.000000e+00 : f32
    %361 = vector.broadcast %cst_231 : f32 to vector<1x2xf32>
    %362 = arith.addf %361, %360 : vector<1x2xf32>
    %363 = arith.divf %361, %362 : vector<1x2xf32>
    %cst_232 = arith.constant 0.000000e+00 : f32
    %364 = vector.broadcast %cst_232 : f32 to vector<8x128xf32>
    %c0_233 = arith.constant 0 : index
    %c0_234 = arith.constant 0 : index
    %365 = vector.load %arg7[%c0_233, %c0_234] : memref<8x128xf32, #tpu.memory_space<vmem>>, vector<8x128xf32>
    tpu.vector_store %arg7[%c0_233, %c0_234], %364 {strides = array<i32>} : memref<8x128xf32, #tpu.memory_space<vmem>>, vector<8x128xf32>,
    %c0_235 = arith.constant 0 : index
    %c0_236 = arith.constant 0 : index
    %366 = vector.load %arg7[%c0_235, %c0_236] : memref<8x128xf32, #tpu.memory_space<vmem>>, vector<1x2xf32>
    tpu.vector_store %arg7[%c0_235, %c0_236], %363 {strides = array<i32>} : memref<8x128xf32, #tpu.memory_space<vmem>>, vector<1x2xf32>,
    return
  }
}

</mosaic_0001>

<llo_original>
// kernel: lenet5_forward.1
$region0: #{lenet5_forward.1}
  #allocation0 [shape = 'u32[]', space=smem, size = 0x4, offset = 0x4, fixed_abs, tag = 'smem constant byte address 0x4 - core index']
  #allocation1 [shape = 'u32[144,128]{1,0:T(1,128)}', space=vmem, size = 0x12000, scoped, tag = 'internal scratch']
  #allocation2 [shape = 'f32[8,768]{1,0:T(8,128)}', space=vmem, size = 0x6000, scoped, tag = 'scratch operand']
  #allocation3 [shape = 'f32[200,623]{1,0:T(8,128)}', space=vmem, size = 0x7d000, scoped, tag = 'scratch operand']
  #allocation4 [shape = 'f32[16,589]{1,0:T(8,128)}', space=vmem, size = 0xa000, scoped, tag = 'scratch operand']
  #allocation5 [shape = 'f32[256,2]{1,0:T(8,128)}', space=vmem, size = 0x20000, scoped, tag = 'scratch operand']
  %s0 = inlined_call_operand.vmem [shape: f32[1,1568], index: 0, kind: input, shape index: {}]
  %s1 = inlined_call_operand.vmem [shape: f32[6,25], index: 1, kind: input, shape index: {}]
  %s2 = inlined_call_operand.vmem [shape: f32[16,200], index: 2, kind: input, shape index: {}]
  %s3 = inlined_call_operand.vmem [shape: f32[120,256], index: 3, kind: input, shape index: {}]
  %s4 = inlined_call_operand.vmem [shape: f32[84,120], index: 4, kind: input, shape index: {}]
  %s5 = inlined_call_operand.vmem [shape: f32[1,84], index: 5, kind: input, shape index: {}]
  %s6 = inlined_call_operand.vmem [shape: f32[128,8], index: 6, kind: input, shape index: {}]
  %s7 = inlined_call_operand.vmem [shape: f32[8,128], index: 7, kind: output, shape index: {}]
  %s8 = sld [smem:[#allocation0]]
  $region38: #{lenet5_forward.1} parent=0
    _
  %s10 = ssub.s32 1, %s8
  %s11 = scalar_select 0, %s10, %s8
  // Predicated region
  $region2: #{lenet5_forward.1} parent=0 // pred_check
    _
  $region3: #{lenet5_forward.1} parent=0 // pred_check_branch
    %13 = sbr.rel (0) target = $region5
  $region4: #{lenet5_forward.1} parent=0 // pred_region
    _
  $region5: #{lenet5_forward.1} parent=0 // pred_fallthru
    _
  // Predicated region
  $region6: #{lenet5_forward.1} parent=0 // pred_check
    _
  $region7: #{lenet5_forward.1} parent=0 // pred_check_branch
    %15 = sbr.rel (0) target = $region9
  $region8: #{lenet5_forward.1} parent=0 // pred_region
    _
  $region9: #{lenet5_forward.1} parent=0 // pred_fallthru
    _
  // Predicated region
  $region10: #{lenet5_forward.1} parent=0 // pred_check
    _
  $region11: #{lenet5_forward.1} parent=0 // pred_check_branch
    %17 = sbr.rel (0) target = $region13
  $region12: #{lenet5_forward.1} parent=0 // pred_region
    _
  $region13: #{lenet5_forward.1} parent=0 // pred_fallthru
    _
  // Predicated region
  $region14: #{lenet5_forward.1} parent=0 // pred_check
    _
  $region15: #{lenet5_forward.1} parent=0 // pred_check_branch
    %19 = sbr.rel (0) target = $region17
  $region16: #{lenet5_forward.1} parent=0 // pred_region
    _
  $region17: #{lenet5_forward.1} parent=0 // pred_fallthru
    _
  // Predicated region
  $region18: #{lenet5_forward.1} parent=0 // pred_check
    _
  $region19: #{lenet5_forward.1} parent=0 // pred_check_branch
    %21 = sbr.rel (0) target = $region21
  $region20: #{lenet5_forward.1} parent=0 // pred_region
    _
  $region21: #{lenet5_forward.1} parent=0 // pred_fallthru
    _
  // Predicated region
  $region22: #{lenet5_forward.1} parent=0 // pred_check
    _
  $region23: #{lenet5_forward.1} parent=0 // pred_check_branch
    %23 = sbr.rel (0) target = $region25
  $region24: #{lenet5_forward.1} parent=0 // pred_region
    _
  $region25: #{lenet5_forward.1} parent=0 // pred_fallthru
    _
  // Predicated region
  $region26: #{lenet5_forward.1} parent=0 // pred_check
    _
  $region27: #{lenet5_forward.1} parent=0 // pred_check_branch
    %25 = sbr.rel (0) target = $region29
  $region28: #{lenet5_forward.1} parent=0 // pred_region
    _
  $region29: #{lenet5_forward.1} parent=0 // pred_fallthru
    _
  %v26 = vld [vmem:[%s6] sm:$0x3f]
  %v27 = vld [vmem:[%s6] sm:$0xff]
  %v28 = vld [vmem:[%s6 + $0x8] sm:$0xff]
  %v29 = vld [vmem:[%s6 + $0x10] sm:$0xff]
  %v30 = vld [vmem:[%s6 + $0x18] sm:$0xff]
  %v31 = vld [vmem:[%s6 + $0x20] sm:$0xff]
  %v32 = vld [vmem:[%s6 + $0x28] sm:$0xff]
  %v33 = vld [vmem:[%s6 + $0x30] sm:$0xff]
  %v34 = vld [vmem:[%s6 + $0x38] sm:$0xff]
  %v35 = vld [vmem:[%s6 + $0x40] sm:$0xff]
  %v36 = vld [vmem:[%s6 + $0x48] sm:$0xff]
  %v37 = vld [vmem:[%s6 + $0x50] sm:$0xff]
  %v38 = vld [vmem:[%s6 + $0x58] sm:$0xff]
  %v39 = vld [vmem:[%s6 + $0x60] sm:$0xff]
  %v40 = vld [vmem:[%s6 + $0x68] sm:$0xff]
  %v41 = vld [vmem:[%s6 + $0x70] sm:$0xff]
  %v42 = vld [vmem:[%s6 + $0x50] sm:$0xf]
  %v43 = vld [vmem:[%s6] sm:$0x1]
  %v44 = vld [vmem:[%s0] sm:$0xff]
  %v45 = vld [vmem:[%s0 + $0x8] sm:$0x1f]
  %v46 = vld [vmem:[%s1] sm:$0x3f]
  %48 = vset.pattern.permute.xlu0 0
  %49 = vperm.xlu0 %48, %v46
  %v50 = vpop.permute.xlu0 %49
  %v54 = vlaneseq
  %v55 = vshrl.u32 %v54, 7
  %v56 = vsub.s32 0, %v55
  %v57 = vrot.slane %v44, %v56
  %v58 = vlaneseq
  %v59 = vshrl.u32 %v58, 7
  %v60 = vsub.s32 1, %v59
  %v61 = vrot.slane %v44, %v60
  %v62 = vlaneseq
  %v63 = vshrl.u32 %v62, 7
  %v64 = vsub.s32 2, %v63
  %v65 = vrot.slane %v44, %v64
  %v66 = vlaneseq
  %v67 = vshrl.u32 %v66, 7
  %v68 = vsub.s32 3, %v67
  %v69 = vrot.slane %v44, %v68
  %v70 = vlaneseq
  %v71 = vshrl.u32 %v70, 7
  %v72 = vsub.s32 4, %v71
  %v73 = vrot.slane %v44, %v72
  %v74 = vlaneseq
  %v75 = vshrl.u32 %v74, 7
  %v76 = vsub.s32 5, %v75
  %v77 = vrot.slane %v44, %v76
  %v78 = vlaneseq
  %v79 = vshrl.u32 %v78, 7
  %v80 = vsub.s32 6, %v79
  %v81 = vrot.slane %v44, %v80
  %v82 = vlaneseq
  %v83 = vshrl.u32 %v82, 7
  %v84 = vsub.s32 7, %v83
  %v85 = vrot.slane %v44, %v84
  %v86 = vlaneseq
  %v87 = vshrl.u32 %v86, 7
  %v88 = vsub.s32 0, %v87
  %v89 = vrot.slane %v45, %v88
  %v90 = vlaneseq
  %v91 = vshrl.u32 %v90, 7
  %v92 = vsub.s32 1, %v91
  %v93 = vrot.slane %v45, %v92
  %v94 = vlaneseq
  %v95 = vshrl.u32 %v94, 7
  %v96 = vsub.s32 2, %v95
  %v97 = vrot.slane %v45, %v96
  %v98 = vlaneseq
  %v99 = vshrl.u32 %v98, 7
  %v100 = vsub.s32 3, %v99
  %v101 = vrot.slane %v45, %v100
  %v114 = vmul.f32 %v50, %v57
  %v115 = vmul.f32 %v50, %v61
  %v116 = vmul.f32 %v50, %v65
  %v117 = vmul.f32 %v50, %v69
  %v118 = vmul.f32 %v50, %v73
  %v119 = vmul.f32 %v50, %v77
  %v120 = vmul.f32 %v50, %v81
  %v121 = vmul.f32 %v50, %v85
  %v122 = vmul.f32 %v50, %v89
  %v123 = vmul.f32 %v50, %v93
  %v124 = vmul.f32 %v50, %v97
  %v125 = vmul.f32 %v50, %v101
  %126 = vset.pattern.permute.xlu0 1
  %127 = vperm.xlu0 %126, %v46
  %v128 = vpop.permute.xlu0 %127
  %v130 = vmul.f32 %v128, %v57
  %v131 = vmul.f32 %v128, %v61
  %v132 = vmul.f32 %v128, %v65
  %v133 = vmul.f32 %v128, %v69
  %v134 = vmul.f32 %v128, %v73
  %v135 = vmul.f32 %v128, %v77
  %v136 = vmul.f32 %v128, %v81
  %v137 = vmul.f32 %v128, %v85
  %v138 = vmul.f32 %v128, %v89
  %v139 = vmul.f32 %v128, %v93
  %v140 = vmul.f32 %v128, %v97
  %v141 = vmul.f32 %v128, %v101
  %154 = vrot.lane.b32.xlu0 %v130, 127
  %v155 = vpop.permute.xlu0 %154
  %156 = vrot.lane.b32.xlu0 %v131, 127
  %v157 = vpop.permute.xlu0 %156
  %158 = vrot.lane.b32.xlu0 %v132, 127
  %v159 = vpop.permute.xlu0 %158
  %160 = vrot.lane.b32.xlu0 %v133, 127
  %v161 = vpop.permute.xlu0 %160
  %162 = vrot.lane.b32.xlu0 %v134, 127
  %v163 = vpop.permute.xlu0 %162
  %164 = vrot.lane.b32.xlu0 %v135, 127
  %v165 = vpop.permute.xlu0 %164
  %166 = vrot.lane.b32.xlu0 %v136, 127
  %v167 = vpop.permute.xlu0 %166
  %168 = vrot.lane.b32.xlu0 %v137, 127
  %v169 = vpop.permute.xlu0 %168
  %170 = vrot.lane.b32.xlu0 %v138, 127
  %v171 = vpop.permute.xlu0 %170
  %172 = vrot.lane.b32.xlu0 %v139, 127
  %v173 = vpop.permute.xlu0 %172
  %174 = vrot.lane.b32.xlu0 %v140, 127
  %v175 = vpop.permute.xlu0 %174
  %176 = vrot.lane.b32.xlu0 %v141, 127
  %v177 = vpop.permute.xlu0 %176
  %vm178 = vcmask 1039360
  %v179 = vsel %vm178, %v155, %v157
  %v180 = vsel %vm178, %v157, %v159
  %v181 = vsel %vm178, %v159, %v161
  %v182 = vsel %vm178, %v161, %v163
  %v183 = vsel %vm178, %v163, %v165
  %v184 = vsel %vm178, %v165, %v167
  %v185 = vsel %vm178, %v167, %v169
  %v186 = vsel %vm178, %v169, %v171
  %v187 = vsel %vm178, %v171, %v173
  %v188 = vsel %vm178, %v173, %v175
  %v189 = vsel %vm178, %v175, %v177
  %v202 = vadd.f32 %v114, %v179
  %v203 = vadd.f32 %v115, %v180
  %v204 = vadd.f32 %v116, %v181
  %v205 = vadd.f32 %v117, %v182
  %v206 = vadd.f32 %v118, %v183
  %v207 = vadd.f32 %v119, %v184
  %v208 = vadd.f32 %v120, %v185
  %v209 = vadd.f32 %v121, %v186
  %v210 = vadd.f32 %v122, %v187
  %v211 = vadd.f32 %v123, %v188
  %v212 = vadd.f32 %v124, %v189
  %v213 = vadd.f32 %v125, %v177
  %214 = vset.pattern.permute.xlu0 2
  %215 = vperm.xlu0 %214, %v46
  %v216 = vpop.permute.xlu0 %215
  %v218 = vmul.f32 %v216, %v57
  %v219 = vmul.f32 %v216, %v61
  %v220 = vmul.f32 %v216, %v65
  %v221 = vmul.f32 %v216, %v69
  %v222 = vmul.f32 %v216, %v73
  %v223 = vmul.f32 %v216, %v77
  %v224 = vmul.f32 %v216, %v81
  %v225 = vmul.f32 %v216, %v85
  %v226 = vmul.f32 %v216, %v89
  %v227 = vmul.f32 %v216, %v93
  %v228 = vmul.f32 %v216, %v97
  %v229 = vmul.f32 %v216, %v101
  %242 = vrot.lane.b32.xlu0 %v218, 126
  %v243 = vpop.permute.xlu0 %242
  %244 = vrot.lane.b32.xlu0 %v219, 126
  %v245 = vpop.permute.xlu0 %244
  %246 = vrot.lane.b32.xlu0 %v220, 126
  %v247 = vpop.permute.xlu0 %246
  %248 = vrot.lane.b32.xlu0 %v221, 126
  %v249 = vpop.permute.xlu0 %248
  %250 = vrot.lane.b32.xlu0 %v222, 126
  %v251 = vpop.permute.xlu0 %250
  %252 = vrot.lane.b32.xlu0 %v223, 126
  %v253 = vpop.permute.xlu0 %252
  %254 = vrot.lane.b32.xlu0 %v224, 126
  %v255 = vpop.permute.xlu0 %254
  %256 = vrot.lane.b32.xlu0 %v225, 126
  %v257 = vpop.permute.xlu0 %256
  %258 = vrot.lane.b32.xlu0 %v226, 126
  %v259 = vpop.permute.xlu0 %258
  %260 = vrot.lane.b32.xlu0 %v227, 126
  %v261 = vpop.permute.xlu0 %260
  %262 = vrot.lane.b32.xlu0 %v228, 126
  %v263 = vpop.permute.xlu0 %262
  %264 = vrot.lane.b32.xlu0 %v229, 126
  %v265 = vpop.permute.xlu0 %264
  %vm266 = vcmask 1031168
  %v267 = vsel %vm266, %v243, %v245
  %v268 = vsel %vm266, %v245, %v247
  %v269 = vsel %vm266, %v247, %v249
  %v270 = vsel %vm266, %v249, %v251
  %v271 = vsel %vm266, %v251, %v253
  %v272 = vsel %vm266, %v253, %v255
  %v273 = vsel %vm266, %v255, %v257
  %v274 = vsel %vm266, %v257, %v259
  %v275 = vsel %vm266, %v259, %v261
  %v276 = vsel %vm266, %v261, %v263
  %v277 = vsel %vm266, %v263, %v265
  %v290 = vadd.f32 %v202, %v267
  %v291 = vadd.f32 %v203, %v268
  %v292 = vadd.f32 %v204, %v269
  %v293 = vadd.f32 %v205, %v270
  %v294 = vadd.f32 %v206, %v271
  %v295 = vadd.f32 %v207, %v272
  %v296 = vadd.f32 %v208, %v273
  %v297 = vadd.f32 %v209, %v274
  %v298 = vadd.f32 %v210, %v275
  %v299 = vadd.f32 %v211, %v276
  %v300 = vadd.f32 %v212, %v277
  %v301 = vadd.f32 %v213, %v265
  %302 = vset.pattern.permute.xlu0 3
  %303 = vperm.xlu0 %302, %v46
  %v304 = vpop.permute.xlu0 %303
  %v306 = vmul.f32 %v304, %v57
  %v307 = vmul.f32 %v304, %v61
  %v308 = vmul.f32 %v304, %v65
  %v309 = vmul.f32 %v304, %v69
  %v310 = vmul.f32 %v304, %v73
  %v311 = vmul.f32 %v304, %v77
  %v312 = vmul.f32 %v304, %v81
  %v313 = vmul.f32 %v304, %v85
  %v314 = vmul.f32 %v304, %v89
  %v315 = vmul.f32 %v304, %v93
  %v316 = vmul.f32 %v304, %v97
  %v317 = vmul.f32 %v304, %v101
  %330 = vrot.lane.b32.xlu0 %v306, 125
  %v331 = vpop.permute.xlu0 %330
  %332 = vrot.lane.b32.xlu0 %v307, 125
  %v333 = vpop.permute.xlu0 %332
  %334 = vrot.lane.b32.xlu0 %v308, 125
  %v335 = vpop.permute.xlu0 %334
  %336 = vrot.lane.b32.xlu0 %v309, 125
  %v337 = vpop.permute.xlu0 %336
  %338 = vrot.lane.b32.xlu0 %v310, 125
  %v339 = vpop.permute.xlu0 %338
  %340 = vrot.lane.b32.xlu0 %v311, 125
  %v341 = vpop.permute.xlu0 %340
  %342 = vrot.lane.b32.xlu0 %v312, 125
  %v343 = vpop.permute.xlu0 %342
  %344 = vrot.lane.b32.xlu0 %v313, 125
  %v345 = vpop.permute.xlu0 %344
  %346 = vrot.lane.b32.xlu0 %v314, 125
  %v347 = vpop.permute.xlu0 %346
  %348 = vrot.lane.b32.xlu0 %v315, 125
  %v349 = vpop.permute.xlu0 %348
  %350 = vrot.lane.b32.xlu0 %v316, 125
  %v351 = vpop.permute.xlu0 %350
  %352 = vrot.lane.b32.xlu0 %v317, 125
  %v353 = vpop.permute.xlu0 %352
  %vm354 = vcmask 1022976
  %v355 = vsel %vm354, %v331, %v333
  %v356 = vsel %vm354, %v333, %v335
  %v357 = vsel %vm354, %v335, %v337
  %v358 = vsel %vm354, %v337, %v339
  %v359 = vsel %vm354, %v339, %v341
  %v360 = vsel %vm354, %v341, %v343
  %v361 = vsel %vm354, %v343, %v345
  %v362 = vsel %vm354, %v345, %v347
  %v363 = vsel %vm354, %v347, %v349
  %v364 = vsel %vm354, %v349, %v351
  %v365 = vsel %vm354, %v351, %v353
  %v378 = vadd.f32 %v290, %v355
  %v379 = vadd.f32 %v291, %v356
  %v380 = vadd.f32 %v292, %v357
  %v381 = vadd.f32 %v293, %v358
  %v382 = vadd.f32 %v294, %v359
  %v383 = vadd.f32 %v295, %v360
  %v384 = vadd.f32 %v296, %v361
  %v385 = vadd.f32 %v297, %v362
  %v386 = vadd.f32 %v298, %v363
  %v387 = vadd.f32 %v299, %v364
  %v388 = vadd.f32 %v300, %v365
  %v389 = vadd.f32 %v301, %v353
  %390 = vset.pattern.permute.xlu0 4
  %391 = vperm.xlu0 %390, %v46
  %v392 = vpop.permute.xlu0 %391
  %v394 = vmul.f32 %v392, %v57
  %v395 = vmul.f32 %v392, %v61
  %v396 = vmul.f32 %v392, %v65
  %v397 = vmul.f32 %v392, %v69
  %v398 = vmul.f32 %v392, %v73
  %v399 = vmul.f32 %v392, %v77
  %v400 = vmul.f32 %v392, %v81
  %v401 = vmul.f32 %v392, %v85
  %v402 = vmul.f32 %v392, %v89
  %v403 = vmul.f32 %v392, %v93
  %v404 = vmul.f32 %v392, %v97
  %v405 = vmul.f32 %v392, %v101
  %418 = vrot.lane.b32.xlu0 %v394, 124
  %v419 = vpop.permute.xlu0 %418
  %420 = vrot.lane.b32.xlu0 %v395, 124
  %v421 = vpop.permute.xlu0 %420
  %422 = vrot.lane.b32.xlu0 %v396, 124
  %v423 = vpop.permute.xlu0 %422
  %424 = vrot.lane.b32.xlu0 %v397, 124
  %v425 = vpop.permute.xlu0 %424
  %426 = vrot.lane.b32.xlu0 %v398, 124
  %v427 = vpop.permute.xlu0 %426
  %428 = vrot.lane.b32.xlu0 %v399, 124
  %v429 = vpop.permute.xlu0 %428
  %430 = vrot.lane.b32.xlu0 %v400, 124
  %v431 = vpop.permute.xlu0 %430
  %432 = vrot.lane.b32.xlu0 %v401, 124
  %v433 = vpop.permute.xlu0 %432
  %434 = vrot.lane.b32.xlu0 %v402, 124
  %v435 = vpop.permute.xlu0 %434
  %436 = vrot.lane.b32.xlu0 %v403, 124
  %v437 = vpop.permute.xlu0 %436
  %438 = vrot.lane.b32.xlu0 %v404, 124
  %v439 = vpop.permute.xlu0 %438
  %440 = vrot.lane.b32.xlu0 %v405, 124
  %v441 = vpop.permute.xlu0 %440
  %vm442 = vcmask 1014784
  %v443 = vsel %vm442, %v419, %v421
  %v444 = vsel %vm442, %v421, %v423
  %v445 = vsel %vm442, %v423, %v425
  %v446 = vsel %vm442, %v425, %v427
  %v447 = vsel %vm442, %v427, %v429
  %v448 = vsel %vm442, %v429, %v431
  %v449 = vsel %vm442, %v431, %v433
  %v450 = vsel %vm442, %v433, %v435
  %v451 = vsel %vm442, %v435, %v437
  %v452 = vsel %vm442, %v437, %v439
  %v453 = vsel %vm442, %v439, %v441
  %v466 = vadd.f32 %v378, %v443
  %v467 = vadd.f32 %v379, %v444
  %v468 = vadd.f32 %v380, %v445
  %v469 = vadd.f32 %v381, %v446
  %v470 = vadd.f32 %v382, %v447
  %v471 = vadd.f32 %v383, %v448
  %v472 = vadd.f32 %v384, %v449
  %v473 = vadd.f32 %v385, %v450
  %v474 = vadd.f32 %v386, %v451
  %v475 = vadd.f32 %v387, %v452
  %v476 = vadd.f32 %v388, %v453
  %v477 = vadd.f32 %v389, %v441
  %478 = vset.pattern.permute.xlu0 5
  %479 = vperm.xlu0 %478, %v46
  %v480 = vpop.permute.xlu0 %479
  %v482 = vmul.f32 %v480, %v57
  %v483 = vmul.f32 %v480, %v61
  %v484 = vmul.f32 %v480, %v65
  %v485 = vmul.f32 %v480, %v69
  %v486 = vmul.f32 %v480, %v73
  %v487 = vmul.f32 %v480, %v77
  %v488 = vmul.f32 %v480, %v81
  %v489 = vmul.f32 %v480, %v85
  %v490 = vmul.f32 %v480, %v89
  %v491 = vmul.f32 %v480, %v93
  %v492 = vmul.f32 %v480, %v97
  %v493 = vmul.f32 %v480, %v101
  %506 = vrot.lane.b32.xlu0 %v482, 100
  %v507 = vpop.permute.xlu0 %506
  %508 = vrot.lane.b32.xlu0 %v483, 100
  %v509 = vpop.permute.xlu0 %508
  %510 = vrot.lane.b32.xlu0 %v484, 100
  %v511 = vpop.permute.xlu0 %510
  %512 = vrot.lane.b32.xlu0 %v485, 100
  %v513 = vpop.permute.xlu0 %512
  %514 = vrot.lane.b32.xlu0 %v486, 100
  %v515 = vpop.permute.xlu0 %514
  %516 = vrot.lane.b32.xlu0 %v487, 100
  %v517 = vpop.permute.xlu0 %516
  %518 = vrot.lane.b32.xlu0 %v488, 100
  %v519 = vpop.permute.xlu0 %518
  %520 = vrot.lane.b32.xlu0 %v489, 100
  %v521 = vpop.permute.xlu0 %520
  %522 = vrot.lane.b32.xlu0 %v490, 100
  %v523 = vpop.permute.xlu0 %522
  %524 = vrot.lane.b32.xlu0 %v491, 100
  %v525 = vpop.permute.xlu0 %524
  %526 = vrot.lane.b32.xlu0 %v492, 100
  %v527 = vpop.permute.xlu0 %526
  %528 = vrot.lane.b32.xlu0 %v493, 100
  %v529 = vpop.permute.xlu0 %528
  %vm530 = vcmask 818176
  %v531 = vsel %vm530, %v507, %v509
  %v532 = vsel %vm530, %v509, %v511
  %v533 = vsel %vm530, %v511, %v513
  %v534 = vsel %vm530, %v513, %v515
  %v535 = vsel %vm530, %v515, %v517
  %v536 = vsel %vm530, %v517, %v519
  %v537 = vsel %vm530, %v519, %v521
  %v538 = vsel %vm530, %v521, %v523
  %v539 = vsel %vm530, %v523, %v525
  %v540 = vsel %vm530, %v525, %v527
  %v541 = vsel %vm530, %v527, %v529
  %v554 = vadd.f32 %v466, %v531
  %v555 = vadd.f32 %v467, %v532
  %v556 = vadd.f32 %v468, %v533
  %v557 = vadd.f32 %v469, %v534
  %v558 = vadd.f32 %v470, %v535
  %v559 = vadd.f32 %v471, %v536
  %v560 = vadd.f32 %v472, %v537
  %v561 = vadd.f32 %v473, %v538
  %v562 = vadd.f32 %v474, %v539
  %v563 = vadd.f32 %v475, %v540
  %v564 = vadd.f32 %v476, %v541
  %v565 = vadd.f32 %v477, %v529
  %566 = vset.pattern.permute.xlu0 6
  %567 = vperm.xlu0 %566, %v46
  %v568 = vpop.permute.xlu0 %567
  %v570 = vmul.f32 %v568, %v57
  %v571 = vmul.f32 %v568, %v61
  %v572 = vmul.f32 %v568, %v65
  %v573 = vmul.f32 %v568, %v69
  %v574 = vmul.f32 %v568, %v73
  %v575 = vmul.f32 %v568, %v77
  %v576 = vmul.f32 %v568, %v81
  %v577 = vmul.f32 %v568, %v85
  %v578 = vmul.f32 %v568, %v89
  %v579 = vmul.f32 %v568, %v93
  %v580 = vmul.f32 %v568, %v97
  %v581 = vmul.f32 %v568, %v101
  %594 = vrot.lane.b32.xlu0 %v570, 99
  %v595 = vpop.permute.xlu0 %594
  %596 = vrot.lane.b32.xlu0 %v571, 99
  %v597 = vpop.permute.xlu0 %596
  %598 = vrot.lane.b32.xlu0 %v572, 99
  %v599 = vpop.permute.xlu0 %598
  %600 = vrot.lane.b32.xlu0 %v573, 99
  %v601 = vpop.permute.xlu0 %600
  %602 = vrot.lane.b32.xlu0 %v574, 99
  %v603 = vpop.permute.xlu0 %602
  %604 = vrot.lane.b32.xlu0 %v575, 99
  %v605 = vpop.permute.xlu0 %604
  %606 = vrot.lane.b32.xlu0 %v576, 99
  %v607 = vpop.permute.xlu0 %606
  %608 = vrot.lane.b32.xlu0 %v577, 99
  %v609 = vpop.permute.xlu0 %608
  %610 = vrot.lane.b32.xlu0 %v578, 99
  %v611 = vpop.permute.xlu0 %610
  %612 = vrot.lane.b32.xlu0 %v579, 99
  %v613 = vpop.permute.xlu0 %612
  %614 = vrot.lane.b32.xlu0 %v580, 99
  %v615 = vpop.permute.xlu0 %614
  %616 = vrot.lane.b32.xlu0 %v581, 99
  %v617 = vpop.permute.xlu0 %616
  %vm618 = vcmask 809984
  %v619 = vsel %vm618, %v595, %v597
  %v620 = vsel %vm618, %v597, %v599
  %v621 = vsel %vm618, %v599, %v601
  %v622 = vsel %vm618, %v601, %v603
  %v623 = vsel %vm618, %v603, %v605
  %v624 = vsel %vm618, %v605, %v607
  %v625 = vsel %vm618, %v607, %v609
  %v626 = vsel %vm618, %v609, %v611
  %v627 = vsel %vm618, %v611, %v613
  %v628 = vsel %vm618, %v613, %v615
  %v629 = vsel %vm618, %v615, %v617
  %v642 = vadd.f32 %v554, %v619
  %v643 = vadd.f32 %v555, %v620
  %v644 = vadd.f32 %v556, %v621
  %v645 = vadd.f32 %v557, %v622
  %v646 = vadd.f32 %v558, %v623
  %v647 = vadd.f32 %v559, %v624
  %v648 = vadd.f32 %v560, %v625
  %v649 = vadd.f32 %v561, %v626
  %v650 = vadd.f32 %v562, %v627
  %v651 = vadd.f32 %v563, %v628
  %v652 = vadd.f32 %v564, %v629
  %v653 = vadd.f32 %v565, %v617
  %654 = vset.pattern.permute.xlu0 7
  %655 = vperm.xlu0 %654, %v46
  %v656 = vpop.permute.xlu0 %655
  %v658 = vmul.f32 %v656, %v57
  %v659 = vmul.f32 %v656, %v61
  %v660 = vmul.f32 %v656, %v65
  %v661 = vmul.f32 %v656, %v69
  %v662 = vmul.f32 %v656, %v73
  %v663 = vmul.f32 %v656, %v77
  %v664 = vmul.f32 %v656, %v81
  %v665 = vmul.f32 %v656, %v85
  %v666 = vmul.f32 %v656, %v89
  %v667 = vmul.f32 %v656, %v93
  %v668 = vmul.f32 %v656, %v97
  %v669 = vmul.f32 %v656, %v101
  %682 = vrot.lane.b32.xlu0 %v658, 98
  %v683 = vpop.permute.xlu0 %682
  %684 = vrot.lane.b32.xlu0 %v659, 98
  %v685 = vpop.permute.xlu0 %684
  %686 = vrot.lane.b32.xlu0 %v660, 98
  %v687 = vpop.permute.xlu0 %686
  %688 = vrot.lane.b32.xlu0 %v661, 98
  %v689 = vpop.permute.xlu0 %688
  %690 = vrot.lane.b32.xlu0 %v662, 98
  %v691 = vpop.permute.xlu0 %690
  %692 = vrot.lane.b32.xlu0 %v663, 98
  %v693 = vpop.permute.xlu0 %692
  %694 = vrot.lane.b32.xlu0 %v664, 98
  %v695 = vpop.permute.xlu0 %694
  %696 = vrot.lane.b32.xlu0 %v665, 98
  %v697 = vpop.permute.xlu0 %696
  %698 = vrot.lane.b32.xlu0 %v666, 98
  %v699 = vpop.permute.xlu0 %698
  %700 = vrot.lane.b32.xlu0 %v667, 98
  %v701 = vpop.permute.xlu0 %700
  %702 = vrot.lane.b32.xlu0 %v668, 98
  %v703 = vpop.permute.xlu0 %702
  %704 = vrot.lane.b32.xlu0 %v669, 98
  %v705 = vpop.permute.xlu0 %704
  %vm706 = vcmask 801792
  %v707 = vsel %vm706, %v683, %v685
  %v708 = vsel %vm706, %v685, %v687
  %v709 = vsel %vm706, %v687, %v689
  %v710 = vsel %vm706, %v689, %v691
  %v711 = vsel %vm706, %v691, %v693
  %v712 = vsel %vm706, %v693, %v695
  %v713 = vsel %vm706, %v695, %v697
  %v714 = vsel %vm706, %v697, %v699
  %v715 = vsel %vm706, %v699, %v701
  %v716 = vsel %vm706, %v701, %v703
  %v717 = vsel %vm706, %v703, %v705
  %v730 = vadd.f32 %v642, %v707
  %v731 = vadd.f32 %v643, %v708
  %v732 = vadd.f32 %v644, %v709
  %v733 = vadd.f32 %v645, %v710
  %v734 = vadd.f32 %v646, %v711
  %v735 = vadd.f32 %v647, %v712
  %v736 = vadd.f32 %v648, %v713
  %v737 = vadd.f32 %v649, %v714
  %v738 = vadd.f32 %v650, %v715
  %v739 = vadd.f32 %v651, %v716
  %v740 = vadd.f32 %v652, %v717
  %v741 = vadd.f32 %v653, %v705
  %742 = vset.pattern.permute.xlu0 8
  %743 = vperm.xlu0 %742, %v46
  %v744 = vpop.permute.xlu0 %743
  %v746 = vmul.f32 %v744, %v57
  %v747 = vmul.f32 %v744, %v61
  %v748 = vmul.f32 %v744, %v65
  %v749 = vmul.f32 %v744, %v69
  %v750 = vmul.f32 %v744, %v73
  %v751 = vmul.f32 %v744, %v77
  %v752 = vmul.f32 %v744, %v81
  %v753 = vmul.f32 %v744, %v85
  %v754 = vmul.f32 %v744, %v89
  %v755 = vmul.f32 %v744, %v93
  %v756 = vmul.f32 %v744, %v97
  %v757 = vmul.f32 %v744, %v101
  %770 = vrot.lane.b32.xlu0 %v746, 97
  %v771 = vpop.permute.xlu0 %770
  %772 = vrot.lane.b32.xlu0 %v747, 97
  %v773 = vpop.permute.xlu0 %772
  %774 = vrot.lane.b32.xlu0 %v748, 97
  %v775 = vpop.permute.xlu0 %774
  %776 = vrot.lane.b32.xlu0 %v749, 97
  %v777 = vpop.permute.xlu0 %776
  %778 = vrot.lane.b32.xlu0 %v750, 97
  %v779 = vpop.permute.xlu0 %778
  %780 = vrot.lane.b32.xlu0 %v751, 97
  %v781 = vpop.permute.xlu0 %780
  %782 = vrot.lane.b32.xlu0 %v752, 97
  %v783 = vpop.permute.xlu0 %782
  %784 = vrot.lane.b32.xlu0 %v753, 97
  %v785 = vpop.permute.xlu0 %784
  %786 = vrot.lane.b32.xlu0 %v754, 97
  %v787 = vpop.permute.xlu0 %786
  %788 = vrot.lane.b32.xlu0 %v755, 97
  %v789 = vpop.permute.xlu0 %788
  %790 = vrot.lane.b32.xlu0 %v756, 97
  %v791 = vpop.permute.xlu0 %790
  %792 = vrot.lane.b32.xlu0 %v757, 97
  %v793 = vpop.permute.xlu0 %792
  %vm794 = vcmask 793600
  %v795 = vsel %vm794, %v771, %v773
  %v796 = vsel %vm794, %v773, %v775
  %v797 = vsel %vm794, %v775, %v777
  %v798 = vsel %vm794, %v777, %v779
  %v799 = vsel %vm794, %v779, %v781
  %v800 = vsel %vm794, %v781, %v783
  %v801 = vsel %vm794, %v783, %v785
  %v802 = vsel %vm794, %v785, %v787
  %v803 = vsel %vm794, %v787, %v789
  %v804 = vsel %vm794, %v789, %v791
  %v805 = vsel %vm794, %v791, %v793
  %v818 = vadd.f32 %v730, %v795
  %v819 = vadd.f32 %v731, %v796
  %v820 = vadd.f32 %v732, %v797
  %v821 = vadd.f32 %v733, %v798
  %v822 = vadd.f32 %v734, %v799
  %v823 = vadd.f32 %v735, %v800
  %v824 = vadd.f32 %v736, %v801
  %v825 = vadd.f32 %v737, %v802
  %v826 = vadd.f32 %v738, %v803
  %v827 = vadd.f32 %v739, %v804
  %v828 = vadd.f32 %v740, %v805
  %v829 = vadd.f32 %v741, %v793
  %830 = vset.pattern.permute.xlu0 9
  %831 = vperm.xlu0 %830, %v46
  %v832 = vpop.permute.xlu0 %831
  %v834 = vmul.f32 %v832, %v57
  %v835 = vmul.f32 %v832, %v61
  %v836 = vmul.f32 %v832, %v65
  %v837 = vmul.f32 %v832, %v69
  %v838 = vmul.f32 %v832, %v73
  %v839 = vmul.f32 %v832, %v77
  %v840 = vmul.f32 %v832, %v81
  %v841 = vmul.f32 %v832, %v85
  %v842 = vmul.f32 %v832, %v89
  %v843 = vmul.f32 %v832, %v93
  %v844 = vmul.f32 %v832, %v97
  %v845 = vmul.f32 %v832, %v101
  %858 = vrot.lane.b32.xlu0 %v834, 96
  %v859 = vpop.permute.xlu0 %858
  %860 = vrot.lane.b32.xlu0 %v835, 96
  %v861 = vpop.permute.xlu0 %860
  %862 = vrot.lane.b32.xlu0 %v836, 96
  %v863 = vpop.permute.xlu0 %862
  %864 = vrot.lane.b32.xlu0 %v837, 96
  %v865 = vpop.permute.xlu0 %864
  %866 = vrot.lane.b32.xlu0 %v838, 96
  %v867 = vpop.permute.xlu0 %866
  %868 = vrot.lane.b32.xlu0 %v839, 96
  %v869 = vpop.permute.xlu0 %868
  %870 = vrot.lane.b32.xlu0 %v840, 96
  %v871 = vpop.permute.xlu0 %870
  %872 = vrot.lane.b32.xlu0 %v841, 96
  %v873 = vpop.permute.xlu0 %872
  %874 = vrot.lane.b32.xlu0 %v842, 96
  %v875 = vpop.permute.xlu0 %874
  %876 = vrot.lane.b32.xlu0 %v843, 96
  %v877 = vpop.permute.xlu0 %876
  %878 = vrot.lane.b32.xlu0 %v844, 96
  %v879 = vpop.permute.xlu0 %878
  %880 = vrot.lane.b32.xlu0 %v845, 96
  %v881 = vpop.permute.xlu0 %880
  %vm882 = vcmask 785408
  %v883 = vsel %vm882, %v859, %v861
  %v884 = vsel %vm882, %v861, %v863
  %v885 = vsel %vm882, %v863, %v865
  %v886 = vsel %vm882, %v865, %v867
  %v887 = vsel %vm882, %v867, %v869
  %v888 = vsel %vm882, %v869, %v871
  %v889 = vsel %vm882, %v871, %v873
  %v890 = vsel %vm882, %v873, %v875
  %v891 = vsel %vm882, %v875, %v877
  %v892 = vsel %vm882, %v877, %v879
  %v893 = vsel %vm882, %v879, %v881
  %v906 = vadd.f32 %v818, %v883
  %v907 = vadd.f32 %v819, %v884
  %v908 = vadd.f32 %v820, %v885
  %v909 = vadd.f32 %v821, %v886
  %v910 = vadd.f32 %v822, %v887
  %v911 = vadd.f32 %v823, %v888
  %v912 = vadd.f32 %v824, %v889
  %v913 = vadd.f32 %v825, %v890
  %v914 = vadd.f32 %v826, %v891
  %v915 = vadd.f32 %v827, %v892
  %v916 = vadd.f32 %v828, %v893
  %v917 = vadd.f32 %v829, %v881
  %918 = vset.pattern.permute.xlu0 10
  %919 = vperm.xlu0 %918, %v46
  %v920 = vpop.permute.xlu0 %919
  %v922 = vmul.f32 %v920, %v57
  %v923 = vmul.f32 %v920, %v61
  %v924 = vmul.f32 %v920, %v65
  %v925 = vmul.f32 %v920, %v69
  %v926 = vmul.f32 %v920, %v73
  %v927 = vmul.f32 %v920, %v77
  %v928 = vmul.f32 %v920, %v81
  %v929 = vmul.f32 %v920, %v85
  %v930 = vmul.f32 %v920, %v89
  %v931 = vmul.f32 %v920, %v93
  %v932 = vmul.f32 %v920, %v97
  %v933 = vmul.f32 %v920, %v101
  %946 = vrot.lane.b32.xlu0 %v922, 72
  %v947 = vpop.permute.xlu0 %946
  %948 = vrot.lane.b32.xlu0 %v923, 72
  %v949 = vpop.permute.xlu0 %948
  %950 = vrot.lane.b32.xlu0 %v924, 72
  %v951 = vpop.permute.xlu0 %950
  %952 = vrot.lane.b32.xlu0 %v925, 72
  %v953 = vpop.permute.xlu0 %952
  %954 = vrot.lane.b32.xlu0 %v926, 72
  %v955 = vpop.permute.xlu0 %954
  %956 = vrot.lane.b32.xlu0 %v927, 72
  %v957 = vpop.permute.xlu0 %956
  %958 = vrot.lane.b32.xlu0 %v928, 72
  %v959 = vpop.permute.xlu0 %958
  %960 = vrot.lane.b32.xlu0 %v929, 72
  %v961 = vpop.permute.xlu0 %960
  %962 = vrot.lane.b32.xlu0 %v930, 72
  %v963 = vpop.permute.xlu0 %962
  %964 = vrot.lane.b32.xlu0 %v931, 72
  %v965 = vpop.permute.xlu0 %964
  %966 = vrot.lane.b32.xlu0 %v932, 72
  %v967 = vpop.permute.xlu0 %966
  %968 = vrot.lane.b32.xlu0 %v933, 72
  %v969 = vpop.permute.xlu0 %968
  %vm970 = vcmask 588800
  %v971 = vsel %vm970, %v947, %v949
  %v972 = vsel %vm970, %v949, %v951
  %v973 = vsel %vm970, %v951, %v953
  %v974 = vsel %vm970, %v953, %v955
  %v975 = vsel %vm970, %v955, %v957
  %v976 = vsel %vm970, %v957, %v959
  %v977 = vsel %vm970, %v959, %v961
  %v978 = vsel %vm970, %v961, %v963
  %v979 = vsel %vm970, %v963, %v965
  %v980 = vsel %vm970, %v965, %v967
  %v981 = vsel %vm970, %v967, %v969
  %v994 = vadd.f32 %v906, %v971
  %v995 = vadd.f32 %v907, %v972
  %v996 = vadd.f32 %v908, %v973
  %v997 = vadd.f32 %v909, %v974
  %v998 = vadd.f32 %v910, %v975
  %v999 = vadd.f32 %v911, %v976
  %v1000 = vadd.f32 %v912, %v977
  %v1001 = vadd.f32 %v913, %v978
  %v1002 = vadd.f32 %v914, %v979
  %v1003 = vadd.f32 %v915, %v980
  %v1004 = vadd.f32 %v916, %v981
  %v1005 = vadd.f32 %v917, %v969
  %1006 = vset.pattern.permute.xlu0 11
  %1007 = vperm.xlu0 %1006, %v46
  %v1008 = vpop.permute.xlu0 %1007
  %v1010 = vmul.f32 %v1008, %v57
  %v1011 = vmul.f32 %v1008, %v61
  %v1012 = vmul.f32 %v1008, %v65
  %v1013 = vmul.f32 %v1008, %v69
  %v1014 = vmul.f32 %v1008, %v73
  %v1015 = vmul.f32 %v1008, %v77
  %v1016 = vmul.f32 %v1008, %v81
  %v1017 = vmul.f32 %v1008, %v85
  %v1018 = vmul.f32 %v1008, %v89
  %v1019 = vmul.f32 %v1008, %v93
  %v1020 = vmul.f32 %v1008, %v97
  %v1021 = vmul.f32 %v1008, %v101
  %1034 = vrot.lane.b32.xlu0 %v1010, 71
  %v1035 = vpop.permute.xlu0 %1034
  %1036 = vrot.lane.b32.xlu0 %v1011, 71
  %v1037 = vpop.permute.xlu0 %1036
  %1038 = vrot.lane.b32.xlu0 %v1012, 71
  %v1039 = vpop.permute.xlu0 %1038
  %1040 = vrot.lane.b32.xlu0 %v1013, 71
  %v1041 = vpop.permute.xlu0 %1040
  %1042 = vrot.lane.b32.xlu0 %v1014, 71
  %v1043 = vpop.permute.xlu0 %1042
  %1044 = vrot.lane.b32.xlu0 %v1015, 71
  %v1045 = vpop.permute.xlu0 %1044
  %1046 = vrot.lane.b32.xlu0 %v1016, 71
  %v1047 = vpop.permute.xlu0 %1046
  %1048 = vrot.lane.b32.xlu0 %v1017, 71
  %v1049 = vpop.permute.xlu0 %1048
  %1050 = vrot.lane.b32.xlu0 %v1018, 71
  %v1051 = vpop.permute.xlu0 %1050
  %1052 = vrot.lane.b32.xlu0 %v1019, 71
  %v1053 = vpop.permute.xlu0 %1052
  %1054 = vrot.lane.b32.xlu0 %v1020, 71
  %v1055 = vpop.permute.xlu0 %1054
  %1056 = vrot.lane.b32.xlu0 %v1021, 71
  %v1057 = vpop.permute.xlu0 %1056
  %vm1058 = vcmask 580608
  %v1059 = vsel %vm1058, %v1035, %v1037
  %v1060 = vsel %vm1058, %v1037, %v1039
  %v1061 = vsel %vm1058, %v1039, %v1041
  %v1062 = vsel %vm1058, %v1041, %v1043
  %v1063 = vsel %vm1058, %v1043, %v1045
  %v1064 = vsel %vm1058, %v1045, %v1047
  %v1065 = vsel %vm1058, %v1047, %v1049
  %v1066 = vsel %vm1058, %v1049, %v1051
  %v1067 = vsel %vm1058, %v1051, %v1053
  %v1068 = vsel %vm1058, %v1053, %v1055
  %v1069 = vsel %vm1058, %v1055, %v1057
  %v1082 = vadd.f32 %v994, %v1059
  %v1083 = vadd.f32 %v995, %v1060
  %v1084 = vadd.f32 %v996, %v1061
  %v1085 = vadd.f32 %v997, %v1062
  %v1086 = vadd.f32 %v998, %v1063
  %v1087 = vadd.f32 %v999, %v1064
  %v1088 = vadd.f32 %v1000, %v1065
  %v1089 = vadd.f32 %v1001, %v1066
  %v1090 = vadd.f32 %v1002, %v1067
  %v1091 = vadd.f32 %v1003, %v1068
  %v1092 = vadd.f32 %v1004, %v1069
  %v1093 = vadd.f32 %v1005, %v1057
  %1094 = vset.pattern.permute.xlu0 12
  %1095 = vperm.xlu0 %1094, %v46
  %v1096 = vpop.permute.xlu0 %1095
  %v1098 = vmul.f32 %v1096, %v57
  %v1099 = vmul.f32 %v1096, %v61
  %v1100 = vmul.f32 %v1096, %v65
  %v1101 = vmul.f32 %v1096, %v69
  %v1102 = vmul.f32 %v1096, %v73
  %v1103 = vmul.f32 %v1096, %v77
  %v1104 = vmul.f32 %v1096, %v81
  %v1105 = vmul.f32 %v1096, %v85
  %v1106 = vmul.f32 %v1096, %v89
  %v1107 = vmul.f32 %v1096, %v93
  %v1108 = vmul.f32 %v1096, %v97
  %v1109 = vmul.f32 %v1096, %v101
  %1122 = vrot.lane.b32.xlu0 %v1098, 70
  %v1123 = vpop.permute.xlu0 %1122
  %1124 = vrot.lane.b32.xlu0 %v1099, 70
  %v1125 = vpop.permute.xlu0 %1124
  %1126 = vrot.lane.b32.xlu0 %v1100, 70
  %v1127 = vpop.permute.xlu0 %1126
  %1128 = vrot.lane.b32.xlu0 %v1101, 70
  %v1129 = vpop.permute.xlu0 %1128
  %1130 = vrot.lane.b32.xlu0 %v1102, 70
  %v1131 = vpop.permute.xlu0 %1130
  %1132 = vrot.lane.b32.xlu0 %v1103, 70
  %v1133 = vpop.permute.xlu0 %1132
  %1134 = vrot.lane.b32.xlu0 %v1104, 70
  %v1135 = vpop.permute.xlu0 %1134
  %1136 = vrot.lane.b32.xlu0 %v1105, 70
  %v1137 = vpop.permute.xlu0 %1136
  %1138 = vrot.lane.b32.xlu0 %v1106, 70
  %v1139 = vpop.permute.xlu0 %1138
  %1140 = vrot.lane.b32.xlu0 %v1107, 70
  %v1141 = vpop.permute.xlu0 %1140
  %1142 = vrot.lane.b32.xlu0 %v1108, 70
  %v1143 = vpop.permute.xlu0 %1142
  %1144 = vrot.lane.b32.xlu0 %v1109, 70
  %v1145 = vpop.permute.xlu0 %1144
  %vm1146 = vcmask 572416
  %v1147 = vsel %vm1146, %v1123, %v1125
  %v1148 = vsel %vm1146, %v1125, %v1127
  %v1149 = vsel %vm1146, %v1127, %v1129
  %v1150 = vsel %vm1146, %v1129, %v1131
  %v1151 = vsel %vm1146, %v1131, %v1133
  %v1152 = vsel %vm1146, %v1133, %v1135
  %v1153 = vsel %vm1146, %v1135, %v1137
  %v1154 = vsel %vm1146, %v1137, %v1139
  %v1155 = vsel %vm1146, %v1139, %v1141
  %v1156 = vsel %vm1146, %v1141, %v1143
  %v1157 = vsel %vm1146, %v1143, %v1145
  %v1170 = vadd.f32 %v1082, %v1147
  %v1171 = vadd.f32 %v1083, %v1148
  %v1172 = vadd.f32 %v1084, %v1149
  %v1173 = vadd.f32 %v1085, %v1150
  %v1174 = vadd.f32 %v1086, %v1151
  %v1175 = vadd.f32 %v1087, %v1152
  %v1176 = vadd.f32 %v1088, %v1153
  %v1177 = vadd.f32 %v1089, %v1154
  %v1178 = vadd.f32 %v1090, %v1155
  %v1179 = vadd.f32 %v1091, %v1156
  %v1180 = vadd.f32 %v1092, %v1157
  %v1181 = vadd.f32 %v1093, %v1145
  %1182 = vset.pattern.permute.xlu0 13
  %1183 = vperm.xlu0 %1182, %v46
  %v1184 = vpop.permute.xlu0 %1183
  %v1186 = vmul.f32 %v1184, %v57
  %v1187 = vmul.f32 %v1184, %v61
  %v1188 = vmul.f32 %v1184, %v65
  %v1189 = vmul.f32 %v1184, %v69
  %v1190 = vmul.f32 %v1184, %v73
  %v1191 = vmul.f32 %v1184, %v77
  %v1192 = vmul.f32 %v1184, %v81
  %v1193 = vmul.f32 %v1184, %v85
  %v1194 = vmul.f32 %v1184, %v89
  %v1195 = vmul.f32 %v1184, %v93
  %v1196 = vmul.f32 %v1184, %v97
  %v1197 = vmul.f32 %v1184, %v101
  %1210 = vrot.lane.b32.xlu0 %v1186, 69
  %v1211 = vpop.permute.xlu0 %1210
  %1212 = vrot.lane.b32.xlu0 %v1187, 69
  %v1213 = vpop.permute.xlu0 %1212
  %1214 = vrot.lane.b32.xlu0 %v1188, 69
  %v1215 = vpop.permute.xlu0 %1214
  %1216 = vrot.lane.b32.xlu0 %v1189, 69
  %v1217 = vpop.permute.xlu0 %1216
  %1218 = vrot.lane.b32.xlu0 %v1190, 69
  %v1219 = vpop.permute.xlu0 %1218
  %1220 = vrot.lane.b32.xlu0 %v1191, 69
  %v1221 = vpop.permute.xlu0 %1220
  %1222 = vrot.lane.b32.xlu0 %v1192, 69
  %v1223 = vpop.permute.xlu0 %1222
  %1224 = vrot.lane.b32.xlu0 %v1193, 69
  %v1225 = vpop.permute.xlu0 %1224
  %1226 = vrot.lane.b32.xlu0 %v1194, 69
  %v1227 = vpop.permute.xlu0 %1226
  %1228 = vrot.lane.b32.xlu0 %v1195, 69
  %v1229 = vpop.permute.xlu0 %1228
  %1230 = vrot.lane.b32.xlu0 %v1196, 69
  %v1231 = vpop.permute.xlu0 %1230
  %1232 = vrot.lane.b32.xlu0 %v1197, 69
  %v1233 = vpop.permute.xlu0 %1232
  %vm1234 = vcmask 564224
  %v1235 = vsel %vm1234, %v1211, %v1213
  %v1236 = vsel %vm1234, %v1213, %v1215
  %v1237 = vsel %vm1234, %v1215, %v1217
  %v1238 = vsel %vm1234, %v1217, %v1219
  %v1239 = vsel %vm1234, %v1219, %v1221
  %v1240 = vsel %vm1234, %v1221, %v1223
  %v1241 = vsel %vm1234, %v1223, %v1225
  %v1242 = vsel %vm1234, %v1225, %v1227
  %v1243 = vsel %vm1234, %v1227, %v1229
  %v1244 = vsel %vm1234, %v1229, %v1231
  %v1245 = vsel %vm1234, %v1231, %v1233
  %v1258 = vadd.f32 %v1170, %v1235
  %v1259 = vadd.f32 %v1171, %v1236
  %v1260 = vadd.f32 %v1172, %v1237
  %v1261 = vadd.f32 %v1173, %v1238
  %v1262 = vadd.f32 %v1174, %v1239
  %v1263 = vadd.f32 %v1175, %v1240
  %v1264 = vadd.f32 %v1176, %v1241
  %v1265 = vadd.f32 %v1177, %v1242
  %v1266 = vadd.f32 %v1178, %v1243
  %v1267 = vadd.f32 %v1179, %v1244
  %v1268 = vadd.f32 %v1180, %v1245
  %v1269 = vadd.f32 %v1181, %v1233
  %1270 = vset.pattern.permute.xlu0 14
  %1271 = vperm.xlu0 %1270, %v46
  %v1272 = vpop.permute.xlu0 %1271
  %v1274 = vmul.f32 %v1272, %v57
  %v1275 = vmul.f32 %v1272, %v61
  %v1276 = vmul.f32 %v1272, %v65
  %v1277 = vmul.f32 %v1272, %v69
  %v1278 = vmul.f32 %v1272, %v73
  %v1279 = vmul.f32 %v1272, %v77
  %v1280 = vmul.f32 %v1272, %v81
  %v1281 = vmul.f32 %v1272, %v85
  %v1282 = vmul.f32 %v1272, %v89
  %v1283 = vmul.f32 %v1272, %v93
  %v1284 = vmul.f32 %v1272, %v97
  %v1285 = vmul.f32 %v1272, %v101
  %1298 = vrot.lane.b32.xlu0 %v1274, 68
  %v1299 = vpop.permute.xlu0 %1298
  %1300 = vrot.lane.b32.xlu0 %v1275, 68
  %v1301 = vpop.permute.xlu0 %1300
  %1302 = vrot.lane.b32.xlu0 %v1276, 68
  %v1303 = vpop.permute.xlu0 %1302
  %1304 = vrot.lane.b32.xlu0 %v1277, 68
  %v1305 = vpop.permute.xlu0 %1304
  %1306 = vrot.lane.b32.xlu0 %v1278, 68
  %v1307 = vpop.permute.xlu0 %1306
  %1308 = vrot.lane.b32.xlu0 %v1279, 68
  %v1309 = vpop.permute.xlu0 %1308
  %1310 = vrot.lane.b32.xlu0 %v1280, 68
  %v1311 = vpop.permute.xlu0 %1310
  %1312 = vrot.lane.b32.xlu0 %v1281, 68
  %v1313 = vpop.permute.xlu0 %1312
  %1314 = vrot.lane.b32.xlu0 %v1282, 68
  %v1315 = vpop.permute.xlu0 %1314
  %1316 = vrot.lane.b32.xlu0 %v1283, 68
  %v1317 = vpop.permute.xlu0 %1316
  %1318 = vrot.lane.b32.xlu0 %v1284, 68
  %v1319 = vpop.permute.xlu0 %1318
  %1320 = vrot.lane.b32.xlu0 %v1285, 68
  %v1321 = vpop.permute.xlu0 %1320
  %vm1322 = vcmask 556032
  %v1323 = vsel %vm1322, %v1299, %v1301
  %v1324 = vsel %vm1322, %v1301, %v1303
  %v1325 = vsel %vm1322, %v1303, %v1305
  %v1326 = vsel %vm1322, %v1305, %v1307
  %v1327 = vsel %vm1322, %v1307, %v1309
  %v1328 = vsel %vm1322, %v1309, %v1311
  %v1329 = vsel %vm1322, %v1311, %v1313
  %v1330 = vsel %vm1322, %v1313, %v1315
  %v1331 = vsel %vm1322, %v1315, %v1317
  %v1332 = vsel %vm1322, %v1317, %v1319
  %v1333 = vsel %vm1322, %v1319, %v1321
  %v1346 = vadd.f32 %v1258, %v1323
  %v1347 = vadd.f32 %v1259, %v1324
  %v1348 = vadd.f32 %v1260, %v1325
  %v1349 = vadd.f32 %v1261, %v1326
  %v1350 = vadd.f32 %v1262, %v1327
  %v1351 = vadd.f32 %v1263, %v1328
  %v1352 = vadd.f32 %v1264, %v1329
  %v1353 = vadd.f32 %v1265, %v1330
  %v1354 = vadd.f32 %v1266, %v1331
  %v1355 = vadd.f32 %v1267, %v1332
  %v1356 = vadd.f32 %v1268, %v1333
  %v1357 = vadd.f32 %v1269, %v1321
  %1358 = vset.pattern.permute.xlu0 15
  %1359 = vperm.xlu0 %1358, %v46
  %v1360 = vpop.permute.xlu0 %1359
  %v1362 = vmul.f32 %v1360, %v57
  %v1363 = vmul.f32 %v1360, %v61
  %v1364 = vmul.f32 %v1360, %v65
  %v1365 = vmul.f32 %v1360, %v69
  %v1366 = vmul.f32 %v1360, %v73
  %v1367 = vmul.f32 %v1360, %v77
  %v1368 = vmul.f32 %v1360, %v81
  %v1369 = vmul.f32 %v1360, %v85
  %v1370 = vmul.f32 %v1360, %v89
  %v1371 = vmul.f32 %v1360, %v93
  %v1372 = vmul.f32 %v1360, %v97
  %v1373 = vmul.f32 %v1360, %v101
  %1386 = vrot.lane.b32.xlu0 %v1362, 44
  %v1387 = vpop.permute.xlu0 %1386
  %1388 = vrot.lane.b32.xlu0 %v1363, 44
  %v1389 = vpop.permute.xlu0 %1388
  %1390 = vrot.lane.b32.xlu0 %v1364, 44
  %v1391 = vpop.permute.xlu0 %1390
  %1392 = vrot.lane.b32.xlu0 %v1365, 44
  %v1393 = vpop.permute.xlu0 %1392
  %1394 = vrot.lane.b32.xlu0 %v1366, 44
  %v1395 = vpop.permute.xlu0 %1394
  %1396 = vrot.lane.b32.xlu0 %v1367, 44
  %v1397 = vpop.permute.xlu0 %1396
  %1398 = vrot.lane.b32.xlu0 %v1368, 44
  %v1399 = vpop.permute.xlu0 %1398
  %1400 = vrot.lane.b32.xlu0 %v1369, 44
  %v1401 = vpop.permute.xlu0 %1400
  %1402 = vrot.lane.b32.xlu0 %v1370, 44
  %v1403 = vpop.permute.xlu0 %1402
  %1404 = vrot.lane.b32.xlu0 %v1371, 44
  %v1405 = vpop.permute.xlu0 %1404
  %1406 = vrot.lane.b32.xlu0 %v1372, 44
  %v1407 = vpop.permute.xlu0 %1406
  %1408 = vrot.lane.b32.xlu0 %v1373, 44
  %v1409 = vpop.permute.xlu0 %1408
  %vm1410 = vcmask 359424
  %v1411 = vsel %vm1410, %v1387, %v1389
  %v1412 = vsel %vm1410, %v1389, %v1391
  %v1413 = vsel %vm1410, %v1391, %v1393
  %v1414 = vsel %vm1410, %v1393, %v1395
  %v1415 = vsel %vm1410, %v1395, %v1397
  %v1416 = vsel %vm1410, %v1397, %v1399
  %v1417 = vsel %vm1410, %v1399, %v1401
  %v1418 = vsel %vm1410, %v1401, %v1403
  %v1419 = vsel %vm1410, %v1403, %v1405
  %v1420 = vsel %vm1410, %v1405, %v1407
  %v1421 = vsel %vm1410, %v1407, %v1409
  %v1434 = vadd.f32 %v1346, %v1411
  %v1435 = vadd.f32 %v1347, %v1412
  %v1436 = vadd.f32 %v1348, %v1413
  %v1437 = vadd.f32 %v1349, %v1414
  %v1438 = vadd.f32 %v1350, %v1415
  %v1439 = vadd.f32 %v1351, %v1416
  %v1440 = vadd.f32 %v1352, %v1417
  %v1441 = vadd.f32 %v1353, %v1418
  %v1442 = vadd.f32 %v1354, %v1419
  %v1443 = vadd.f32 %v1355, %v1420
  %v1444 = vadd.f32 %v1356, %v1421
  %v1445 = vadd.f32 %v1357, %v1409
  %1446 = vset.pattern.permute.xlu0 16
  %1447 = vperm.xlu0 %1446, %v46
  %v1448 = vpop.permute.xlu0 %1447
  %v1450 = vlaneseq
  %v1451 = vshrl.u32 %v1450, 7
  %v1452 = vsub.s32 4, %v1451
  %v1453 = vrot.slane %v45, %v1452
  %v1455 = vmul.f32 %v1448, %v57
  %v1456 = vmul.f32 %v1448, %v61
  %v1457 = vmul.f32 %v1448, %v65
  %v1458 = vmul.f32 %v1448, %v69
  %v1459 = vmul.f32 %v1448, %v73
  %v1460 = vmul.f32 %v1448, %v77
  %v1461 = vmul.f32 %v1448, %v81
  %v1462 = vmul.f32 %v1448, %v85
  %v1463 = vmul.f32 %v1448, %v89
  %v1464 = vmul.f32 %v1448, %v93
  %v1465 = vmul.f32 %v1448, %v97
  %v1466 = vmul.f32 %v1448, %v101
  %v1467 = vmul.f32 %v1448, %v1453
  %1481 = vrot.lane.b32.xlu0 %v1455, 43
  %v1482 = vpop.permute.xlu0 %1481
  %1483 = vrot.lane.b32.xlu0 %v1456, 43
  %v1484 = vpop.permute.xlu0 %1483
  %1485 = vrot.lane.b32.xlu0 %v1457, 43
  %v1486 = vpop.permute.xlu0 %1485
  %1487 = vrot.lane.b32.xlu0 %v1458, 43
  %v1488 = vpop.permute.xlu0 %1487
  %1489 = vrot.lane.b32.xlu0 %v1459, 43
  %v1490 = vpop.permute.xlu0 %1489
  %1491 = vrot.lane.b32.xlu0 %v1460, 43
  %v1492 = vpop.permute.xlu0 %1491
  %1493 = vrot.lane.b32.xlu0 %v1461, 43
  %v1494 = vpop.permute.xlu0 %1493
  %1495 = vrot.lane.b32.xlu0 %v1462, 43
  %v1496 = vpop.permute.xlu0 %1495
  %1497 = vrot.lane.b32.xlu0 %v1463, 43
  %v1498 = vpop.permute.xlu0 %1497
  %1499 = vrot.lane.b32.xlu0 %v1464, 43
  %v1500 = vpop.permute.xlu0 %1499
  %1501 = vrot.lane.b32.xlu0 %v1465, 43
  %v1502 = vpop.permute.xlu0 %1501
  %1503 = vrot.lane.b32.xlu0 %v1466, 43
  %v1504 = vpop.permute.xlu0 %1503
  %1505 = vrot.lane.b32.xlu0 %v1467, 43
  %v1506 = vpop.permute.xlu0 %1505
  %vm1507 = vcmask 351232
  %v1508 = vsel %vm1507, %v1482, %v1484
  %v1509 = vsel %vm1507, %v1484, %v1486
  %v1510 = vsel %vm1507, %v1486, %v1488
  %v1511 = vsel %vm1507, %v1488, %v1490
  %v1512 = vsel %vm1507, %v1490, %v1492
  %v1513 = vsel %vm1507, %v1492, %v1494
  %v1514 = vsel %vm1507, %v1494, %v1496
  %v1515 = vsel %vm1507, %v1496, %v1498
  %v1516 = vsel %vm1507, %v1498, %v1500
  %v1517 = vsel %vm1507, %v1500, %v1502
  %v1518 = vsel %vm1507, %v1502, %v1504
  %v1519 = vsel %vm1507, %v1504, %v1506
  %v1532 = vadd.f32 %v1434, %v1508
  %v1533 = vadd.f32 %v1435, %v1509
  %v1534 = vadd.f32 %v1436, %v1510
  %v1535 = vadd.f32 %v1437, %v1511
  %v1536 = vadd.f32 %v1438, %v1512
  %v1537 = vadd.f32 %v1439, %v1513
  %v1538 = vadd.f32 %v1440, %v1514
  %v1539 = vadd.f32 %v1441, %v1515
  %v1540 = vadd.f32 %v1442, %v1516
  %v1541 = vadd.f32 %v1443, %v1517
  %v1542 = vadd.f32 %v1444, %v1518
  %v1543 = vadd.f32 %v1445, %v1519
  %1544 = vset.pattern.permute.xlu0 17
  %1545 = vperm.xlu0 %1544, %v46
  %v1546 = vpop.permute.xlu0 %1545
  %v1548 = vmul.f32 %v1546, %v57
  %v1549 = vmul.f32 %v1546, %v61
  %v1550 = vmul.f32 %v1546, %v65
  %v1551 = vmul.f32 %v1546, %v69
  %v1552 = vmul.f32 %v1546, %v73
  %v1553 = vmul.f32 %v1546, %v77
  %v1554 = vmul.f32 %v1546, %v81
  %v1555 = vmul.f32 %v1546, %v85
  %v1556 = vmul.f32 %v1546, %v89
  %v1557 = vmul.f32 %v1546, %v93
  %v1558 = vmul.f32 %v1546, %v97
  %v1559 = vmul.f32 %v1546, %v101
  %v1560 = vmul.f32 %v1546, %v1453
  %1574 = vrot.lane.b32.xlu0 %v1548, 42
  %v1575 = vpop.permute.xlu0 %1574
  %1576 = vrot.lane.b32.xlu0 %v1549, 42
  %v1577 = vpop.permute.xlu0 %1576
  %1578 = vrot.lane.b32.xlu0 %v1550, 42
  %v1579 = vpop.permute.xlu0 %1578
  %1580 = vrot.lane.b32.xlu0 %v1551, 42
  %v1581 = vpop.permute.xlu0 %1580
  %1582 = vrot.lane.b32.xlu0 %v1552, 42
  %v1583 = vpop.permute.xlu0 %1582
  %1584 = vrot.lane.b32.xlu0 %v1553, 42
  %v1585 = vpop.permute.xlu0 %1584
  %1586 = vrot.lane.b32.xlu0 %v1554, 42
  %v1587 = vpop.permute.xlu0 %1586
  %1588 = vrot.lane.b32.xlu0 %v1555, 42
  %v1589 = vpop.permute.xlu0 %1588
  %1590 = vrot.lane.b32.xlu0 %v1556, 42
  %v1591 = vpop.permute.xlu0 %1590
  %1592 = vrot.lane.b32.xlu0 %v1557, 42
  %v1593 = vpop.permute.xlu0 %1592
  %1594 = vrot.lane.b32.xlu0 %v1558, 42
  %v1595 = vpop.permute.xlu0 %1594
  %1596 = vrot.lane.b32.xlu0 %v1559, 42
  %v1597 = vpop.permute.xlu0 %1596
  %1598 = vrot.lane.b32.xlu0 %v1560, 42
  %v1599 = vpop.permute.xlu0 %1598
  %vm1600 = vcmask 343040
  %v1601 = vsel %vm1600, %v1575, %v1577
  %v1602 = vsel %vm1600, %v1577, %v1579
  %v1603 = vsel %vm1600, %v1579, %v1581
  %v1604 = vsel %vm1600, %v1581, %v1583
  %v1605 = vsel %vm1600, %v1583, %v1585
  %v1606 = vsel %vm1600, %v1585, %v1587
  %v1607 = vsel %vm1600, %v1587, %v1589
  %v1608 = vsel %vm1600, %v1589, %v1591
  %v1609 = vsel %vm1600, %v1591, %v1593
  %v1610 = vsel %vm1600, %v1593, %v1595
  %v1611 = vsel %vm1600, %v1595, %v1597
  %v1612 = vsel %vm1600, %v1597, %v1599
  %v1625 = vadd.f32 %v1532, %v1601
  %v1626 = vadd.f32 %v1533, %v1602
  %v1627 = vadd.f32 %v1534, %v1603
  %v1628 = vadd.f32 %v1535, %v1604
  %v1629 = vadd.f32 %v1536, %v1605
  %v1630 = vadd.f32 %v1537, %v1606
  %v1631 = vadd.f32 %v1538, %v1607
  %v1632 = vadd.f32 %v1539, %v1608
  %v1633 = vadd.f32 %v1540, %v1609
  %v1634 = vadd.f32 %v1541, %v1610
  %v1635 = vadd.f32 %v1542, %v1611
  %v1636 = vadd.f32 %v1543, %v1612
  %1637 = vset.pattern.permute.xlu0 18
  %1638 = vperm.xlu0 %1637, %v46
  %v1639 = vpop.permute.xlu0 %1638
  %v1641 = vmul.f32 %v1639, %v57
  %v1642 = vmul.f32 %v1639, %v61
  %v1643 = vmul.f32 %v1639, %v65
  %v1644 = vmul.f32 %v1639, %v69
  %v1645 = vmul.f32 %v1639, %v73
  %v1646 = vmul.f32 %v1639, %v77
  %v1647 = vmul.f32 %v1639, %v81
  %v1648 = vmul.f32 %v1639, %v85
  %v1649 = vmul.f32 %v1639, %v89
  %v1650 = vmul.f32 %v1639, %v93
  %v1651 = vmul.f32 %v1639, %v97
  %v1652 = vmul.f32 %v1639, %v101
  %v1653 = vmul.f32 %v1639, %v1453
  %1667 = vrot.lane.b32.xlu0 %v1641, 41
  %v1668 = vpop.permute.xlu0 %1667
  %1669 = vrot.lane.b32.xlu0 %v1642, 41
  %v1670 = vpop.permute.xlu0 %1669
  %1671 = vrot.lane.b32.xlu0 %v1643, 41
  %v1672 = vpop.permute.xlu0 %1671
  %1673 = vrot.lane.b32.xlu0 %v1644, 41
  %v1674 = vpop.permute.xlu0 %1673
  %1675 = vrot.lane.b32.xlu0 %v1645, 41
  %v1676 = vpop.permute.xlu0 %1675
  %1677 = vrot.lane.b32.xlu0 %v1646, 41
  %v1678 = vpop.permute.xlu0 %1677
  %1679 = vrot.lane.b32.xlu0 %v1647, 41
  %v1680 = vpop.permute.xlu0 %1679
  %1681 = vrot.lane.b32.xlu0 %v1648, 41
  %v1682 = vpop.permute.xlu0 %1681
  %1683 = vrot.lane.b32.xlu0 %v1649, 41
  %v1684 = vpop.permute.xlu0 %1683
  %1685 = vrot.lane.b32.xlu0 %v1650, 41
  %v1686 = vpop.permute.xlu0 %1685
  %1687 = vrot.lane.b32.xlu0 %v1651, 41
  %v1688 = vpop.permute.xlu0 %1687
  %1689 = vrot.lane.b32.xlu0 %v1652, 41
  %v1690 = vpop.permute.xlu0 %1689
  %1691 = vrot.lane.b32.xlu0 %v1653, 41
  %v1692 = vpop.permute.xlu0 %1691
  %vm1693 = vcmask 334848
  %v1694 = vsel %vm1693, %v1668, %v1670
  %v1695 = vsel %vm1693, %v1670, %v1672
  %v1696 = vsel %vm1693, %v1672, %v1674
  %v1697 = vsel %vm1693, %v1674, %v1676
  %v1698 = vsel %vm1693, %v1676, %v1678
  %v1699 = vsel %vm1693, %v1678, %v1680
  %v1700 = vsel %vm1693, %v1680, %v1682
  %v1701 = vsel %vm1693, %v1682, %v1684
  %v1702 = vsel %vm1693, %v1684, %v1686
  %v1703 = vsel %vm1693, %v1686, %v1688
  %v1704 = vsel %vm1693, %v1688, %v1690
  %v1705 = vsel %vm1693, %v1690, %v1692
  %v1718 = vadd.f32 %v1625, %v1694
  %v1719 = vadd.f32 %v1626, %v1695
  %v1720 = vadd.f32 %v1627, %v1696
  %v1721 = vadd.f32 %v1628, %v1697
  %v1722 = vadd.f32 %v1629, %v1698
  %v1723 = vadd.f32 %v1630, %v1699
  %v1724 = vadd.f32 %v1631, %v1700
  %v1725 = vadd.f32 %v1632, %v1701
  %v1726 = vadd.f32 %v1633, %v1702
  %v1727 = vadd.f32 %v1634, %v1703
  %v1728 = vadd.f32 %v1635, %v1704
  %v1729 = vadd.f32 %v1636, %v1705
  %1730 = vset.pattern.permute.xlu0 19
  %1731 = vperm.xlu0 %1730, %v46
  %v1732 = vpop.permute.xlu0 %1731
  %v1734 = vmul.f32 %v1732, %v57
  %v1735 = vmul.f32 %v1732, %v61
  %v1736 = vmul.f32 %v1732, %v65
  %v1737 = vmul.f32 %v1732, %v69
  %v1738 = vmul.f32 %v1732, %v73
  %v1739 = vmul.f32 %v1732, %v77
  %v1740 = vmul.f32 %v1732, %v81
  %v1741 = vmul.f32 %v1732, %v85
  %v1742 = vmul.f32 %v1732, %v89
  %v1743 = vmul.f32 %v1732, %v93
  %v1744 = vmul.f32 %v1732, %v97
  %v1745 = vmul.f32 %v1732, %v101
  %v1746 = vmul.f32 %v1732, %v1453
  %1760 = vrot.lane.b32.xlu0 %v1734, 40
  %v1761 = vpop.permute.xlu0 %1760
  %1762 = vrot.lane.b32.xlu0 %v1735, 40
  %v1763 = vpop.permute.xlu0 %1762
  %1764 = vrot.lane.b32.xlu0 %v1736, 40
  %v1765 = vpop.permute.xlu0 %1764
  %1766 = vrot.lane.b32.xlu0 %v1737, 40
  %v1767 = vpop.permute.xlu0 %1766
  %1768 = vrot.lane.b32.xlu0 %v1738, 40
  %v1769 = vpop.permute.xlu0 %1768
  %1770 = vrot.lane.b32.xlu0 %v1739, 40
  %v1771 = vpop.permute.xlu0 %1770
  %1772 = vrot.lane.b32.xlu0 %v1740, 40
  %v1773 = vpop.permute.xlu0 %1772
  %1774 = vrot.lane.b32.xlu0 %v1741, 40
  %v1775 = vpop.permute.xlu0 %1774
  %1776 = vrot.lane.b32.xlu0 %v1742, 40
  %v1777 = vpop.permute.xlu0 %1776
  %1778 = vrot.lane.b32.xlu0 %v1743, 40
  %v1779 = vpop.permute.xlu0 %1778
  %1780 = vrot.lane.b32.xlu0 %v1744, 40
  %v1781 = vpop.permute.xlu0 %1780
  %1782 = vrot.lane.b32.xlu0 %v1745, 40
  %v1783 = vpop.permute.xlu0 %1782
  %1784 = vrot.lane.b32.xlu0 %v1746, 40
  %v1785 = vpop.permute.xlu0 %1784
  %vm1786 = vcmask 326656
  %v1787 = vsel %vm1786, %v1761, %v1763
  %v1788 = vsel %vm1786, %v1763, %v1765
  %v1789 = vsel %vm1786, %v1765, %v1767
  %v1790 = vsel %vm1786, %v1767, %v1769
  %v1791 = vsel %vm1786, %v1769, %v1771
  %v1792 = vsel %vm1786, %v1771, %v1773
  %v1793 = vsel %vm1786, %v1773, %v1775
  %v1794 = vsel %vm1786, %v1775, %v1777
  %v1795 = vsel %vm1786, %v1777, %v1779
  %v1796 = vsel %vm1786, %v1779, %v1781
  %v1797 = vsel %vm1786, %v1781, %v1783
  %v1798 = vsel %vm1786, %v1783, %v1785
  %v1811 = vadd.f32 %v1718, %v1787
  %v1812 = vadd.f32 %v1719, %v1788
  %v1813 = vadd.f32 %v1720, %v1789
  %v1814 = vadd.f32 %v1721, %v1790
  %v1815 = vadd.f32 %v1722, %v1791
  %v1816 = vadd.f32 %v1723, %v1792
  %v1817 = vadd.f32 %v1724, %v1793
  %v1818 = vadd.f32 %v1725, %v1794
  %v1819 = vadd.f32 %v1726, %v1795
  %v1820 = vadd.f32 %v1727, %v1796
  %v1821 = vadd.f32 %v1728, %v1797
  %v1822 = vadd.f32 %v1729, %v1798
  %1823 = vset.pattern.permute.xlu0 20
  %1824 = vperm.xlu0 %1823, %v46
  %v1825 = vpop.permute.xlu0 %1824
  %v1827 = vmul.f32 %v1825, %v57
  %v1828 = vmul.f32 %v1825, %v61
  %v1829 = vmul.f32 %v1825, %v65
  %v1830 = vmul.f32 %v1825, %v69
  %v1831 = vmul.f32 %v1825, %v73
  %v1832 = vmul.f32 %v1825, %v77
  %v1833 = vmul.f32 %v1825, %v81
  %v1834 = vmul.f32 %v1825, %v85
  %v1835 = vmul.f32 %v1825, %v89
  %v1836 = vmul.f32 %v1825, %v93
  %v1837 = vmul.f32 %v1825, %v97
  %v1838 = vmul.f32 %v1825, %v101
  %v1839 = vmul.f32 %v1825, %v1453
  %1853 = vrot.lane.b32.xlu0 %v1827, 16
  %v1854 = vpop.permute.xlu0 %1853
  %1855 = vrot.lane.b32.xlu0 %v1828, 16
  %v1856 = vpop.permute.xlu0 %1855
  %1857 = vrot.lane.b32.xlu0 %v1829, 16
  %v1858 = vpop.permute.xlu0 %1857
  %1859 = vrot.lane.b32.xlu0 %v1830, 16
  %v1860 = vpop.permute.xlu0 %1859
  %1861 = vrot.lane.b32.xlu0 %v1831, 16
  %v1862 = vpop.permute.xlu0 %1861
  %1863 = vrot.lane.b32.xlu0 %v1832, 16
  %v1864 = vpop.permute.xlu0 %1863
  %1865 = vrot.lane.b32.xlu0 %v1833, 16
  %v1866 = vpop.permute.xlu0 %1865
  %1867 = vrot.lane.b32.xlu0 %v1834, 16
  %v1868 = vpop.permute.xlu0 %1867
  %1869 = vrot.lane.b32.xlu0 %v1835, 16
  %v1870 = vpop.permute.xlu0 %1869
  %1871 = vrot.lane.b32.xlu0 %v1836, 16
  %v1872 = vpop.permute.xlu0 %1871
  %1873 = vrot.lane.b32.xlu0 %v1837, 16
  %v1874 = vpop.permute.xlu0 %1873
  %1875 = vrot.lane.b32.xlu0 %v1838, 16
  %v1876 = vpop.permute.xlu0 %1875
  %1877 = vrot.lane.b32.xlu0 %v1839, 16
  %v1878 = vpop.permute.xlu0 %1877
  %vm1879 = vcmask 130048
  %v1880 = vsel %vm1879, %v1854, %v1856
  %v1881 = vsel %vm1879, %v1856, %v1858
  %v1882 = vsel %vm1879, %v1858, %v1860
  %v1883 = vsel %vm1879, %v1860, %v1862
  %v1884 = vsel %vm1879, %v1862, %v1864
  %v1885 = vsel %vm1879, %v1864, %v1866
  %v1886 = vsel %vm1879, %v1866, %v1868
  %v1887 = vsel %vm1879, %v1868, %v1870
  %v1888 = vsel %vm1879, %v1870, %v1872
  %v1889 = vsel %vm1879, %v1872, %v1874
  %v1890 = vsel %vm1879, %v1874, %v1876
  %v1891 = vsel %vm1879, %v1876, %v1878
  %v1904 = vadd.f32 %v1811, %v1880
  %v1905 = vadd.f32 %v1812, %v1881
  %v1906 = vadd.f32 %v1813, %v1882
  %v1907 = vadd.f32 %v1814, %v1883
  %v1908 = vadd.f32 %v1815, %v1884
  %v1909 = vadd.f32 %v1816, %v1885
  %v1910 = vadd.f32 %v1817, %v1886
  %v1911 = vadd.f32 %v1818, %v1887
  %v1912 = vadd.f32 %v1819, %v1888
  %v1913 = vadd.f32 %v1820, %v1889
  %v1914 = vadd.f32 %v1821, %v1890
  %v1915 = vadd.f32 %v1822, %v1891
  %1916 = vset.pattern.permute.xlu0 21
  %1917 = vperm.xlu0 %1916, %v46
  %v1918 = vpop.permute.xlu0 %1917
  %v1920 = vmul.f32 %v1918, %v57
  %v1921 = vmul.f32 %v1918, %v61
  %v1922 = vmul.f32 %v1918, %v65
  %v1923 = vmul.f32 %v1918, %v69
  %v1924 = vmul.f32 %v1918, %v73
  %v1925 = vmul.f32 %v1918, %v77
  %v1926 = vmul.f32 %v1918, %v81
  %v1927 = vmul.f32 %v1918, %v85
  %v1928 = vmul.f32 %v1918, %v89
  %v1929 = vmul.f32 %v1918, %v93
  %v1930 = vmul.f32 %v1918, %v97
  %v1931 = vmul.f32 %v1918, %v101
  %v1932 = vmul.f32 %v1918, %v1453
  %1946 = vrot.lane.b32.xlu0 %v1920, 15
  %v1947 = vpop.permute.xlu0 %1946
  %1948 = vrot.lane.b32.xlu0 %v1921, 15
  %v1949 = vpop.permute.xlu0 %1948
  %1950 = vrot.lane.b32.xlu0 %v1922, 15
  %v1951 = vpop.permute.xlu0 %1950
  %1952 = vrot.lane.b32.xlu0 %v1923, 15
  %v1953 = vpop.permute.xlu0 %1952
  %1954 = vrot.lane.b32.xlu0 %v1924, 15
  %v1955 = vpop.permute.xlu0 %1954
  %1956 = vrot.lane.b32.xlu0 %v1925, 15
  %v1957 = vpop.permute.xlu0 %1956
  %1958 = vrot.lane.b32.xlu0 %v1926, 15
  %v1959 = vpop.permute.xlu0 %1958
  %1960 = vrot.lane.b32.xlu0 %v1927, 15
  %v1961 = vpop.permute.xlu0 %1960
  %1962 = vrot.lane.b32.xlu0 %v1928, 15
  %v1963 = vpop.permute.xlu0 %1962
  %1964 = vrot.lane.b32.xlu0 %v1929, 15
  %v1965 = vpop.permute.xlu0 %1964
  %1966 = vrot.lane.b32.xlu0 %v1930, 15
  %v1967 = vpop.permute.xlu0 %1966
  %1968 = vrot.lane.b32.xlu0 %v1931, 15
  %v1969 = vpop.permute.xlu0 %1968
  %1970 = vrot.lane.b32.xlu0 %v1932, 15
  %v1971 = vpop.permute.xlu0 %1970
  %vm1972 = vcmask 121856
  %v1973 = vsel %vm1972, %v1947, %v1949
  %v1974 = vsel %vm1972, %v1949, %v1951
  %v1975 = vsel %vm1972, %v1951, %v1953
  %v1976 = vsel %vm1972, %v1953, %v1955
  %v1977 = vsel %vm1972, %v1955, %v1957
  %v1978 = vsel %vm1972, %v1957, %v1959
  %v1979 = vsel %vm1972, %v1959, %v1961
  %v1980 = vsel %vm1972, %v1961, %v1963
  %v1981 = vsel %vm1972, %v1963, %v1965
  %v1982 = vsel %vm1972, %v1965, %v1967
  %v1983 = vsel %vm1972, %v1967, %v1969
  %v1984 = vsel %vm1972, %v1969, %v1971
  %v1997 = vadd.f32 %v1904, %v1973
  %v1998 = vadd.f32 %v1905, %v1974
  %v1999 = vadd.f32 %v1906, %v1975
  %v2000 = vadd.f32 %v1907, %v1976
  %v2001 = vadd.f32 %v1908, %v1977
  %v2002 = vadd.f32 %v1909, %v1978
  %v2003 = vadd.f32 %v1910, %v1979
  %v2004 = vadd.f32 %v1911, %v1980
  %v2005 = vadd.f32 %v1912, %v1981
  %v2006 = vadd.f32 %v1913, %v1982
  %v2007 = vadd.f32 %v1914, %v1983
  %v2008 = vadd.f32 %v1915, %v1984
  %2009 = vset.pattern.permute.xlu0 22
  %2010 = vperm.xlu0 %2009, %v46
  %v2011 = vpop.permute.xlu0 %2010
  %v2013 = vmul.f32 %v2011, %v57
  %v2014 = vmul.f32 %v2011, %v61
  %v2015 = vmul.f32 %v2011, %v65
  %v2016 = vmul.f32 %v2011, %v69
  %v2017 = vmul.f32 %v2011, %v73
  %v2018 = vmul.f32 %v2011, %v77
  %v2019 = vmul.f32 %v2011, %v81
  %v2020 = vmul.f32 %v2011, %v85
  %v2021 = vmul.f32 %v2011, %v89
  %v2022 = vmul.f32 %v2011, %v93
  %v2023 = vmul.f32 %v2011, %v97
  %v2024 = vmul.f32 %v2011, %v101
  %v2025 = vmul.f32 %v2011, %v1453
  %2039 = vrot.lane.b32.xlu0 %v2013, 14
  %v2040 = vpop.permute.xlu0 %2039
  %2041 = vrot.lane.b32.xlu0 %v2014, 14
  %v2042 = vpop.permute.xlu0 %2041
  %2043 = vrot.lane.b32.xlu0 %v2015, 14
  %v2044 = vpop.permute.xlu0 %2043
  %2045 = vrot.lane.b32.xlu0 %v2016, 14
  %v2046 = vpop.permute.xlu0 %2045
  %2047 = vrot.lane.b32.xlu0 %v2017, 14
  %v2048 = vpop.permute.xlu0 %2047
  %2049 = vrot.lane.b32.xlu0 %v2018, 14
  %v2050 = vpop.permute.xlu0 %2049
  %2051 = vrot.lane.b32.xlu0 %v2019, 14
  %v2052 = vpop.permute.xlu0 %2051
  %2053 = vrot.lane.b32.xlu0 %v2020, 14
  %v2054 = vpop.permute.xlu0 %2053
  %2055 = vrot.lane.b32.xlu0 %v2021, 14
  %v2056 = vpop.permute.xlu0 %2055
  %2057 = vrot.lane.b32.xlu0 %v2022, 14
  %v2058 = vpop.permute.xlu0 %2057
  %2059 = vrot.lane.b32.xlu0 %v2023, 14
  %v2060 = vpop.permute.xlu0 %2059
  %2061 = vrot.lane.b32.xlu0 %v2024, 14
  %v2062 = vpop.permute.xlu0 %2061
  %2063 = vrot.lane.b32.xlu0 %v2025, 14
  %v2064 = vpop.permute.xlu0 %2063
  %vm2065 = vcmask 113664
  %v2066 = vsel %vm2065, %v2040, %v2042
  %v2067 = vsel %vm2065, %v2042, %v2044
  %v2068 = vsel %vm2065, %v2044, %v2046
  %v2069 = vsel %vm2065, %v2046, %v2048
  %v2070 = vsel %vm2065, %v2048, %v2050
  %v2071 = vsel %vm2065, %v2050, %v2052
  %v2072 = vsel %vm2065, %v2052, %v2054
  %v2073 = vsel %vm2065, %v2054, %v2056
  %v2074 = vsel %vm2065, %v2056, %v2058
  %v2075 = vsel %vm2065, %v2058, %v2060
  %v2076 = vsel %vm2065, %v2060, %v2062
  %v2077 = vsel %vm2065, %v2062, %v2064
  %v2090 = vadd.f32 %v1997, %v2066
  %v2091 = vadd.f32 %v1998, %v2067
  %v2092 = vadd.f32 %v1999, %v2068
  %v2093 = vadd.f32 %v2000, %v2069
  %v2094 = vadd.f32 %v2001, %v2070
  %v2095 = vadd.f32 %v2002, %v2071
  %v2096 = vadd.f32 %v2003, %v2072
  %v2097 = vadd.f32 %v2004, %v2073
  %v2098 = vadd.f32 %v2005, %v2074
  %v2099 = vadd.f32 %v2006, %v2075
  %v2100 = vadd.f32 %v2007, %v2076
  %v2101 = vadd.f32 %v2008, %v2077
  %2102 = vset.pattern.permute.xlu0 23
  %2103 = vperm.xlu0 %2102, %v46
  %v2104 = vpop.permute.xlu0 %2103
  %v2106 = vmul.f32 %v2104, %v57
  %v2107 = vmul.f32 %v2104, %v61
  %v2108 = vmul.f32 %v2104, %v65
  %v2109 = vmul.f32 %v2104, %v69
  %v2110 = vmul.f32 %v2104, %v73
  %v2111 = vmul.f32 %v2104, %v77
  %v2112 = vmul.f32 %v2104, %v81
  %v2113 = vmul.f32 %v2104, %v85
  %v2114 = vmul.f32 %v2104, %v89
  %v2115 = vmul.f32 %v2104, %v93
  %v2116 = vmul.f32 %v2104, %v97
  %v2117 = vmul.f32 %v2104, %v101
  %v2118 = vmul.f32 %v2104, %v1453
  %2132 = vrot.lane.b32.xlu0 %v2106, 13
  %v2133 = vpop.permute.xlu0 %2132
  %2134 = vrot.lane.b32.xlu0 %v2107, 13
  %v2135 = vpop.permute.xlu0 %2134
  %2136 = vrot.lane.b32.xlu0 %v2108, 13
  %v2137 = vpop.permute.xlu0 %2136
  %2138 = vrot.lane.b32.xlu0 %v2109, 13
  %v2139 = vpop.permute.xlu0 %2138
  %2140 = vrot.lane.b32.xlu0 %v2110, 13
  %v2141 = vpop.permute.xlu0 %2140
  %2142 = vrot.lane.b32.xlu0 %v2111, 13
  %v2143 = vpop.permute.xlu0 %2142
  %2144 = vrot.lane.b32.xlu0 %v2112, 13
  %v2145 = vpop.permute.xlu0 %2144
  %2146 = vrot.lane.b32.xlu0 %v2113, 13
  %v2147 = vpop.permute.xlu0 %2146
  %2148 = vrot.lane.b32.xlu0 %v2114, 13
  %v2149 = vpop.permute.xlu0 %2148
  %2150 = vrot.lane.b32.xlu0 %v2115, 13
  %v2151 = vpop.permute.xlu0 %2150
  %2152 = vrot.lane.b32.xlu0 %v2116, 13
  %v2153 = vpop.permute.xlu0 %2152
  %2154 = vrot.lane.b32.xlu0 %v2117, 13
  %v2155 = vpop.permute.xlu0 %2154
  %2156 = vrot.lane.b32.xlu0 %v2118, 13
  %v2157 = vpop.permute.xlu0 %2156
  %vm2158 = vcmask 105472
  %v2159 = vsel %vm2158, %v2133, %v2135
  %v2160 = vsel %vm2158, %v2135, %v2137
  %v2161 = vsel %vm2158, %v2137, %v2139
  %v2162 = vsel %vm2158, %v2139, %v2141
  %v2163 = vsel %vm2158, %v2141, %v2143
  %v2164 = vsel %vm2158, %v2143, %v2145
  %v2165 = vsel %vm2158, %v2145, %v2147
  %v2166 = vsel %vm2158, %v2147, %v2149
  %v2167 = vsel %vm2158, %v2149, %v2151
  %v2168 = vsel %vm2158, %v2151, %v2153
  %v2169 = vsel %vm2158, %v2153, %v2155
  %v2170 = vsel %vm2158, %v2155, %v2157
  %v2183 = vadd.f32 %v2090, %v2159
  %v2184 = vadd.f32 %v2091, %v2160
  %v2185 = vadd.f32 %v2092, %v2161
  %v2186 = vadd.f32 %v2093, %v2162
  %v2187 = vadd.f32 %v2094, %v2163
  %v2188 = vadd.f32 %v2095, %v2164
  %v2189 = vadd.f32 %v2096, %v2165
  %v2190 = vadd.f32 %v2097, %v2166
  %v2191 = vadd.f32 %v2098, %v2167
  %v2192 = vadd.f32 %v2099, %v2168
  %v2193 = vadd.f32 %v2100, %v2169
  %v2194 = vadd.f32 %v2101, %v2170
  %2195 = vset.pattern.permute.xlu0 24
  %2196 = vperm.xlu0 %2195, %v46
  %v2197 = vpop.permute.xlu0 %2196
  %v2199 = vmul.f32 %v2197, %v57
  %v2200 = vmul.f32 %v2197, %v61
  %v2201 = vmul.f32 %v2197, %v65
  %v2202 = vmul.f32 %v2197, %v69
  %v2203 = vmul.f32 %v2197, %v73
  %v2204 = vmul.f32 %v2197, %v77
  %v2205 = vmul.f32 %v2197, %v81
  %v2206 = vmul.f32 %v2197, %v85
  %v2207 = vmul.f32 %v2197, %v89
  %v2208 = vmul.f32 %v2197, %v93
  %v2209 = vmul.f32 %v2197, %v97
  %v2210 = vmul.f32 %v2197, %v101
  %v2211 = vmul.f32 %v2197, %v1453
  %2225 = vrot.lane.b32.xlu0 %v2199, 12
  %v2226 = vpop.permute.xlu0 %2225
  %2227 = vrot.lane.b32.xlu0 %v2200, 12
  %v2228 = vpop.permute.xlu0 %2227
  %2229 = vrot.lane.b32.xlu0 %v2201, 12
  %v2230 = vpop.permute.xlu0 %2229
  %2231 = vrot.lane.b32.xlu0 %v2202, 12
  %v2232 = vpop.permute.xlu0 %2231
  %2233 = vrot.lane.b32.xlu0 %v2203, 12
  %v2234 = vpop.permute.xlu0 %2233
  %2235 = vrot.lane.b32.xlu0 %v2204, 12
  %v2236 = vpop.permute.xlu0 %2235
  %2237 = vrot.lane.b32.xlu0 %v2205, 12
  %v2238 = vpop.permute.xlu0 %2237
  %2239 = vrot.lane.b32.xlu0 %v2206, 12
  %v2240 = vpop.permute.xlu0 %2239
  %2241 = vrot.lane.b32.xlu0 %v2207, 12
  %v2242 = vpop.permute.xlu0 %2241
  %2243 = vrot.lane.b32.xlu0 %v2208, 12
  %v2244 = vpop.permute.xlu0 %2243
  %2245 = vrot.lane.b32.xlu0 %v2209, 12
  %v2246 = vpop.permute.xlu0 %2245
  %2247 = vrot.lane.b32.xlu0 %v2210, 12
  %v2248 = vpop.permute.xlu0 %2247
  %2249 = vrot.lane.b32.xlu0 %v2211, 12
  %v2250 = vpop.permute.xlu0 %2249
  %vm2251 = vcmask 97280
  %v2252 = vsel %vm2251, %v2226, %v2228
  %v2253 = vsel %vm2251, %v2228, %v2230
  %v2254 = vsel %vm2251, %v2230, %v2232
  %v2255 = vsel %vm2251, %v2232, %v2234
  %v2256 = vsel %vm2251, %v2234, %v2236
  %v2257 = vsel %vm2251, %v2236, %v2238
  %v2258 = vsel %vm2251, %v2238, %v2240
  %v2259 = vsel %vm2251, %v2240, %v2242
  %v2260 = vsel %vm2251, %v2242, %v2244
  %v2261 = vsel %vm2251, %v2244, %v2246
  %v2262 = vsel %vm2251, %v2246, %v2248
  %v2263 = vsel %vm2251, %v2248, %v2250
  %v2276 = vadd.f32 %v2183, %v2252
  %v2277 = vadd.f32 %v2184, %v2253
  %v2278 = vadd.f32 %v2185, %v2254
  %v2279 = vadd.f32 %v2186, %v2255
  %v2280 = vadd.f32 %v2187, %v2256
  %v2281 = vadd.f32 %v2188, %v2257
  %v2282 = vadd.f32 %v2189, %v2258
  %v2283 = vadd.f32 %v2190, %v2259
  %v2284 = vadd.f32 %v2191, %v2260
  %v2285 = vadd.f32 %v2192, %v2261
  %v2286 = vadd.f32 %v2193, %v2262
  %v2287 = vadd.f32 %v2194, %v2263
  %2289 = vset.pattern.permute.xlu0 0
  %2290 = vperm.xlu0 %2289, %v26
  %v2291 = vpop.permute.xlu0 %2290
  %v2293 = vadd.f32 %v2276, %v2291
  %v2294 = vadd.f32 %v2277, %v2291
  %v2295 = vadd.f32 %v2278, %v2291
  %v2296 = vadd.f32 %v2279, %v2291
  %v2297 = vadd.f32 %v2280, %v2291
  %v2298 = vadd.f32 %v2281, %v2291
  %v2299 = vadd.f32 %v2282, %v2291
  %v2300 = vadd.f32 %v2283, %v2291
  %v2301 = vadd.f32 %v2284, %v2291
  %v2302 = vadd.f32 %v2285, %v2291
  %v2303 = vadd.f32 %v2286, %v2291
  %v2304 = vadd.f32 %v2287, %v2291
  %v2305 = vtanh.pop %v2293
  %v2306 = vtanh.pop %v2294
  %v2307 = vtanh.pop %v2295
  %v2308 = vtanh.pop %v2296
  %v2309 = vtanh.pop %v2297
  %v2310 = vtanh.pop %v2298
  %v2311 = vtanh.pop %v2299
  %v2312 = vtanh.pop %v2300
  %v2313 = vtanh.pop %v2301
  %v2314 = vtanh.pop %v2302
  %v2315 = vtanh.pop %v2303
  %v2316 = vtanh.pop %v2304
  %2329 = vrot.lane.b32.xlu0 %v2305, 127
  %v2330 = vpop.permute.xlu0 %2329
  %2331 = vrot.lane.b32.xlu0 %v2306, 127
  %v2332 = vpop.permute.xlu0 %2331
  %2333 = vrot.lane.b32.xlu0 %v2307, 127
  %v2334 = vpop.permute.xlu0 %2333
  %2335 = vrot.lane.b32.xlu0 %v2308, 127
  %v2336 = vpop.permute.xlu0 %2335
  %2337 = vrot.lane.b32.xlu0 %v2309, 127
  %v2338 = vpop.permute.xlu0 %2337
  %2339 = vrot.lane.b32.xlu0 %v2310, 127
  %v2340 = vpop.permute.xlu0 %2339
  %2341 = vrot.lane.b32.xlu0 %v2311, 127
  %v2342 = vpop.permute.xlu0 %2341
  %2343 = vrot.lane.b32.xlu0 %v2312, 127
  %v2344 = vpop.permute.xlu0 %2343
  %2345 = vrot.lane.b32.xlu0 %v2313, 127
  %v2346 = vpop.permute.xlu0 %2345
  %2347 = vrot.lane.b32.xlu0 %v2314, 127
  %v2348 = vpop.permute.xlu0 %2347
  %2349 = vrot.lane.b32.xlu0 %v2315, 127
  %v2350 = vpop.permute.xlu0 %2349
  %2351 = vrot.lane.b32.xlu0 %v2316, 127
  %v2352 = vpop.permute.xlu0 %2351
  %v2353 = vsel %vm178, %v2330, %v2332
  %v2354 = vsel %vm178, %v2332, %v2334
  %v2355 = vsel %vm178, %v2334, %v2336
  %v2356 = vsel %vm178, %v2336, %v2338
  %v2357 = vsel %vm178, %v2338, %v2340
  %v2358 = vsel %vm178, %v2342, %v2344
  %v2359 = vsel %vm178, %v2344, %v2346
  %v2360 = vsel %vm178, %v2346, %v2348
  %v2361 = vsel %vm178, %v2348, %v2350
  %v2362 = vsel %vm178, %v2350, %v2352
  %v2374 = vadd.f32 %v2305, %v2353
  %v2375 = vadd.f32 %v2306, %v2354
  %v2376 = vadd.f32 %v2307, %v2355
  %v2377 = vadd.f32 %v2308, %v2356
  %v2378 = vadd.f32 %v2309, %v2357
  %v2379 = vadd.f32 %v2311, %v2358
  %v2380 = vadd.f32 %v2312, %v2359
  %v2381 = vadd.f32 %v2313, %v2360
  %v2382 = vadd.f32 %v2314, %v2361
  %v2383 = vadd.f32 %v2315, %v2362
  %v2384 = vadd.f32 %v2316, %v2352
  %2385 = vrot.lane.b32.xlu0 %v2305, 100
  %v2386 = vpop.permute.xlu0 %2385
  %2387 = vrot.lane.b32.xlu0 %v2306, 100
  %v2388 = vpop.permute.xlu0 %2387
  %2389 = vrot.lane.b32.xlu0 %v2307, 100
  %v2390 = vpop.permute.xlu0 %2389
  %2391 = vrot.lane.b32.xlu0 %v2308, 100
  %v2392 = vpop.permute.xlu0 %2391
  %2393 = vrot.lane.b32.xlu0 %v2309, 100
  %v2394 = vpop.permute.xlu0 %2393
  %2395 = vrot.lane.b32.xlu0 %v2310, 100
  %v2396 = vpop.permute.xlu0 %2395
  %2397 = vrot.lane.b32.xlu0 %v2311, 100
  %v2398 = vpop.permute.xlu0 %2397
  %2399 = vrot.lane.b32.xlu0 %v2312, 100
  %v2400 = vpop.permute.xlu0 %2399
  %2401 = vrot.lane.b32.xlu0 %v2313, 100
  %v2402 = vpop.permute.xlu0 %2401
  %2403 = vrot.lane.b32.xlu0 %v2314, 100
  %v2404 = vpop.permute.xlu0 %2403
  %2405 = vrot.lane.b32.xlu0 %v2315, 100
  %v2406 = vpop.permute.xlu0 %2405
  %2407 = vrot.lane.b32.xlu0 %v2316, 100
  %v2408 = vpop.permute.xlu0 %2407
  %v2409 = vsel %vm530, %v2386, %v2388
  %v2410 = vsel %vm530, %v2388, %v2390
  %v2411 = vsel %vm530, %v2390, %v2392
  %v2412 = vsel %vm530, %v2392, %v2394
  %v2413 = vsel %vm530, %v2394, %v2396
  %v2414 = vsel %vm530, %v2398, %v2400
  %v2415 = vsel %vm530, %v2400, %v2402
  %v2416 = vsel %vm530, %v2402, %v2404
  %v2417 = vsel %vm530, %v2404, %v2406
  %v2418 = vsel %vm530, %v2406, %v2408
  %v2430 = vadd.f32 %v2374, %v2409
  %v2431 = vadd.f32 %v2375, %v2410
  %v2432 = vadd.f32 %v2376, %v2411
  %v2433 = vadd.f32 %v2377, %v2412
  %v2434 = vadd.f32 %v2378, %v2413
  %v2435 = vadd.f32 %v2379, %v2414
  %v2436 = vadd.f32 %v2380, %v2415
  %v2437 = vadd.f32 %v2381, %v2416
  %v2438 = vadd.f32 %v2382, %v2417
  %v2439 = vadd.f32 %v2383, %v2418
  %v2440 = vadd.f32 %v2384, %v2408
  %2441 = vrot.lane.b32.xlu0 %v2305, 99
  %v2442 = vpop.permute.xlu0 %2441
  %2443 = vrot.lane.b32.xlu0 %v2306, 99
  %v2444 = vpop.permute.xlu0 %2443
  %2445 = vrot.lane.b32.xlu0 %v2307, 99
  %v2446 = vpop.permute.xlu0 %2445
  %2447 = vrot.lane.b32.xlu0 %v2308, 99
  %v2448 = vpop.permute.xlu0 %2447
  %2449 = vrot.lane.b32.xlu0 %v2309, 99
  %v2450 = vpop.permute.xlu0 %2449
  %2451 = vrot.lane.b32.xlu0 %v2310, 99
  %v2452 = vpop.permute.xlu0 %2451
  %2453 = vrot.lane.b32.xlu0 %v2311, 99
  %v2454 = vpop.permute.xlu0 %2453
  %2455 = vrot.lane.b32.xlu0 %v2312, 99
  %v2456 = vpop.permute.xlu0 %2455
  %2457 = vrot.lane.b32.xlu0 %v2313, 99
  %v2458 = vpop.permute.xlu0 %2457
  %2459 = vrot.lane.b32.xlu0 %v2314, 99
  %v2460 = vpop.permute.xlu0 %2459
  %2461 = vrot.lane.b32.xlu0 %v2315, 99
  %v2462 = vpop.permute.xlu0 %2461
  %2463 = vrot.lane.b32.xlu0 %v2316, 99
  %v2464 = vpop.permute.xlu0 %2463
  %v2465 = vsel %vm618, %v2442, %v2444
  %v2466 = vsel %vm618, %v2444, %v2446
  %v2467 = vsel %vm618, %v2446, %v2448
  %v2468 = vsel %vm618, %v2448, %v2450
  %v2469 = vsel %vm618, %v2450, %v2452
  %v2470 = vsel %vm618, %v2454, %v2456
  %v2471 = vsel %vm618, %v2456, %v2458
  %v2472 = vsel %vm618, %v2458, %v2460
  %v2473 = vsel %vm618, %v2460, %v2462
  %v2474 = vsel %vm618, %v2462, %v2464
  %v2486 = vadd.f32 %v2430, %v2465
  %v2487 = vadd.f32 %v2431, %v2466
  %v2488 = vadd.f32 %v2432, %v2467
  %v2489 = vadd.f32 %v2433, %v2468
  %v2490 = vadd.f32 %v2434, %v2469
  %v2491 = vadd.f32 %v2435, %v2470
  %v2492 = vadd.f32 %v2436, %v2471
  %v2493 = vadd.f32 %v2437, %v2472
  %v2494 = vadd.f32 %v2438, %v2473
  %v2495 = vadd.f32 %v2439, %v2474
  %v2496 = vadd.f32 %v2440, %v2464
  %2497 = vst [vmem:[#allocation2] sm:$0xff] 0.0
  %2498 = vst [vmem:[#allocation2 + $0x8] sm:$0xff] 0.0
  %2499 = vst [vmem:[#allocation2 + $0x10] sm:$0xff] 0.0
  %2500 = vst [vmem:[#allocation2 + $0x18] sm:$0xff] 0.0
  %2501 = vst [vmem:[#allocation2 + $0x20] sm:$0xff] 0.0
  %2502 = vst [vmem:[#allocation2 + $0x28] sm:$0xff] 0.0
  %vm2503 = vcmask 185344
  %2504 = vst.msk [vmem:[#allocation2] sm:$0x3f] %vm2503, %v2486
  %2506 = vrot.lane.b32.xlu0 %v2486, 104
  %v2507 = vpop.permute.xlu0 %2506
  %vm2509 = vcmask 447744
  %2510 = vst.msk [vmem:[#allocation2] sm:$0x3f] %vm2509, %v2507
  %2512 = vrot.lane.b32.xlu0 %v2486, 80
  %v2513 = vpop.permute.xlu0 %2512
  %2514 = vrot.lane.b32.xlu0 %v2487, 80
  %v2515 = vpop.permute.xlu0 %2514
  %vm2516 = vcmask 654336
  %v2517 = vsel %vm2516, %v2513, %v2515
  %vm2519 = vcmask 710144
  %2520 = vst.msk [vmem:[#allocation2] sm:$0x3f] %vm2519, %v2517
  %2521 = vrot.lane.b32.xlu0 %v2487, 56
  %v2522 = vpop.permute.xlu0 %2521
  %vm2524 = vcmask 972544
  %2525 = vst.msk [vmem:[#allocation2] sm:$0x3f] %vm2524, %v2522
  %2526 = vrot.lane.b32.xlu0 %v2487, 32
  %v2527 = vpop.permute.xlu0 %2526
  %2529 = vst.msk [vmem:[#allocation2 + $0x8] sm:$0x3f] %vm2503, %v2527
  %2531 = vrot.lane.b32.xlu0 %v2488, 8
  %v2532 = vpop.permute.xlu0 %2531
  %2534 = vst.msk [vmem:[#allocation2 + $0x8] sm:$0x3f] %vm2509, %v2532
  %2535 = vrot.lane.b32.xlu0 %v2488, 112
  %v2536 = vpop.permute.xlu0 %2535
  %2538 = vst.msk [vmem:[#allocation2 + $0x8] sm:$0x3f] %vm2519, %v2536
  %2540 = vrot.lane.b32.xlu0 %v2489, 88
  %v2541 = vpop.permute.xlu0 %2540
  %2543 = vst.msk [vmem:[#allocation2 + $0x8] sm:$0x3f] %vm2524, %v2541
  %2544 = vrot.lane.b32.xlu0 %v2489, 64
  %v2545 = vpop.permute.xlu0 %2544
  %2547 = vst.msk [vmem:[#allocation2 + $0x10] sm:$0x3f] %vm2503, %v2545
  %2549 = vrot.lane.b32.xlu0 %v2489, 40
  %v2550 = vpop.permute.xlu0 %2549
  %2551 = vrot.lane.b32.xlu0 %v2490, 40
  %v2552 = vpop.permute.xlu0 %2551
  %v2553 = vsel %vm1786, %v2550, %v2552
  %2555 = vst.msk [vmem:[#allocation2 + $0x10] sm:$0x3f] %vm2509, %v2553
  %2556 = vrot.lane.b32.xlu0 %v2490, 16
  %v2557 = vpop.permute.xlu0 %2556
  %2559 = vst.msk [vmem:[#allocation2 + $0x10] sm:$0x3f] %vm2519, %v2557
  %2560 = vrot.lane.b32.xlu0 %v2490, 120
  %v2561 = vpop.permute.xlu0 %2560
  %2563 = vst.msk [vmem:[#allocation2 + $0x10] sm:$0x3f] %vm2524, %v2561
  %2565 = vrot.lane.b32.xlu0 %v2491, 112
  %v2566 = vpop.permute.xlu0 %2565
  %2568 = vst.msk [vmem:[#allocation2 + $0x18] sm:$0x3f] %vm2503, %v2566
  %2569 = vrot.lane.b32.xlu0 %v2491, 88
  %v2570 = vpop.permute.xlu0 %2569
  %2572 = vst.msk [vmem:[#allocation2 + $0x18] sm:$0x3f] %vm2509, %v2570
  %2574 = vrot.lane.b32.xlu0 %v2492, 64
  %v2575 = vpop.permute.xlu0 %2574
  %2577 = vst.msk [vmem:[#allocation2 + $0x18] sm:$0x3f] %vm2519, %v2575
  %2578 = vrot.lane.b32.xlu0 %v2492, 40
  %v2579 = vpop.permute.xlu0 %2578
  %2581 = vst.msk [vmem:[#allocation2 + $0x18] sm:$0x3f] %vm2524, %v2579
  %2583 = vrot.lane.b32.xlu0 %v2492, 16
  %v2584 = vpop.permute.xlu0 %2583
  %2585 = vrot.lane.b32.xlu0 %v2493, 16
  %v2586 = vpop.permute.xlu0 %2585
  %v2587 = vsel %vm1879, %v2584, %v2586
  %2589 = vst.msk [vmem:[#allocation2 + $0x20] sm:$0x3f] %vm2503, %v2587
  %2590 = vrot.lane.b32.xlu0 %v2493, 120
  %v2591 = vpop.permute.xlu0 %2590
  %2593 = vst.msk [vmem:[#allocation2 + $0x20] sm:$0x3f] %vm2509, %v2591
  %2594 = vrot.lane.b32.xlu0 %v2493, 96
  %v2595 = vpop.permute.xlu0 %2594
  %2597 = vst.msk [vmem:[#allocation2 + $0x20] sm:$0x3f] %vm2519, %v2595
  %2599 = vrot.lane.b32.xlu0 %v2494, 72
  %v2600 = vpop.permute.xlu0 %2599
  %2602 = vst.msk [vmem:[#allocation2 + $0x20] sm:$0x3f] %vm2524, %v2600
  %2603 = vrot.lane.b32.xlu0 %v2494, 48
  %v2604 = vpop.permute.xlu0 %2603
  %2606 = vst.msk [vmem:[#allocation2 + $0x28] sm:$0x3f] %vm2503, %v2604
  %2608 = vrot.lane.b32.xlu0 %v2495, 24
  %v2609 = vpop.permute.xlu0 %2608
  %2611 = vst.msk [vmem:[#allocation2 + $0x28] sm:$0x3f] %vm2509, %v2609
  %2612 = vst.msk [vmem:[#allocation2 + $0x28] sm:$0x3f] %vm2519, %v2495
  %2614 = vrot.lane.b32.xlu0 %v2495, 104
  %v2615 = vpop.permute.xlu0 %2614
  %2616 = vrot.lane.b32.xlu0 %v2496, 104
  %v2617 = vpop.permute.xlu0 %2616
  %vm2618 = vcmask 850944
  %v2619 = vsel %vm2618, %v2615, %v2617
  %2621 = vst.msk [vmem:[#allocation2 + $0x28] sm:$0x3f] %vm2524, %v2619
  %v2622 = vld [vmem:[#allocation2] sm:$0xff]
  %v2623 = vld [vmem:[#allocation2 + $0x8] sm:$0xff]
  %v2624 = vld [vmem:[#allocation2 + $0x10] sm:$0xff]
  %v2625 = vld [vmem:[#allocation2 + $0x18] sm:$0xff]
  %v2626 = vld [vmem:[#allocation2 + $0x20] sm:$0xff]
  %2627 = vst [vmem:[#allocation3] sm:$0xff] %v2622
  %2628 = vst [vmem:[#allocation3 + $0x8] sm:$0xff] %v2623
  %2629 = vst [vmem:[#allocation3 + $0x10] sm:$0xff] %v2624
  %2630 = vst [vmem:[#allocation3 + $0x18] sm:$0xff] %v2625
  %vm2631 = vcmask 908288
  %2632 = vst.msk [vmem:[#allocation3 + $0x20] sm:$0xff] %vm2631, %v2626
  %v2633 = vld [vmem:[#allocation2] sm:$0xff]
  %v2634 = vld [vmem:[#allocation2 + $0x8] sm:$0xff]
  %v2635 = vld [vmem:[#allocation2 + $0x10] sm:$0xff]
  %v2636 = vld [vmem:[#allocation2 + $0x18] sm:$0xff]
  %v2637 = vld [vmem:[#allocation2 + $0x20] sm:$0xff]
  %2643 = vrot.lane.b32.xlu0 %v2633, 126
  %v2644 = vpop.permute.xlu0 %2643
  %2645 = vrot.lane.b32.xlu0 %v2634, 126
  %v2646 = vpop.permute.xlu0 %2645
  %2647 = vrot.lane.b32.xlu0 %v2635, 126
  %v2648 = vpop.permute.xlu0 %2647
  %2649 = vrot.lane.b32.xlu0 %v2636, 126
  %v2650 = vpop.permute.xlu0 %2649
  %2651 = vrot.lane.b32.xlu0 %v2637, 126
  %v2652 = vpop.permute.xlu0 %2651
  %v2653 = vsel %vm266, %v2644, %v2646
  %v2654 = vsel %vm266, %v2646, %v2648
  %v2655 = vsel %vm266, %v2648, %v2650
  %v2656 = vsel %vm266, %v2650, %v2652
  %2662 = vst [vmem:[#allocation3 + $0x28] sm:$0xff] %v2653
  %2663 = vst [vmem:[#allocation3 + $0x30] sm:$0xff] %v2654
  %2664 = vst [vmem:[#allocation3 + $0x38] sm:$0xff] %v2655
  %2665 = vst [vmem:[#allocation3 + $0x40] sm:$0xff] %v2656
  %2666 = vst.msk [vmem:[#allocation3 + $0x48] sm:$0xff] %vm2631, %v2652
  %v2667 = vld [vmem:[#allocation2] sm:$0xff]
  %v2668 = vld [vmem:[#allocation2 + $0x8] sm:$0xff]
  %v2669 = vld [vmem:[#allocation2 + $0x10] sm:$0xff]
  %v2670 = vld [vmem:[#allocation2 + $0x18] sm:$0xff]
  %v2671 = vld [vmem:[#allocation2 + $0x20] sm:$0xff]
  %2677 = vrot.lane.b32.xlu0 %v2667, 124
  %v2678 = vpop.permute.xlu0 %2677
  %2679 = vrot.lane.b32.xlu0 %v2668, 124
  %v2680 = vpop.permute.xlu0 %2679
  %2681 = vrot.lane.b32.xlu0 %v2669, 124
  %v2682 = vpop.permute.xlu0 %2681
  %2683 = vrot.lane.b32.xlu0 %v2670, 124
  %v2684 = vpop.permute.xlu0 %2683
  %2685 = vrot.lane.b32.xlu0 %v2671, 124
  %v2686 = vpop.permute.xlu0 %2685
  %v2687 = vsel %vm442, %v2678, %v2680
  %v2688 = vsel %vm442, %v2680, %v2682
  %v2689 = vsel %vm442, %v2682, %v2684
  %v2690 = vsel %vm442, %v2684, %v2686
  %2696 = vst [vmem:[#allocation3 + $0x50] sm:$0xff] %v2687
  %2697 = vst [vmem:[#allocation3 + $0x58] sm:$0xff] %v2688
  %2698 = vst [vmem:[#allocation3 + $0x60] sm:$0xff] %v2689
  %2699 = vst [vmem:[#allocation3 + $0x68] sm:$0xff] %v2690
  %2700 = vst.msk [vmem:[#allocation3 + $0x70] sm:$0xff] %vm2631, %v2686
  %v2701 = vld [vmem:[#allocation2] sm:$0xff]
  %v2702 = vld [vmem:[#allocation2 + $0x8] sm:$0xff]
  %v2703 = vld [vmem:[#allocation2 + $0x10] sm:$0xff]
  %v2704 = vld [vmem:[#allocation2 + $0x18] sm:$0xff]
  %v2705 = vld [vmem:[#allocation2 + $0x20] sm:$0xff]
  %2711 = vrot.lane.b32.xlu0 %v2701, 122
  %v2712 = vpop.permute.xlu0 %2711
  %2713 = vrot.lane.b32.xlu0 %v2702, 122
  %v2714 = vpop.permute.xlu0 %2713
  %2715 = vrot.lane.b32.xlu0 %v2703, 122
  %v2716 = vpop.permute.xlu0 %2715
  %2717 = vrot.lane.b32.xlu0 %v2704, 122
  %v2718 = vpop.permute.xlu0 %2717
  %2719 = vrot.lane.b32.xlu0 %v2705, 122
  %v2720 = vpop.permute.xlu0 %2719
  %vm2721 = vcmask 998400
  %v2722 = vsel %vm2721, %v2712, %v2714
  %v2723 = vsel %vm2721, %v2714, %v2716
  %v2724 = vsel %vm2721, %v2716, %v2718
  %v2725 = vsel %vm2721, %v2718, %v2720
  %2731 = vst [vmem:[#allocation3 + $0x78] sm:$0xff] %v2722
  %2732 = vst [vmem:[#allocation3 + $0x80] sm:$0xff] %v2723
  %2733 = vst [vmem:[#allocation3 + $0x88] sm:$0xff] %v2724
  %2734 = vst [vmem:[#allocation3 + $0x90] sm:$0xff] %v2725
  %2735 = vst.msk [vmem:[#allocation3 + $0x98] sm:$0xff] %vm2631, %v2720
  %v2736 = vld [vmem:[#allocation2] sm:$0xff]
  %v2737 = vld [vmem:[#allocation2 + $0x8] sm:$0xff]
  %v2738 = vld [vmem:[#allocation2 + $0x10] sm:$0xff]
  %v2739 = vld [vmem:[#allocation2 + $0x18] sm:$0xff]
  %v2740 = vld [vmem:[#allocation2 + $0x20] sm:$0xff]
  %2746 = vrot.lane.b32.xlu0 %v2736, 120
  %v2747 = vpop.permute.xlu0 %2746
  %2748 = vrot.lane.b32.xlu0 %v2737, 120
  %v2749 = vpop.permute.xlu0 %2748
  %2750 = vrot.lane.b32.xlu0 %v2738, 120
  %v2751 = vpop.permute.xlu0 %2750
  %2752 = vrot.lane.b32.xlu0 %v2739, 120
  %v2753 = vpop.permute.xlu0 %2752
  %2754 = vrot.lane.b32.xlu0 %v2740, 120
  %v2755 = vpop.permute.xlu0 %2754
  %vm2756 = vcmask 982016
  %v2757 = vsel %vm2756, %v2747, %v2749
  %v2758 = vsel %vm2756, %v2749, %v2751
  %v2759 = vsel %vm2756, %v2751, %v2753
  %v2760 = vsel %vm2756, %v2753, %v2755
  %2766 = vst [vmem:[#allocation3 + $0xa0] sm:$0xff] %v2757
  %2767 = vst [vmem:[#allocation3 + $0xa8] sm:$0xff] %v2758
  %2768 = vst [vmem:[#allocation3 + $0xb0] sm:$0xff] %v2759
  %2769 = vst [vmem:[#allocation3 + $0xb8] sm:$0xff] %v2760
  %2770 = vst.msk [vmem:[#allocation3 + $0xc0] sm:$0xff] %vm2631, %v2755
  %v2771 = vld [vmem:[#allocation2] sm:$0xff]
  %v2772 = vld [vmem:[#allocation2 + $0x8] sm:$0xff]
  %v2773 = vld [vmem:[#allocation2 + $0x10] sm:$0xff]
  %v2774 = vld [vmem:[#allocation2 + $0x18] sm:$0xff]
  %v2775 = vld [vmem:[#allocation2 + $0x20] sm:$0xff]
  %v2776 = vld [vmem:[#allocation2 + $0x28] sm:$0xff]
  %2783 = vrot.lane.b32.xlu0 %v2771, 96
  %v2784 = vpop.permute.xlu0 %2783
  %2785 = vrot.lane.b32.xlu0 %v2772, 96
  %v2786 = vpop.permute.xlu0 %2785
  %2787 = vrot.lane.b32.xlu0 %v2773, 96
  %v2788 = vpop.permute.xlu0 %2787
  %2789 = vrot.lane.b32.xlu0 %v2774, 96
  %v2790 = vpop.permute.xlu0 %2789
  %2791 = vrot.lane.b32.xlu0 %v2775, 96
  %v2792 = vpop.permute.xlu0 %2791
  %2793 = vrot.lane.b32.xlu0 %v2776, 96
  %v2794 = vpop.permute.xlu0 %2793
  %v2795 = vsel %vm882, %v2784, %v2786
  %v2796 = vsel %vm882, %v2786, %v2788
  %v2797 = vsel %vm882, %v2788, %v2790
  %v2798 = vsel %vm882, %v2790, %v2792
  %v2799 = vsel %vm882, %v2792, %v2794
  %2805 = vst [vmem:[#allocation3 + $0xc8] sm:$0xff] %v2795
  %2806 = vst [vmem:[#allocation3 + $0xd0] sm:$0xff] %v2796
  %2807 = vst [vmem:[#allocation3 + $0xd8] sm:$0xff] %v2797
  %2808 = vst [vmem:[#allocation3 + $0xe0] sm:$0xff] %v2798
  %2809 = vst.msk [vmem:[#allocation3 + $0xe8] sm:$0xff] %vm2631, %v2799
  %v2810 = vld [vmem:[#allocation2] sm:$0xff]
  %v2811 = vld [vmem:[#allocation2 + $0x8] sm:$0xff]
  %v2812 = vld [vmem:[#allocation2 + $0x10] sm:$0xff]
  %v2813 = vld [vmem:[#allocation2 + $0x18] sm:$0xff]
  %v2814 = vld [vmem:[#allocation2 + $0x20] sm:$0xff]
  %v2815 = vld [vmem:[#allocation2 + $0x28] sm:$0xff]
  %2822 = vrot.lane.b32.xlu0 %v2810, 94
  %v2823 = vpop.permute.xlu0 %2822
  %2824 = vrot.lane.b32.xlu0 %v2811, 94
  %v2825 = vpop.permute.xlu0 %2824
  %2826 = vrot.lane.b32.xlu0 %v2812, 94
  %v2827 = vpop.permute.xlu0 %2826
  %2828 = vrot.lane.b32.xlu0 %v2813, 94
  %v2829 = vpop.permute.xlu0 %2828
  %2830 = vrot.lane.b32.xlu0 %v2814, 94
  %v2831 = vpop.permute.xlu0 %2830
  %2832 = vrot.lane.b32.xlu0 %v2815, 94
  %v2833 = vpop.permute.xlu0 %2832
  %vm2834 = vcmask 769024
  %v2835 = vsel %vm2834, %v2823, %v2825
  %v2836 = vsel %vm2834, %v2825, %v2827
  %v2837 = vsel %vm2834, %v2827, %v2829
  %v2838 = vsel %vm2834, %v2829, %v2831
  %v2839 = vsel %vm2834, %v2831, %v2833
  %2845 = vst [vmem:[#allocation3 + $0xf0] sm:$0xff] %v2835
  %2846 = vst [vmem:[#allocation3 + $0xf8] sm:$0xff] %v2836
  %2847 = vst [vmem:[#allocation3 + $0x100] sm:$0xff] %v2837
  %2848 = vst [vmem:[#allocation3 + $0x108] sm:$0xff] %v2838
  %2849 = vst.msk [vmem:[#allocation3 + $0x110] sm:$0xff] %vm2631, %v2839
  %v2850 = vld [vmem:[#allocation2] sm:$0xff]
  %v2851 = vld [vmem:[#allocation2 + $0x8] sm:$0xff]
  %v2852 = vld [vmem:[#allocation2 + $0x10] sm:$0xff]
  %v2853 = vld [vmem:[#allocation2 + $0x18] sm:$0xff]
  %v2854 = vld [vmem:[#allocation2 + $0x20] sm:$0xff]
  %v2855 = vld [vmem:[#allocation2 + $0x28] sm:$0xff]
  %2862 = vrot.lane.b32.xlu0 %v2850, 92
  %v2863 = vpop.permute.xlu0 %2862
  %2864 = vrot.lane.b32.xlu0 %v2851, 92
  %v2865 = vpop.permute.xlu0 %2864
  %2866 = vrot.lane.b32.xlu0 %v2852, 92
  %v2867 = vpop.permute.xlu0 %2866
  %2868 = vrot.lane.b32.xlu0 %v2853, 92
  %v2869 = vpop.permute.xlu0 %2868
  %2870 = vrot.lane.b32.xlu0 %v2854, 92
  %v2871 = vpop.permute.xlu0 %2870
  %2872 = vrot.lane.b32.xlu0 %v2855, 92
  %v2873 = vpop.permute.xlu0 %2872
  %vm2874 = vcmask 752640
  %v2875 = vsel %vm2874, %v2863, %v2865
  %v2876 = vsel %vm2874, %v2865, %v2867
  %v2877 = vsel %vm2874, %v2867, %v2869
  %v2878 = vsel %vm2874, %v2869, %v2871
  %v2879 = vsel %vm2874, %v2871, %v2873
  %2885 = vst [vmem:[#allocation3 + $0x118] sm:$0xff] %v2875
  %2886 = vst [vmem:[#allocation3 + $0x120] sm:$0xff] %v2876
  %2887 = vst [vmem:[#allocation3 + $0x128] sm:$0xff] %v2877
  %2888 = vst [vmem:[#allocation3 + $0x130] sm:$0xff] %v2878
  %2889 = vst.msk [vmem:[#allocation3 + $0x138] sm:$0xff] %vm2631, %v2879
  %v2890 = vld [vmem:[#allocation2] sm:$0xff]
  %v2891 = vld [vmem:[#allocation2 + $0x8] sm:$0xff]
  %v2892 = vld [vmem:[#allocation2 + $0x10] sm:$0xff]
  %v2893 = vld [vmem:[#allocation2 + $0x18] sm:$0xff]
  %v2894 = vld [vmem:[#allocation2 + $0x20] sm:$0xff]
  %v2895 = vld [vmem:[#allocation2 + $0x28] sm:$0xff]
  %2902 = vrot.lane.b32.xlu0 %v2890, 90
  %v2903 = vpop.permute.xlu0 %2902
  %2904 = vrot.lane.b32.xlu0 %v2891, 90
  %v2905 = vpop.permute.xlu0 %2904
  %2906 = vrot.lane.b32.xlu0 %v2892, 90
  %v2907 = vpop.permute.xlu0 %2906
  %2908 = vrot.lane.b32.xlu0 %v2893, 90
  %v2909 = vpop.permute.xlu0 %2908
  %2910 = vrot.lane.b32.xlu0 %v2894, 90
  %v2911 = vpop.permute.xlu0 %2910
  %2912 = vrot.lane.b32.xlu0 %v2895, 90
  %v2913 = vpop.permute.xlu0 %2912
  %vm2914 = vcmask 736256
  %v2915 = vsel %vm2914, %v2903, %v2905
  %v2916 = vsel %vm2914, %v2905, %v2907
  %v2917 = vsel %vm2914, %v2907, %v2909
  %v2918 = vsel %vm2914, %v2909, %v2911
  %v2919 = vsel %vm2914, %v2911, %v2913
  %2925 = vst [vmem:[#allocation3 + $0x140] sm:$0xff] %v2915
  %2926 = vst [vmem:[#allocation3 + $0x148] sm:$0xff] %v2916
  %2927 = vst [vmem:[#allocation3 + $0x150] sm:$0xff] %v2917
  %2928 = vst [vmem:[#allocation3 + $0x158] sm:$0xff] %v2918
  %2929 = vst.msk [vmem:[#allocation3 + $0x160] sm:$0xff] %vm2631, %v2919
  %v2930 = vld [vmem:[#allocation2] sm:$0xff]
  %v2931 = vld [vmem:[#allocation2 + $0x8] sm:$0xff]
  %v2932 = vld [vmem:[#allocation2 + $0x10] sm:$0xff]
  %v2933 = vld [vmem:[#allocation2 + $0x18] sm:$0xff]
  %v2934 = vld [vmem:[#allocation2 + $0x20] sm:$0xff]
  %v2935 = vld [vmem:[#allocation2 + $0x28] sm:$0xff]
  %2942 = vrot.lane.b32.xlu0 %v2930, 88
  %v2943 = vpop.permute.xlu0 %2942
  %2944 = vrot.lane.b32.xlu0 %v2931, 88
  %v2945 = vpop.permute.xlu0 %2944
  %2946 = vrot.lane.b32.xlu0 %v2932, 88
  %v2947 = vpop.permute.xlu0 %2946
  %2948 = vrot.lane.b32.xlu0 %v2933, 88
  %v2949 = vpop.permute.xlu0 %2948
  %2950 = vrot.lane.b32.xlu0 %v2934, 88
  %v2951 = vpop.permute.xlu0 %2950
  %2952 = vrot.lane.b32.xlu0 %v2935, 88
  %v2953 = vpop.permute.xlu0 %2952
  %vm2954 = vcmask 719872
  %v2955 = vsel %vm2954, %v2943, %v2945
  %v2956 = vsel %vm2954, %v2945, %v2947
  %v2957 = vsel %vm2954, %v2947, %v2949
  %v2958 = vsel %vm2954, %v2949, %v2951
  %v2959 = vsel %vm2954, %v2951, %v2953
  %2965 = vst [vmem:[#allocation3 + $0x168] sm:$0xff] %v2955
  %2966 = vst [vmem:[#allocation3 + $0x170] sm:$0xff] %v2956
  %2967 = vst [vmem:[#allocation3 + $0x178] sm:$0xff] %v2957
  %2968 = vst [vmem:[#allocation3 + $0x180] sm:$0xff] %v2958
  %2969 = vst.msk [vmem:[#allocation3 + $0x188] sm:$0xff] %vm2631, %v2959
  %v2970 = vld [vmem:[#allocation2] sm:$0xff]
  %v2971 = vld [vmem:[#allocation2 + $0x8] sm:$0xff]
  %v2972 = vld [vmem:[#allocation2 + $0x10] sm:$0xff]
  %v2973 = vld [vmem:[#allocation2 + $0x18] sm:$0xff]
  %v2974 = vld [vmem:[#allocation2 + $0x20] sm:$0xff]
  %v2975 = vld [vmem:[#allocation2 + $0x28] sm:$0xff]
  %2982 = vrot.lane.b32.xlu0 %v2970, 64
  %v2983 = vpop.permute.xlu0 %2982
  %2984 = vrot.lane.b32.xlu0 %v2971, 64
  %v2985 = vpop.permute.xlu0 %2984
  %2986 = vrot.lane.b32.xlu0 %v2972, 64
  %v2987 = vpop.permute.xlu0 %2986
  %2988 = vrot.lane.b32.xlu0 %v2973, 64
  %v2989 = vpop.permute.xlu0 %2988
  %2990 = vrot.lane.b32.xlu0 %v2974, 64
  %v2991 = vpop.permute.xlu0 %2990
  %2992 = vrot.lane.b32.xlu0 %v2975, 64
  %v2993 = vpop.permute.xlu0 %2992
  %vm2994 = vcmask 523264
  %v2995 = vsel %vm2994, %v2983, %v2985
  %v2996 = vsel %vm2994, %v2985, %v2987
  %v2997 = vsel %vm2994, %v2987, %v2989
  %v2998 = vsel %vm2994, %v2989, %v2991
  %v2999 = vsel %vm2994, %v2991, %v2993
  %3005 = vst [vmem:[#allocation3 + $0x190] sm:$0xff] %v2995
  %3006 = vst [vmem:[#allocation3 + $0x198] sm:$0xff] %v2996
  %3007 = vst [vmem:[#allocation3 + $0x1a0] sm:$0xff] %v2997
  %3008 = vst [vmem:[#allocation3 + $0x1a8] sm:$0xff] %v2998
  %3009 = vst.msk [vmem:[#allocation3 + $0x1b0] sm:$0xff] %vm2631, %v2999
  %v3010 = vld [vmem:[#allocation2] sm:$0xff]
  %v3011 = vld [vmem:[#allocation2 + $0x8] sm:$0xff]
  %v3012 = vld [vmem:[#allocation2 + $0x10] sm:$0xff]
  %v3013 = vld [vmem:[#allocation2 + $0x18] sm:$0xff]
  %v3014 = vld [vmem:[#allocation2 + $0x20] sm:$0xff]
  %v3015 = vld [vmem:[#allocation2 + $0x28] sm:$0xff]
  %3022 = vrot.lane.b32.xlu0 %v3010, 62
  %v3023 = vpop.permute.xlu0 %3022
  %3024 = vrot.lane.b32.xlu0 %v3011, 62
  %v3025 = vpop.permute.xlu0 %3024
  %3026 = vrot.lane.b32.xlu0 %v3012, 62
  %v3027 = vpop.permute.xlu0 %3026
  %3028 = vrot.lane.b32.xlu0 %v3013, 62
  %v3029 = vpop.permute.xlu0 %3028
  %3030 = vrot.lane.b32.xlu0 %v3014, 62
  %v3031 = vpop.permute.xlu0 %3030
  %3032 = vrot.lane.b32.xlu0 %v3015, 62
  %v3033 = vpop.permute.xlu0 %3032
  %vm3034 = vcmask 506880
  %v3035 = vsel %vm3034, %v3023, %v3025
  %v3036 = vsel %vm3034, %v3025, %v3027
  %v3037 = vsel %vm3034, %v3027, %v3029
  %v3038 = vsel %vm3034, %v3029, %v3031
  %v3039 = vsel %vm3034, %v3031, %v3033
  %3045 = vst [vmem:[#allocation3 + $0x1b8] sm:$0xff] %v3035
  %3046 = vst [vmem:[#allocation3 + $0x1c0] sm:$0xff] %v3036
  %3047 = vst [vmem:[#allocation3 + $0x1c8] sm:$0xff] %v3037
  %3048 = vst [vmem:[#allocation3 + $0x1d0] sm:$0xff] %v3038
  %3049 = vst.msk [vmem:[#allocation3 + $0x1d8] sm:$0xff] %vm2631, %v3039
  %v3050 = vld [vmem:[#allocation2] sm:$0xff]
  %v3051 = vld [vmem:[#allocation2 + $0x8] sm:$0xff]
  %v3052 = vld [vmem:[#allocation2 + $0x10] sm:$0xff]
  %v3053 = vld [vmem:[#allocation2 + $0x18] sm:$0xff]
  %v3054 = vld [vmem:[#allocation2 + $0x20] sm:$0xff]
  %v3055 = vld [vmem:[#allocation2 + $0x28] sm:$0xff]
  %3062 = vrot.lane.b32.xlu0 %v3050, 60
  %v3063 = vpop.permute.xlu0 %3062
  %3064 = vrot.lane.b32.xlu0 %v3051, 60
  %v3065 = vpop.permute.xlu0 %3064
  %3066 = vrot.lane.b32.xlu0 %v3052, 60
  %v3067 = vpop.permute.xlu0 %3066
  %3068 = vrot.lane.b32.xlu0 %v3053, 60
  %v3069 = vpop.permute.xlu0 %3068
  %3070 = vrot.lane.b32.xlu0 %v3054, 60
  %v3071 = vpop.permute.xlu0 %3070
  %3072 = vrot.lane.b32.xlu0 %v3055, 60
  %v3073 = vpop.permute.xlu0 %3072
  %vm3074 = vcmask 490496
  %v3075 = vsel %vm3074, %v3063, %v3065
  %v3076 = vsel %vm3074, %v3065, %v3067
  %v3077 = vsel %vm3074, %v3067, %v3069
  %v3078 = vsel %vm3074, %v3069, %v3071
  %v3079 = vsel %vm3074, %v3071, %v3073
  %3085 = vst [vmem:[#allocation3 + $0x1e0] sm:$0xff] %v3075
  %3086 = vst [vmem:[#allocation3 + $0x1e8] sm:$0xff] %v3076
  %3087 = vst [vmem:[#allocation3 + $0x1f0] sm:$0xff] %v3077
  %3088 = vst [vmem:[#allocation3 + $0x1f8] sm:$0xff] %v3078
  %3089 = vst.msk [vmem:[#allocation3 + $0x200] sm:$0xff] %vm2631, %v3079
  %v3090 = vld [vmem:[#allocation2] sm:$0xff]
  %v3091 = vld [vmem:[#allocation2 + $0x8] sm:$0xff]
  %v3092 = vld [vmem:[#allocation2 + $0x10] sm:$0xff]
  %v3093 = vld [vmem:[#allocation2 + $0x18] sm:$0xff]
  %v3094 = vld [vmem:[#allocation2 + $0x20] sm:$0xff]
  %v3095 = vld [vmem:[#allocation2 + $0x28] sm:$0xff]
  %3102 = vrot.lane.b32.xlu0 %v3090, 58
  %v3103 = vpop.permute.xlu0 %3102
  %3104 = vrot.lane.b32.xlu0 %v3091, 58
  %v3105 = vpop.permute.xlu0 %3104
  %3106 = vrot.lane.b32.xlu0 %v3092, 58
  %v3107 = vpop.permute.xlu0 %3106
  %3108 = vrot.lane.b32.xlu0 %v3093, 58
  %v3109 = vpop.permute.xlu0 %3108
  %3110 = vrot.lane.b32.xlu0 %v3094, 58
  %v3111 = vpop.permute.xlu0 %3110
  %3112 = vrot.lane.b32.xlu0 %v3095, 58
  %v3113 = vpop.permute.xlu0 %3112
  %vm3114 = vcmask 474112
  %v3115 = vsel %vm3114, %v3103, %v3105
  %v3116 = vsel %vm3114, %v3105, %v3107
  %v3117 = vsel %vm3114, %v3107, %v3109
  %v3118 = vsel %vm3114, %v3109, %v3111
  %v3119 = vsel %vm3114, %v3111, %v3113
  %3125 = vst [vmem:[#allocation3 + $0x208] sm:$0xff] %v3115
  %3126 = vst [vmem:[#allocation3 + $0x210] sm:$0xff] %v3116
  %3127 = vst [vmem:[#allocation3 + $0x218] sm:$0xff] %v3117
  %3128 = vst [vmem:[#allocation3 + $0x220] sm:$0xff] %v3118
  %3129 = vst.msk [vmem:[#allocation3 + $0x228] sm:$0xff] %vm2631, %v3119
  %v3130 = vld [vmem:[#allocation2] sm:$0xff]
  %v3131 = vld [vmem:[#allocation2 + $0x8] sm:$0xff]
  %v3132 = vld [vmem:[#allocation2 + $0x10] sm:$0xff]
  %v3133 = vld [vmem:[#allocation2 + $0x18] sm:$0xff]
  %v3134 = vld [vmem:[#allocation2 + $0x20] sm:$0xff]
  %v3135 = vld [vmem:[#allocation2 + $0x28] sm:$0xff]
  %3142 = vrot.lane.b32.xlu0 %v3130, 56
  %v3143 = vpop.permute.xlu0 %3142
  %3144 = vrot.lane.b32.xlu0 %v3131, 56
  %v3145 = vpop.permute.xlu0 %3144
  %3146 = vrot.lane.b32.xlu0 %v3132, 56
  %v3147 = vpop.permute.xlu0 %3146
  %3148 = vrot.lane.b32.xlu0 %v3133, 56
  %v3149 = vpop.permute.xlu0 %3148
  %3150 = vrot.lane.b32.xlu0 %v3134, 56
  %v3151 = vpop.permute.xlu0 %3150
  %3152 = vrot.lane.b32.xlu0 %v3135, 56
  %v3153 = vpop.permute.xlu0 %3152
  %vm3154 = vcmask 457728
  %v3155 = vsel %vm3154, %v3143, %v3145
  %v3156 = vsel %vm3154, %v3145, %v3147
  %v3157 = vsel %vm3154, %v3147, %v3149
  %v3158 = vsel %vm3154, %v3149, %v3151
  %v3159 = vsel %vm3154, %v3151, %v3153
  %3165 = vst [vmem:[#allocation3 + $0x230] sm:$0xff] %v3155
  %3166 = vst [vmem:[#allocation3 + $0x238] sm:$0xff] %v3156
  %3167 = vst [vmem:[#allocation3 + $0x240] sm:$0xff] %v3157
  %3168 = vst [vmem:[#allocation3 + $0x248] sm:$0xff] %v3158
  %3169 = vst.msk [vmem:[#allocation3 + $0x250] sm:$0xff] %vm2631, %v3159
  %v3170 = vld [vmem:[#allocation2] sm:$0xff]
  %v3171 = vld [vmem:[#allocation2 + $0x8] sm:$0xff]
  %v3172 = vld [vmem:[#allocation2 + $0x10] sm:$0xff]
  %v3173 = vld [vmem:[#allocation2 + $0x18] sm:$0xff]
  %v3174 = vld [vmem:[#allocation2 + $0x20] sm:$0xff]
  %v3175 = vld [vmem:[#allocation2 + $0x28] sm:$0xff]
  %3182 = vrot.lane.b32.xlu0 %v3170, 32
  %v3183 = vpop.permute.xlu0 %3182
  %3184 = vrot.lane.b32.xlu0 %v3171, 32
  %v3185 = vpop.permute.xlu0 %3184
  %3186 = vrot.lane.b32.xlu0 %v3172, 32
  %v3187 = vpop.permute.xlu0 %3186
  %3188 = vrot.lane.b32.xlu0 %v3173, 32
  %v3189 = vpop.permute.xlu0 %3188
  %3190 = vrot.lane.b32.xlu0 %v3174, 32
  %v3191 = vpop.permute.xlu0 %3190
  %3192 = vrot.lane.b32.xlu0 %v3175, 32
  %v3193 = vpop.permute.xlu0 %3192
  %vm3194 = vcmask 261120
  %v3195 = vsel %vm3194, %v3183, %v3185
  %v3196 = vsel %vm3194, %v3185, %v3187
  %v3197 = vsel %vm3194, %v3187, %v3189
  %v3198 = vsel %vm3194, %v3189, %v3191
  %v3199 = vsel %vm3194, %v3191, %v3193
  %3205 = vst [vmem:[#allocation3 + $0x258] sm:$0xff] %v3195
  %3206 = vst [vmem:[#allocation3 + $0x260] sm:$0xff] %v3196
  %3207 = vst [vmem:[#allocation3 + $0x268] sm:$0xff] %v3197
  %3208 = vst [vmem:[#allocation3 + $0x270] sm:$0xff] %v3198
  %3209 = vst.msk [vmem:[#allocation3 + $0x278] sm:$0xff] %vm2631, %v3199
  %v3210 = vld [vmem:[#allocation2] sm:$0xff]
  %v3211 = vld [vmem:[#allocation2 + $0x8] sm:$0xff]
  %v3212 = vld [vmem:[#allocation2 + $0x10] sm:$0xff]
  %v3213 = vld [vmem:[#allocation2 + $0x18] sm:$0xff]
  %v3214 = vld [vmem:[#allocation2 + $0x20] sm:$0xff]
  %v3215 = vld [vmem:[#allocation2 + $0x28] sm:$0xff]
  %3222 = vrot.lane.b32.xlu0 %v3210, 30
  %v3223 = vpop.permute.xlu0 %3222
  %3224 = vrot.lane.b32.xlu0 %v3211, 30
  %v3225 = vpop.permute.xlu0 %3224
  %3226 = vrot.lane.b32.xlu0 %v3212, 30
  %v3227 = vpop.permute.xlu0 %3226
  %3228 = vrot.lane.b32.xlu0 %v3213, 30
  %v3229 = vpop.permute.xlu0 %3228
  %3230 = vrot.lane.b32.xlu0 %v3214, 30
  %v3231 = vpop.permute.xlu0 %3230
  %3232 = vrot.lane.b32.xlu0 %v3215, 30
  %v3233 = vpop.permute.xlu0 %3232
  %vm3234 = vcmask 244736
  %v3235 = vsel %vm3234, %v3223, %v3225
  %v3236 = vsel %vm3234, %v3225, %v3227
  %v3237 = vsel %vm3234, %v3227, %v3229
  %v3238 = vsel %vm3234, %v3229, %v3231
  %v3239 = vsel %vm3234, %v3231, %v3233
  %3245 = vst [vmem:[#allocation3 + $0x280] sm:$0xff] %v3235
  %3246 = vst [vmem:[#allocation3 + $0x288] sm:$0xff] %v3236
  %3247 = vst [vmem:[#allocation3 + $0x290] sm:$0xff] %v3237
  %3248 = vst [vmem:[#allocation3 + $0x298] sm:$0xff] %v3238
  %3249 = vst.msk [vmem:[#allocation3 + $0x2a0] sm:$0xff] %vm2631, %v3239
  %v3250 = vld [vmem:[#allocation2] sm:$0xff]
  %v3251 = vld [vmem:[#allocation2 + $0x8] sm:$0xff]
  %v3252 = vld [vmem:[#allocation2 + $0x10] sm:$0xff]
  %v3253 = vld [vmem:[#allocation2 + $0x18] sm:$0xff]
  %v3254 = vld [vmem:[#allocation2 + $0x20] sm:$0xff]
  %v3255 = vld [vmem:[#allocation2 + $0x28] sm:$0xff]
  %3262 = vrot.lane.b32.xlu0 %v3250, 28
  %v3263 = vpop.permute.xlu0 %3262
  %3264 = vrot.lane.b32.xlu0 %v3251, 28
  %v3265 = vpop.permute.xlu0 %3264
  %3266 = vrot.lane.b32.xlu0 %v3252, 28
  %v3267 = vpop.permute.xlu0 %3266
  %3268 = vrot.lane.b32.xlu0 %v3253, 28
  %v3269 = vpop.permute.xlu0 %3268
  %3270 = vrot.lane.b32.xlu0 %v3254, 28
  %v3271 = vpop.permute.xlu0 %3270
  %3272 = vrot.lane.b32.xlu0 %v3255, 28
  %v3273 = vpop.permute.xlu0 %3272
  %vm3274 = vcmask 228352
  %v3275 = vsel %vm3274, %v3263, %v3265
  %v3276 = vsel %vm3274, %v3265, %v3267
  %v3277 = vsel %vm3274, %v3267, %v3269
  %v3278 = vsel %vm3274, %v3269, %v3271
  %v3279 = vsel %vm3274, %v3271, %v3273
  %3285 = vst [vmem:[#allocation3 + $0x2a8] sm:$0xff] %v3275
  %3286 = vst [vmem:[#allocation3 + $0x2b0] sm:$0xff] %v3276
  %3287 = vst [vmem:[#allocation3 + $0x2b8] sm:$0xff] %v3277
  %3288 = vst [vmem:[#allocation3 + $0x2c0] sm:$0xff] %v3278
  %3289 = vst.msk [vmem:[#allocation3 + $0x2c8] sm:$0xff] %vm2631, %v3279
  %v3290 = vld [vmem:[#allocation2] sm:$0xff]
  %v3291 = vld [vmem:[#allocation2 + $0x8] sm:$0xff]
  %v3292 = vld [vmem:[#allocation2 + $0x10] sm:$0xff]
  %v3293 = vld [vmem:[#allocation2 + $0x18] sm:$0xff]
  %v3294 = vld [vmem:[#allocation2 + $0x20] sm:$0xff]
  %v3295 = vld [vmem:[#allocation2 + $0x28] sm:$0xff]
  %3302 = vrot.lane.b32.xlu0 %v3290, 26
  %v3303 = vpop.permute.xlu0 %3302
  %3304 = vrot.lane.b32.xlu0 %v3291, 26
  %v3305 = vpop.permute.xlu0 %3304
  %3306 = vrot.lane.b32.xlu0 %v3292, 26
  %v3307 = vpop.permute.xlu0 %3306
  %3308 = vrot.lane.b32.xlu0 %v3293, 26
  %v3309 = vpop.permute.xlu0 %3308
  %3310 = vrot.lane.b32.xlu0 %v3294, 26
  %v3311 = vpop.permute.xlu0 %3310
  %3312 = vrot.lane.b32.xlu0 %v3295, 26
  %v3313 = vpop.permute.xlu0 %3312
  %vm3314 = vcmask 211968
  %v3315 = vsel %vm3314, %v3303, %v3305
  %v3316 = vsel %vm3314, %v3305, %v3307
  %v3317 = vsel %vm3314, %v3307, %v3309
  %v3318 = vsel %vm3314, %v3309, %v3311
  %v3319 = vsel %vm3314, %v3311, %v3313
  %3325 = vst [vmem:[#allocation3 + $0x2d0] sm:$0xff] %v3315
  %3326 = vst [vmem:[#allocation3 + $0x2d8] sm:$0xff] %v3316
  %3327 = vst [vmem:[#allocation3 + $0x2e0] sm:$0xff] %v3317
  %3328 = vst [vmem:[#allocation3 + $0x2e8] sm:$0xff] %v3318
  %3329 = vst.msk [vmem:[#allocation3 + $0x2f0] sm:$0xff] %vm2631, %v3319
  %v3330 = vld [vmem:[#allocation2] sm:$0xff]
  %v3331 = vld [vmem:[#allocation2 + $0x8] sm:$0xff]
  %v3332 = vld [vmem:[#allocation2 + $0x10] sm:$0xff]
  %v3333 = vld [vmem:[#allocation2 + $0x18] sm:$0xff]
  %v3334 = vld [vmem:[#allocation2 + $0x20] sm:$0xff]
  %v3335 = vld [vmem:[#allocation2 + $0x28] sm:$0xff]
  %3342 = vrot.lane.b32.xlu0 %v3330, 24
  %v3343 = vpop.permute.xlu0 %3342
  %3344 = vrot.lane.b32.xlu0 %v3331, 24
  %v3345 = vpop.permute.xlu0 %3344
  %3346 = vrot.lane.b32.xlu0 %v3332, 24
  %v3347 = vpop.permute.xlu0 %3346
  %3348 = vrot.lane.b32.xlu0 %v3333, 24
  %v3349 = vpop.permute.xlu0 %3348
  %3350 = vrot.lane.b32.xlu0 %v3334, 24
  %v3351 = vpop.permute.xlu0 %3350
  %3352 = vrot.lane.b32.xlu0 %v3335, 24
  %v3353 = vpop.permute.xlu0 %3352
  %vm3354 = vcmask 195584
  %v3355 = vsel %vm3354, %v3343, %v3345
  %v3356 = vsel %vm3354, %v3345, %v3347
  %v3357 = vsel %vm3354, %v3347, %v3349
  %v3358 = vsel %vm3354, %v3349, %v3351
  %v3359 = vsel %vm3354, %v3351, %v3353
  %3365 = vst [vmem:[#allocation3 + $0x2f8] sm:$0xff] %v3355
  %3366 = vst [vmem:[#allocation3 + $0x300] sm:$0xff] %v3356
  %3367 = vst [vmem:[#allocation3 + $0x308] sm:$0xff] %v3357
  %3368 = vst [vmem:[#allocation3 + $0x310] sm:$0xff] %v3358
  %3369 = vst.msk [vmem:[#allocation3 + $0x318] sm:$0xff] %vm2631, %v3359
  %v3370 = vld [vmem:[#allocation2 + $0x8] sm:$0xff]
  %v3371 = vld [vmem:[#allocation2 + $0x10] sm:$0xff]
  %v3372 = vld [vmem:[#allocation2 + $0x18] sm:$0xff]
  %v3373 = vld [vmem:[#allocation2 + $0x20] sm:$0xff]
  %v3374 = vld [vmem:[#allocation2 + $0x28] sm:$0xff]
  %3375 = vst [vmem:[#allocation3 + $0x320] sm:$0xff] %v3370
  %3376 = vst [vmem:[#allocation3 + $0x328] sm:$0xff] %v3371
  %3377 = vst [vmem:[#allocation3 + $0x330] sm:$0xff] %v3372
  %3378 = vst [vmem:[#allocation3 + $0x338] sm:$0xff] %v3373
  %3379 = vst.msk [vmem:[#allocation3 + $0x340] sm:$0xff] %vm2631, %v3374
  %v3380 = vld [vmem:[#allocation2 + $0x8] sm:$0xff]
  %v3381 = vld [vmem:[#allocation2 + $0x10] sm:$0xff]
  %v3382 = vld [vmem:[#allocation2 + $0x18] sm:$0xff]
  %v3383 = vld [vmem:[#allocation2 + $0x20] sm:$0xff]
  %v3384 = vld [vmem:[#allocation2 + $0x28] sm:$0xff]
  %3390 = vrot.lane.b32.xlu0 %v3380, 126
  %v3391 = vpop.permute.xlu0 %3390
  %3392 = vrot.lane.b32.xlu0 %v3381, 126
  %v3393 = vpop.permute.xlu0 %3392
  %3394 = vrot.lane.b32.xlu0 %v3382, 126
  %v3395 = vpop.permute.xlu0 %3394
  %3396 = vrot.lane.b32.xlu0 %v3383, 126
  %v3397 = vpop.permute.xlu0 %3396
  %3398 = vrot.lane.b32.xlu0 %v3384, 126
  %v3399 = vpop.permute.xlu0 %3398
  %v3400 = vsel %vm266, %v3391, %v3393
  %v3401 = vsel %vm266, %v3393, %v3395
  %v3402 = vsel %vm266, %v3395, %v3397
  %v3403 = vsel %vm266, %v3397, %v3399
  %3409 = vst [vmem:[#allocation3 + $0x348] sm:$0xff] %v3400
  %3410 = vst [vmem:[#allocation3 + $0x350] sm:$0xff] %v3401
  %3411 = vst [vmem:[#allocation3 + $0x358] sm:$0xff] %v3402
  %3412 = vst [vmem:[#allocation3 + $0x360] sm:$0xff] %v3403
  %3413 = vst.msk [vmem:[#allocation3 + $0x368] sm:$0xff] %vm2631, %v3399
  %v3414 = vld [vmem:[#allocation2 + $0x8] sm:$0xff]
  %v3415 = vld [vmem:[#allocation2 + $0x10] sm:$0xff]
  %v3416 = vld [vmem:[#allocation2 + $0x18] sm:$0xff]
  %v3417 = vld [vmem:[#allocation2 + $0x20] sm:$0xff]
  %v3418 = vld [vmem:[#allocation2 + $0x28] sm:$0xff]
  %3424 = vrot.lane.b32.xlu0 %v3414, 124
  %v3425 = vpop.permute.xlu0 %3424
  %3426 = vrot.lane.b32.xlu0 %v3415, 124
  %v3427 = vpop.permute.xlu0 %3426
  %3428 = vrot.lane.b32.xlu0 %v3416, 124
  %v3429 = vpop.permute.xlu0 %3428
  %3430 = vrot.lane.b32.xlu0 %v3417, 124
  %v3431 = vpop.permute.xlu0 %3430
  %3432 = vrot.lane.b32.xlu0 %v3418, 124
  %v3433 = vpop.permute.xlu0 %3432
  %v3434 = vsel %vm442, %v3425, %v3427
  %v3435 = vsel %vm442, %v3427, %v3429
  %v3436 = vsel %vm442, %v3429, %v3431
  %v3437 = vsel %vm442, %v3431, %v3433
  %3443 = vst [vmem:[#allocation3 + $0x370] sm:$0xff] %v3434
  %3444 = vst [vmem:[#allocation3 + $0x378] sm:$0xff] %v3435
  %3445 = vst [vmem:[#allocation3 + $0x380] sm:$0xff] %v3436
  %3446 = vst [vmem:[#allocation3 + $0x388] sm:$0xff] %v3437
  %3447 = vst.msk [vmem:[#allocation3 + $0x390] sm:$0xff] %vm2631, %v3433
  %v3448 = vld [vmem:[#allocation2 + $0x8] sm:$0xff]
  %v3449 = vld [vmem:[#allocation2 + $0x10] sm:$0xff]
  %v3450 = vld [vmem:[#allocation2 + $0x18] sm:$0xff]
  %v3451 = vld [vmem:[#allocation2 + $0x20] sm:$0xff]
  %v3452 = vld [vmem:[#allocation2 + $0x28] sm:$0xff]
  %3458 = vrot.lane.b32.xlu0 %v3448, 122
  %v3459 = vpop.permute.xlu0 %3458
  %3460 = vrot.lane.b32.xlu0 %v3449, 122
  %v3461 = vpop.permute.xlu0 %3460
  %3462 = vrot.lane.b32.xlu0 %v3450, 122
  %v3463 = vpop.permute.xlu0 %3462
  %3464 = vrot.lane.b32.xlu0 %v3451, 122
  %v3465 = vpop.permute.xlu0 %3464
  %3466 = vrot.lane.b32.xlu0 %v3452, 122
  %v3467 = vpop.permute.xlu0 %3466
  %v3468 = vsel %vm2721, %v3459, %v3461
  %v3469 = vsel %vm2721, %v3461, %v3463
  %v3470 = vsel %vm2721, %v3463, %v3465
  %v3471 = vsel %vm2721, %v3465, %v3467
  %3477 = vst [vmem:[#allocation3 + $0x398] sm:$0xff] %v3468
  %3478 = vst [vmem:[#allocation3 + $0x3a0] sm:$0xff] %v3469
  %3479 = vst [vmem:[#allocation3 + $0x3a8] sm:$0xff] %v3470
  %3480 = vst [vmem:[#allocation3 + $0x3b0] sm:$0xff] %v3471
  %3481 = vst.msk [vmem:[#allocation3 + $0x3b8] sm:$0xff] %vm2631, %v3467
  %v3482 = vld [vmem:[#allocation2 + $0x8] sm:$0xff]
  %v3483 = vld [vmem:[#allocation2 + $0x10] sm:$0xff]
  %v3484 = vld [vmem:[#allocation2 + $0x18] sm:$0xff]
  %v3485 = vld [vmem:[#allocation2 + $0x20] sm:$0xff]
  %v3486 = vld [vmem:[#allocation2 + $0x28] sm:$0xff]
  %3492 = vrot.lane.b32.xlu0 %v3482, 120
  %v3493 = vpop.permute.xlu0 %3492
  %3494 = vrot.lane.b32.xlu0 %v3483, 120
  %v3495 = vpop.permute.xlu0 %3494
  %3496 = vrot.lane.b32.xlu0 %v3484, 120
  %v3497 = vpop.permute.xlu0 %3496
  %3498 = vrot.lane.b32.xlu0 %v3485, 120
  %v3499 = vpop.permute.xlu0 %3498
  %3500 = vrot.lane.b32.xlu0 %v3486, 120
  %v3501 = vpop.permute.xlu0 %3500
  %v3502 = vsel %vm2756, %v3493, %v3495
  %v3503 = vsel %vm2756, %v3495, %v3497
  %v3504 = vsel %vm2756, %v3497, %v3499
  %v3505 = vsel %vm2756, %v3499, %v3501
  %3511 = vst [vmem:[#allocation3 + $0x3c0] sm:$0xff] %v3502
  %3512 = vst [vmem:[#allocation3 + $0x3c8] sm:$0xff] %v3503
  %3513 = vst [vmem:[#allocation3 + $0x3d0] sm:$0xff] %v3504
  %3514 = vst [vmem:[#allocation3 + $0x3d8] sm:$0xff] %v3505
  %3515 = vst.msk [vmem:[#allocation3 + $0x3e0] sm:$0xff] %vm2631, %v3501
  %v3516 = vld [vmem:[%s2] sm:$0xff]
  %v3517 = vld [vmem:[%s2 + $0x8] sm:$0xff]
  %v3518 = vld [vmem:[%s2 + $0x10] sm:$0xff]
  %v3519 = vld [vmem:[%s2 + $0x18] sm:$0xff]
  %v3520 = vld [vmem:[#allocation3] sm:$0xff]
  %v3521 = vld [vmem:[#allocation3 + $0x8] sm:$0xff]
  %v3522 = vld [vmem:[#allocation3 + $0x10] sm:$0xff]
  %v3523 = vld [vmem:[#allocation3 + $0x18] sm:$0xff]
  %v3524 = vld [vmem:[#allocation3 + $0x20] sm:$0xff]
  %v3525 = vld [vmem:[#allocation3 + $0x28] sm:$0xff]
  %v3526 = vld [vmem:[#allocation3 + $0x30] sm:$0xff]
  %v3527 = vld [vmem:[#allocation3 + $0x38] sm:$0xff]
  %v3528 = vld [vmem:[#allocation3 + $0x40] sm:$0xff]
  %v3529 = vld [vmem:[#allocation3 + $0x48] sm:$0xff]
  %v3530 = vld [vmem:[#allocation3 + $0x50] sm:$0xff]
  %v3531 = vld [vmem:[#allocation3 + $0x58] sm:$0xff]
  %v3532 = vld [vmem:[#allocation3 + $0x60] sm:$0xff]
  %v3533 = vld [vmem:[#allocation3 + $0x68] sm:$0xff]
  %v3534 = vld [vmem:[#allocation3 + $0x70] sm:$0xff]
  %v3535 = vld [vmem:[#allocation3 + $0x78] sm:$0xff]
  %v3536 = vld [vmem:[#allocation3 + $0x80] sm:$0xff]
  %v3537 = vld [vmem:[#allocation3 + $0x88] sm:$0xff]
  %v3538 = vld [vmem:[#allocation3 + $0x90] sm:$0xff]
  %v3539 = vld [vmem:[#allocation3 + $0x98] sm:$0xff]
  %v3540 = vld [vmem:[#allocation3 + $0xa0] sm:$0xff]
  %v3541 = vld [vmem:[#allocation3 + $0xa8] sm:$0xff]
  %v3542 = vld [vmem:[#allocation3 + $0xb0] sm:$0xff]
  %v3543 = vld [vmem:[#allocation3 + $0xb8] sm:$0xff]
  %v3544 = vld [vmem:[#allocation3 + $0xc0] sm:$0xff]
  %v3545 = vld [vmem:[#allocation3 + $0xc8] sm:$0xff]
  %v3546 = vld [vmem:[#allocation3 + $0xd0] sm:$0xff]
  %v3547 = vld [vmem:[#allocation3 + $0xd8] sm:$0xff]
  %v3548 = vld [vmem:[#allocation3 + $0xe0] sm:$0xff]
  %v3549 = vld [vmem:[#allocation3 + $0xe8] sm:$0xff]
  %v3550 = vld [vmem:[#allocation3 + $0xf0] sm:$0xff]
  %v3551 = vld [vmem:[#allocation3 + $0xf8] sm:$0xff]
  %v3552 = vld [vmem:[#allocation3 + $0x100] sm:$0xff]
  %v3553 = vld [vmem:[#allocation3 + $0x108] sm:$0xff]
  %v3554 = vld [vmem:[#allocation3 + $0x110] sm:$0xff]
  %v3555 = vld [vmem:[#allocation3 + $0x118] sm:$0xff]
  %v3556 = vld [vmem:[#allocation3 + $0x120] sm:$0xff]
  %v3557 = vld [vmem:[#allocation3 + $0x128] sm:$0xff]
  %v3558 = vld [vmem:[#allocation3 + $0x130] sm:$0xff]
  %v3559 = vld [vmem:[#allocation3 + $0x138] sm:$0xff]
  %v3560 = vld [vmem:[#allocation3 + $0x140] sm:$0xff]
  %v3561 = vld [vmem:[#allocation3 + $0x148] sm:$0xff]
  %v3562 = vld [vmem:[#allocation3 + $0x150] sm:$0xff]
  %v3563 = vld [vmem:[#allocation3 + $0x158] sm:$0xff]
  %v3564 = vld [vmem:[#allocation3 + $0x160] sm:$0xff]
  %v3565 = vld [vmem:[#allocation3 + $0x168] sm:$0xff]
  %v3566 = vld [vmem:[#allocation3 + $0x170] sm:$0xff]
  %v3567 = vld [vmem:[#allocation3 + $0x178] sm:$0xff]
  %v3568 = vld [vmem:[#allocation3 + $0x180] sm:$0xff]
  %v3569 = vld [vmem:[#allocation3 + $0x188] sm:$0xff]
  %v3570 = vld [vmem:[#allocation3 + $0x190] sm:$0xff]
  %v3571 = vld [vmem:[#allocation3 + $0x198] sm:$0xff]
  %v3572 = vld [vmem:[#allocation3 + $0x1a0] sm:$0xff]
  %v3573 = vld [vmem:[#allocation3 + $0x1a8] sm:$0xff]
  %v3574 = vld [vmem:[#allocation3 + $0x1b0] sm:$0xff]
  %v3575 = vld [vmem:[#allocation3 + $0x1b8] sm:$0xff]
  %v3576 = vld [vmem:[#allocation3 + $0x1c0] sm:$0xff]
  %v3577 = vld [vmem:[#allocation3 + $0x1c8] sm:$0xff]
  %v3578 = vld [vmem:[#allocation3 + $0x1d0] sm:$0xff]
  %v3579 = vld [vmem:[#allocation3 + $0x1d8] sm:$0xff]
  %v3580 = vld [vmem:[#allocation3 + $0x1e0] sm:$0xff]
  %v3581 = vld [vmem:[#allocation3 + $0x1e8] sm:$0xff]
  %v3582 = vld [vmem:[#allocation3 + $0x1f0] sm:$0xff]
  %v3583 = vld [vmem:[#allocation3 + $0x1f8] sm:$0xff]
  %v3584 = vld [vmem:[#allocation3 + $0x200] sm:$0xff]
  %v3585 = vld [vmem:[#allocation3 + $0x208] sm:$0xff]
  %v3586 = vld [vmem:[#allocation3 + $0x210] sm:$0xff]
  %v3587 = vld [vmem:[#allocation3 + $0x218] sm:$0xff]
  %v3588 = vld [vmem:[#allocation3 + $0x220] sm:$0xff]
  %v3589 = vld [vmem:[#allocation3 + $0x228] sm:$0xff]
  %v3590 = vld [vmem:[#allocation3 + $0x230] sm:$0xff]
  %v3591 = vld [vmem:[#allocation3 + $0x238] sm:$0xff]
  %v3592 = vld [vmem:[#allocation3 + $0x240] sm:$0xff]
  %v3593 = vld [vmem:[#allocation3 + $0x248] sm:$0xff]
  %v3594 = vld [vmem:[#allocation3 + $0x250] sm:$0xff]
  %v3595 = vld [vmem:[#allocation3 + $0x258] sm:$0xff]
  %v3596 = vld [vmem:[#allocation3 + $0x260] sm:$0xff]
  %v3597 = vld [vmem:[#allocation3 + $0x268] sm:$0xff]
  %v3598 = vld [vmem:[#allocation3 + $0x270] sm:$0xff]
  %v3599 = vld [vmem:[#allocation3 + $0x278] sm:$0xff]
  %v3600 = vld [vmem:[#allocation3 + $0x280] sm:$0xff]
  %v3601 = vld [vmem:[#allocation3 + $0x288] sm:$0xff]
  %v3602 = vld [vmem:[#allocation3 + $0x290] sm:$0xff]
  %v3603 = vld [vmem:[#allocation3 + $0x298] sm:$0xff]
  %v3604 = vld [vmem:[#allocation3 + $0x2a0] sm:$0xff]
  %v3605 = vld [vmem:[#allocation3 + $0x2a8] sm:$0xff]
  %v3606 = vld [vmem:[#allocation3 + $0x2b0] sm:$0xff]
  %v3607 = vld [vmem:[#allocation3 + $0x2b8] sm:$0xff]
  %v3608 = vld [vmem:[#allocation3 + $0x2c0] sm:$0xff]
  %v3609 = vld [vmem:[#allocation3 + $0x2c8] sm:$0xff]
  %v3610 = vld [vmem:[#allocation3 + $0x2d0] sm:$0xff]
  %v3611 = vld [vmem:[#allocation3 + $0x2d8] sm:$0xff]
  %v3612 = vld [vmem:[#allocation3 + $0x2e0] sm:$0xff]
  %v3613 = vld [vmem:[#allocation3 + $0x2e8] sm:$0xff]
  %v3614 = vld [vmem:[#allocation3 + $0x2f0] sm:$0xff]
  %v3615 = vld [vmem:[#allocation3 + $0x2f8] sm:$0xff]
  %v3616 = vld [vmem:[#allocation3 + $0x300] sm:$0xff]
  %v3617 = vld [vmem:[#allocation3 + $0x308] sm:$0xff]
  %v3618 = vld [vmem:[#allocation3 + $0x310] sm:$0xff]
  %v3619 = vld [vmem:[#allocation3 + $0x318] sm:$0xff]
  %v3620 = vld [vmem:[#allocation3 + $0x320] sm:$0xff]
  %v3621 = vld [vmem:[#allocation3 + $0x328] sm:$0xff]
  %v3622 = vld [vmem:[#allocation3 + $0x330] sm:$0xff]
  %v3623 = vld [vmem:[#allocation3 + $0x338] sm:$0xff]
  %v3624 = vld [vmem:[#allocation3 + $0x340] sm:$0xff]
  %v3625 = vld [vmem:[#allocation3 + $0x348] sm:$0xff]
  %v3626 = vld [vmem:[#allocation3 + $0x350] sm:$0xff]
  %v3627 = vld [vmem:[#allocation3 + $0x358] sm:$0xff]
  %v3628 = vld [vmem:[#allocation3 + $0x360] sm:$0xff]
  %v3629 = vld [vmem:[#allocation3 + $0x368] sm:$0xff]
  %v3630 = vld [vmem:[#allocation3 + $0x370] sm:$0xff]
  %v3631 = vld [vmem:[#allocation3 + $0x378] sm:$0xff]
  %v3632 = vld [vmem:[#allocation3 + $0x380] sm:$0xff]
  %v3633 = vld [vmem:[#allocation3 + $0x388] sm:$0xff]
  %v3634 = vld [vmem:[#allocation3 + $0x390] sm:$0xff]
  %v3635 = vld [vmem:[#allocation3 + $0x398] sm:$0xff]
  %v3636 = vld [vmem:[#allocation3 + $0x3a0] sm:$0xff]
  %v3637 = vld [vmem:[#allocation3 + $0x3a8] sm:$0xff]
  %v3638 = vld [vmem:[#allocation3 + $0x3b0] sm:$0xff]
  %v3639 = vld [vmem:[#allocation3 + $0x3b8] sm:$0xff]
  %v3640 = vld [vmem:[#allocation3 + $0x3c0] sm:$0xff]
  %v3641 = vld [vmem:[#allocation3 + $0x3c8] sm:$0xff]
  %v3642 = vld [vmem:[#allocation3 + $0x3d0] sm:$0xff]
  %v3643 = vld [vmem:[#allocation3 + $0x3d8] sm:$0xff]
  %v3644 = vld [vmem:[#allocation3 + $0x3e0] sm:$0xff]
  %3646 = vset.pattern.permute.xlu0 1
  %3647 = vperm.xlu0 %3646, %v27
  %v3648 = vpop.permute.xlu0 %3647
  %3651 = vset.pattern.permute.xlu0 1
  %3652 = vperm.xlu0 %3651, %v28
  %v3653 = vpop.permute.xlu0 %3652
  %v3656 = vsel %vm970, %v3517, 0
  %v3659 = vsel %vm970, %v3519, 0
  %3661 = vmatprep.subr.mxu0 %v3596
  %3662 = vmatpush1.msra.mxu0 %v3595
  %3663 = vmatprep.subr.mxu0 %v3591
  %3664 = vmatpush1.msra.mxu0 %v3590
  %3665 = vmatprep.subr.mxu0 %v3586
  %3666 = vmatpush1.msra.mxu0 %v3585
  %3667 = vmatprep.subr.mxu0 %v3581
  %3668 = vmatpush1.msra.mxu0 %v3580
  %3669 = vmatprep.subr.mxu0 %v3576
  %3670 = vmatpush1.msra.mxu0 %v3575
  %3671 = vmatprep.subr.mxu0 %v3571
  %3672 = vmatpush1.msra.mxu0 %v3570
  %3673 = vmatprep.subr.mxu0 %v3566
  %3674 = vmatpush1.msra.mxu0 %v3565
  %3675 = vmatprep.subr.mxu0 %v3561
  %3676 = vmatpush1.msra.mxu0 %v3560
  %3677 = vmatprep.subr.mxu0 %v3556
  %3678 = vmatpush1.msra.mxu0 %v3555
  %3679 = vmatprep.subr.mxu0 %v3551
  %3680 = vmatpush1.msra.mxu0 %v3550
  %3681 = vmatprep.subr.mxu0 %v3546
  %3682 = vmatpush1.msra.mxu0 %v3545
  %3683 = vmatprep.subr.mxu0 %v3541
  %3684 = vmatpush1.msra.mxu0 %v3540
  %3685 = vmatprep.subr.mxu0 %v3536
  %3686 = vmatpush1.msra.mxu0 %v3535
  %3687 = vmatprep.subr.mxu0 %v3531
  %3688 = vmatpush1.msra.mxu0 %v3530
  %3689 = vmatprep.subr.mxu0 %v3526
  %3690 = vmatpush1.msra.mxu0 %v3525
  %3691 = vmatprep.subr.mxu0 %v3521
  %3692 = vmatpush1.msra.mxu0 %v3520
  %3693 = vmatprep.subr.mxu0 0.0
  %3694 = vmatpush2.msra.mxu0 0.0
  %3695 = vmatprep.subr.mxu0 0.0
  %3696 = vmatpush2.msra.mxu0 0.0
  %3697 = vmatprep.subr.mxu0 0.0
  %3698 = vmatpush2.msra.mxu0 0.0
  %3699 = vmatprep.subr.mxu0 0.0
  %3700 = vmatpush2.msra.mxu0 0.0
  %3701 = vmatprep.subr.mxu0 0.0
  %3702 = vmatpush2.msra.mxu0 0.0
  %3703 = vmatprep.subr.mxu0 0.0
  %3704 = vmatpush2.msra.mxu0 0.0
  %3705 = vmatprep.subr.mxu0 0.0
  %3706 = vmatpush2.msra.mxu0 0.0
  %3707 = vmatprep.subr.mxu0 %v3641
  %3708 = vmatpush2.msra.mxu0 %v3640
  %3709 = vmatprep.subr.mxu0 %v3636
  %3710 = vmatpush2.msra.mxu0 %v3635
  %3711 = vmatprep.subr.mxu0 %v3631
  %3712 = vmatpush2.msra.mxu0 %v3630
  %3713 = vmatprep.subr.mxu0 %v3626
  %3714 = vmatpush2.msra.mxu0 %v3625
  %3715 = vmatprep.subr.mxu0 %v3621
  %3716 = vmatpush2.msra.mxu0 %v3620
  %3717 = vmatprep.subr.mxu0 %v3616
  %3718 = vmatpush2.msra.mxu0 %v3615
  %3719 = vmatprep.subr.mxu0 %v3611
  %3720 = vmatpush2.msra.mxu0 %v3610
  %3721 = vmatprep.subr.mxu0 %v3606
  %3722 = vmatpush2.msra.mxu0 %v3605
  %3723 = vmatprep.subr.mxu0 %v3601
  %3724 = vmatpush2.msra.mxu0 %v3600
  %3725 = vmatprep.mubr.f32.mxu0 %v3656
  %3726 = vmatmul.mubr.f32.gmra.mxu0 %v3516
  %v3727 = vpop.f32.mrf.mxu0
  %v3728 = vadd.f32 %v3648, %v3727
  %v3729 = vpop.f32.mrf.mxu0
  %v3730 = vadd.f32 %v3648, %v3729
  %3731 = vmatprep.mubr.f32.mxu0 %v3659
  %3732 = vmatmul.mubr.f32.gmra.mxu0 %v3518
  %v3733 = vpop.f32.mrf.mxu0
  %v3734 = vadd.f32 %v3653, %v3733
  %v3735 = vpop.f32.mrf.mxu0
  %v3736 = vadd.f32 %v3653, %v3735
  %3737 = vdwg.mxu0
  %3738 = vmatprep.subr.mxu0 %v3598
  %3739 = vmatpush1.msra.mxu0 %v3597
  %3740 = vmatprep.subr.mxu0 %v3593
  %3741 = vmatpush1.msra.mxu0 %v3592
  %3742 = vmatprep.subr.mxu0 %v3588
  %3743 = vmatpush1.msra.mxu0 %v3587
  %3744 = vmatprep.subr.mxu0 %v3583
  %3745 = vmatpush1.msra.mxu0 %v3582
  %3746 = vmatprep.subr.mxu0 %v3578
  %3747 = vmatpush1.msra.mxu0 %v3577
  %3748 = vmatprep.subr.mxu0 %v3573
  %3749 = vmatpush1.msra.mxu0 %v3572
  %3750 = vmatprep.subr.mxu0 %v3568
  %3751 = vmatpush1.msra.mxu0 %v3567
  %3752 = vmatprep.subr.mxu0 %v3563
  %3753 = vmatpush1.msra.mxu0 %v3562
  %3754 = vmatprep.subr.mxu0 %v3558
  %3755 = vmatpush1.msra.mxu0 %v3557
  %3756 = vmatprep.subr.mxu0 %v3553
  %3757 = vmatpush1.msra.mxu0 %v3552
  %3758 = vmatprep.subr.mxu0 %v3548
  %3759 = vmatpush1.msra.mxu0 %v3547
  %3760 = vmatprep.subr.mxu0 %v3543
  %3761 = vmatpush1.msra.mxu0 %v3542
  %3762 = vmatprep.subr.mxu0 %v3538
  %3763 = vmatpush1.msra.mxu0 %v3537
  %3764 = vmatprep.subr.mxu0 %v3533
  %3765 = vmatpush1.msra.mxu0 %v3532
  %3766 = vmatprep.subr.mxu0 %v3528
  %3767 = vmatpush1.msra.mxu0 %v3527
  %3768 = vmatprep.subr.mxu0 %v3523
  %3769 = vmatpush1.msra.mxu0 %v3522
  %3770 = vmatprep.subr.mxu0 0.0
  %3771 = vmatpush2.msra.mxu0 0.0
  %3772 = vmatprep.subr.mxu0 0.0
  %3773 = vmatpush2.msra.mxu0 0.0
  %3774 = vmatprep.subr.mxu0 0.0
  %3775 = vmatpush2.msra.mxu0 0.0
  %3776 = vmatprep.subr.mxu0 0.0
  %3777 = vmatpush2.msra.mxu0 0.0
  %3778 = vmatprep.subr.mxu0 0.0
  %3779 = vmatpush2.msra.mxu0 0.0
  %3780 = vmatprep.subr.mxu0 0.0
  %3781 = vmatpush2.msra.mxu0 0.0
  %3782 = vmatprep.subr.mxu0 0.0
  %3783 = vmatpush2.msra.mxu0 0.0
  %3784 = vmatprep.subr.mxu0 %v3643
  %3785 = vmatpush2.msra.mxu0 %v3642
  %3786 = vmatprep.subr.mxu0 %v3638
  %3787 = vmatpush2.msra.mxu0 %v3637
  %3788 = vmatprep.subr.mxu0 %v3633
  %3789 = vmatpush2.msra.mxu0 %v3632
  %3790 = vmatprep.subr.mxu0 %v3628
  %3791 = vmatpush2.msra.mxu0 %v3627
  %3792 = vmatprep.subr.mxu0 %v3623
  %3793 = vmatpush2.msra.mxu0 %v3622
  %3794 = vmatprep.subr.mxu0 %v3618
  %3795 = vmatpush2.msra.mxu0 %v3617
  %3796 = vmatprep.subr.mxu0 %v3613
  %3797 = vmatpush2.msra.mxu0 %v3612
  %3798 = vmatprep.subr.mxu0 %v3608
  %3799 = vmatpush2.msra.mxu0 %v3607
  %3800 = vmatprep.subr.mxu0 %v3603
  %3801 = vmatpush2.msra.mxu0 %v3602
  %3802 = vmatprep.mubr.f32.mxu0 %v3656
  %3803 = vmatmul.mubr.f32.gmra.mxu0 %v3516
  %v3804 = vpop.f32.mrf.mxu0
  %v3805 = vadd.f32 %v3648, %v3804
  %v3806 = vpop.f32.mrf.mxu0
  %v3807 = vadd.f32 %v3648, %v3806
  %3808 = vmatprep.mubr.f32.mxu0 %v3659
  %3809 = vmatmul.mubr.f32.gmra.mxu0 %v3518
  %v3810 = vpop.f32.mrf.mxu0
  %v3811 = vadd.f32 %v3653, %v3810
  %v3812 = vpop.f32.mrf.mxu0
  %v3813 = vadd.f32 %v3653, %v3812
  %3814 = vdwg.mxu0
  %3815 = vmatprep.subr.mxu0 0.0
  %3816 = vmatpush1.msra.mxu0 %v3599
  %3817 = vmatprep.subr.mxu0 0.0
  %3818 = vmatpush1.msra.mxu0 %v3594
  %3819 = vmatprep.subr.mxu0 0.0
  %3820 = vmatpush1.msra.mxu0 %v3589
  %3821 = vmatprep.subr.mxu0 0.0
  %3822 = vmatpush1.msra.mxu0 %v3584
  %3823 = vmatprep.subr.mxu0 0.0
  %3824 = vmatpush1.msra.mxu0 %v3579
  %3825 = vmatprep.subr.mxu0 0.0
  %3826 = vmatpush1.msra.mxu0 %v3574
  %3827 = vmatprep.subr.mxu0 0.0
  %3828 = vmatpush1.msra.mxu0 %v3569
  %3829 = vmatprep.subr.mxu0 0.0
  %3830 = vmatpush1.msra.mxu0 %v3564
  %3831 = vmatprep.subr.mxu0 0.0
  %3832 = vmatpush1.msra.mxu0 %v3559
  %3833 = vmatprep.subr.mxu0 0.0
  %3834 = vmatpush1.msra.mxu0 %v3554
  %3835 = vmatprep.subr.mxu0 0.0
  %3836 = vmatpush1.msra.mxu0 %v3549
  %3837 = vmatprep.subr.mxu0 0.0
  %3838 = vmatpush1.msra.mxu0 %v3544
  %3839 = vmatprep.subr.mxu0 0.0
  %3840 = vmatpush1.msra.mxu0 %v3539
  %3841 = vmatprep.subr.mxu0 0.0
  %3842 = vmatpush1.msra.mxu0 %v3534
  %3843 = vmatprep.subr.mxu0 0.0
  %3844 = vmatpush1.msra.mxu0 %v3529
  %3845 = vmatprep.subr.mxu0 0.0
  %3846 = vmatpush1.msra.mxu0 %v3524
  %3847 = vmatprep.subr.mxu0 0.0
  %3848 = vmatpush2.msra.mxu0 0.0
  %3849 = vmatprep.subr.mxu0 0.0
  %3850 = vmatpush2.msra.mxu0 0.0
  %3851 = vmatprep.subr.mxu0 0.0
  %3852 = vmatpush2.msra.mxu0 0.0
  %3853 = vmatprep.subr.mxu0 0.0
  %3854 = vmatpush2.msra.mxu0 0.0
  %3855 = vmatprep.subr.mxu0 0.0
  %3856 = vmatpush2.msra.mxu0 0.0
  %3857 = vmatprep.subr.mxu0 0.0
  %3858 = vmatpush2.msra.mxu0 0.0
  %3859 = vmatprep.subr.mxu0 0.0
  %3860 = vmatpush2.msra.mxu0 0.0
  %3861 = vmatprep.subr.mxu0 0.0
  %3862 = vmatpush2.msra.mxu0 %v3644
  %3863 = vmatprep.subr.mxu0 0.0
  %3864 = vmatpush2.msra.mxu0 %v3639
  %3865 = vmatprep.subr.mxu0 0.0
  %3866 = vmatpush2.msra.mxu0 %v3634
  %3867 = vmatprep.subr.mxu0 0.0
  %3868 = vmatpush2.msra.mxu0 %v3629
  %3869 = vmatprep.subr.mxu0 0.0
  %3870 = vmatpush2.msra.mxu0 %v3624
  %3871 = vmatprep.subr.mxu0 0.0
  %3872 = vmatpush2.msra.mxu0 %v3619
  %3873 = vmatprep.subr.mxu0 0.0
  %3874 = vmatpush2.msra.mxu0 %v3614
  %3875 = vmatprep.subr.mxu0 0.0
  %3876 = vmatpush2.msra.mxu0 %v3609
  %3877 = vmatprep.subr.mxu0 0.0
  %3878 = vmatpush2.msra.mxu0 %v3604
  %3879 = vmatprep.mubr.f32.mxu0 %v3656
  %3880 = vmatmul.mubr.f32.gmra.mxu0 %v3516
  %v3881 = vpop.f32.mrf.mxu0
  %v3882 = vadd.f32 %v3648, %v3881
  %v3883 = vpop.f32.mrf.mxu0
  %3884 = vmatprep.mubr.f32.mxu0 %v3659
  %3885 = vmatmul.mubr.f32.gmra.mxu0 %v3518
  %v3886 = vpop.f32.mrf.mxu0
  %v3887 = vadd.f32 %v3653, %v3886
  %v3888 = vpop.f32.mrf.mxu0
  %3889 = vdwg.mxu0
  %v3890 = vtanh.pop %v3728
  %v3891 = vtanh.pop %v3730
  %v3892 = vtanh.pop %v3805
  %v3893 = vtanh.pop %v3807
  %v3894 = vtanh.pop %v3882
  %v3895 = vtanh.pop %v3734
  %v3896 = vtanh.pop %v3736
  %v3897 = vtanh.pop %v3811
  %v3898 = vtanh.pop %v3813
  %v3899 = vtanh.pop %v3887
  %3910 = vrot.lane.b32.xlu0 %v3890, 126
  %v3911 = vpop.permute.xlu0 %3910
  %3912 = vrot.lane.b32.xlu0 %v3891, 126
  %v3913 = vpop.permute.xlu0 %3912
  %3914 = vrot.lane.b32.xlu0 %v3892, 126
  %v3915 = vpop.permute.xlu0 %3914
  %3916 = vrot.lane.b32.xlu0 %v3893, 126
  %v3917 = vpop.permute.xlu0 %3916
  %3918 = vrot.lane.b32.xlu0 %v3894, 126
  %v3919 = vpop.permute.xlu0 %3918
  %3920 = vrot.lane.b32.xlu0 %v3895, 126
  %v3921 = vpop.permute.xlu0 %3920
  %3922 = vrot.lane.b32.xlu0 %v3896, 126
  %v3923 = vpop.permute.xlu0 %3922
  %3924 = vrot.lane.b32.xlu0 %v3897, 126
  %v3925 = vpop.permute.xlu0 %3924
  %3926 = vrot.lane.b32.xlu0 %v3898, 126
  %v3927 = vpop.permute.xlu0 %3926
  %3928 = vrot.lane.b32.xlu0 %v3899, 126
  %v3929 = vpop.permute.xlu0 %3928
  %v3930 = vsel %vm266, %v3911, %v3913
  %v3931 = vsel %vm266, %v3913, %v3915
  %v3932 = vsel %vm266, %v3915, %v3917
  %v3933 = vsel %vm266, %v3917, %v3919
  %v3934 = vsel %vm266, %v3921, %v3923
  %v3935 = vsel %vm266, %v3923, %v3925
  %v3936 = vsel %vm266, %v3925, %v3927
  %v3937 = vsel %vm266, %v3927, %v3929
  %v3948 = vadd.f32 %v3890, %v3930
  %v3949 = vadd.f32 %v3891, %v3931
  %v3950 = vadd.f32 %v3892, %v3932
  %v3951 = vadd.f32 %v3893, %v3933
  %v3952 = vadd.f32 %v3894, %v3919
  %v3953 = vadd.f32 %v3895, %v3934
  %v3954 = vadd.f32 %v3896, %v3935
  %v3955 = vadd.f32 %v3897, %v3936
  %v3956 = vadd.f32 %v3898, %v3937
  %v3957 = vadd.f32 %v3899, %v3929
  %3958 = vrot.lane.b32.xlu0 %v3890, 96
  %v3959 = vpop.permute.xlu0 %3958
  %3960 = vrot.lane.b32.xlu0 %v3891, 96
  %v3961 = vpop.permute.xlu0 %3960
  %3962 = vrot.lane.b32.xlu0 %v3892, 96
  %v3963 = vpop.permute.xlu0 %3962
  %3964 = vrot.lane.b32.xlu0 %v3893, 96
  %v3965 = vpop.permute.xlu0 %3964
  %3966 = vrot.lane.b32.xlu0 %v3894, 96
  %v3967 = vpop.permute.xlu0 %3966
  %3968 = vrot.lane.b32.xlu0 %v3895, 96
  %v3969 = vpop.permute.xlu0 %3968
  %3970 = vrot.lane.b32.xlu0 %v3896, 96
  %v3971 = vpop.permute.xlu0 %3970
  %3972 = vrot.lane.b32.xlu0 %v3897, 96
  %v3973 = vpop.permute.xlu0 %3972
  %3974 = vrot.lane.b32.xlu0 %v3898, 96
  %v3975 = vpop.permute.xlu0 %3974
  %3976 = vrot.lane.b32.xlu0 %v3899, 96
  %v3977 = vpop.permute.xlu0 %3976
  %v3978 = vsel %vm882, %v3959, %v3961
  %v3979 = vsel %vm882, %v3961, %v3963
  %v3980 = vsel %vm882, %v3963, %v3965
  %v3981 = vsel %vm882, %v3965, %v3967
  %v3982 = vsel %vm882, %v3969, %v3971
  %v3983 = vsel %vm882, %v3971, %v3973
  %v3984 = vsel %vm882, %v3973, %v3975
  %v3985 = vsel %vm882, %v3975, %v3977
  %v3996 = vadd.f32 %v3948, %v3978
  %v3997 = vadd.f32 %v3949, %v3979
  %v3998 = vadd.f32 %v3950, %v3980
  %v3999 = vadd.f32 %v3951, %v3981
  %v4000 = vadd.f32 %v3952, %v3967
  %v4001 = vadd.f32 %v3953, %v3982
  %v4002 = vadd.f32 %v3954, %v3983
  %v4003 = vadd.f32 %v3955, %v3984
  %v4004 = vadd.f32 %v3956, %v3985
  %v4005 = vadd.f32 %v3957, %v3977
  %4006 = vrot.lane.b32.xlu0 %v3890, 94
  %v4007 = vpop.permute.xlu0 %4006
  %4008 = vrot.lane.b32.xlu0 %v3891, 94
  %v4009 = vpop.permute.xlu0 %4008
  %4010 = vrot.lane.b32.xlu0 %v3892, 94
  %v4011 = vpop.permute.xlu0 %4010
  %4012 = vrot.lane.b32.xlu0 %v3893, 94
  %v4013 = vpop.permute.xlu0 %4012
  %4014 = vrot.lane.b32.xlu0 %v3894, 94
  %v4015 = vpop.permute.xlu0 %4014
  %4016 = vrot.lane.b32.xlu0 %v3895, 94
  %v4017 = vpop.permute.xlu0 %4016
  %4018 = vrot.lane.b32.xlu0 %v3896, 94
  %v4019 = vpop.permute.xlu0 %4018
  %4020 = vrot.lane.b32.xlu0 %v3897, 94
  %v4021 = vpop.permute.xlu0 %4020
  %4022 = vrot.lane.b32.xlu0 %v3898, 94
  %v4023 = vpop.permute.xlu0 %4022
  %4024 = vrot.lane.b32.xlu0 %v3899, 94
  %v4025 = vpop.permute.xlu0 %4024
  %v4026 = vsel %vm2834, %v4007, %v4009
  %v4027 = vsel %vm2834, %v4009, %v4011
  %v4028 = vsel %vm2834, %v4011, %v4013
  %v4029 = vsel %vm2834, %v4013, %v4015
  %v4030 = vsel %vm2834, %v4017, %v4019
  %v4031 = vsel %vm2834, %v4019, %v4021
  %v4032 = vsel %vm2834, %v4021, %v4023
  %v4033 = vsel %vm2834, %v4023, %v4025
  %v4044 = vadd.f32 %v3996, %v4026
  %v4045 = vadd.f32 %v3997, %v4027
  %v4046 = vadd.f32 %v3998, %v4028
  %v4047 = vadd.f32 %v3999, %v4029
  %v4048 = vadd.f32 %v4000, %v4015
  %v4049 = vadd.f32 %v4001, %v4030
  %v4050 = vadd.f32 %v4002, %v4031
  %v4051 = vadd.f32 %v4003, %v4032
  %v4052 = vadd.f32 %v4004, %v4033
  %v4053 = vadd.f32 %v4005, %v4025
  %4054 = vst [vmem:[#allocation4] sm:$0xff] %v4044
  %4055 = vst [vmem:[#allocation4 + $0x8] sm:$0xff] %v4045
  %4056 = vst [vmem:[#allocation4 + $0x10] sm:$0xff] %v4046
  %4057 = vst [vmem:[#allocation4 + $0x18] sm:$0xff] %v4047
  %vm4058 = vcmask 629760
  %4059 = vst.msk [vmem:[#allocation4 + $0x20] sm:$0xff] %vm4058, %v4048
  %4060 = vst [vmem:[#allocation4 + $0x28] sm:$0xff] %v4049
  %4061 = vst [vmem:[#allocation4 + $0x30] sm:$0xff] %v4050
  %4062 = vst [vmem:[#allocation4 + $0x38] sm:$0xff] %v4051
  %4063 = vst [vmem:[#allocation4 + $0x40] sm:$0xff] %v4052
  %4064 = vst.msk [vmem:[#allocation4 + $0x48] sm:$0xff] %vm4058, %v4053
  %v4065 = vld [vmem:[#allocation4] sm:$0xff]
  %v4066 = vld [vmem:[#allocation4 + $0x28] sm:$0xff]
  %vm4067 = vcmask 7168
  %4068 = vst.msk [vmem:[#allocation5] sm:$0xff] %vm4067, %v4065
  %4069 = vst.msk [vmem:[#allocation5 + $0x8] sm:$0xff] %vm4067, %v4066
  %v4070 = vld [vmem:[#allocation4 + $0x18] sm:$0xff]
  %v4071 = vld [vmem:[#allocation4 + $0x40] sm:$0xff]
  %4074 = vrot.lane.b32.xlu0 %v4070, 1
  %v4075 = vpop.permute.xlu0 %4074
  %4076 = vrot.lane.b32.xlu0 %v4071, 1
  %v4077 = vpop.permute.xlu0 %4076
  %vm4080 = vcmask 15368
  %4081 = vst.msk [vmem:[#allocation5] sm:$0xff] %vm4080, %v4075
  %4082 = vst.msk [vmem:[#allocation5 + $0x8] sm:$0xff] %vm4080, %v4077
  %v4083 = vld [vmem:[#allocation4] sm:$0xff]
  %v4084 = vld [vmem:[#allocation4 + $0x28] sm:$0xff]
  %4087 = vrot.lane.b32.xlu0 %v4083, 124
  %v4088 = vpop.permute.xlu0 %4087
  %4089 = vrot.lane.b32.xlu0 %v4084, 124
  %v4090 = vpop.permute.xlu0 %4089
  %4093 = vst.msk [vmem:[#allocation5 + $0x10] sm:$0xff] %vm4067, %v4088
  %4094 = vst.msk [vmem:[#allocation5 + $0x18] sm:$0xff] %vm4067, %v4090
  %v4095 = vld [vmem:[#allocation4 + $0x18] sm:$0xff]
  %v4096 = vld [vmem:[#allocation4 + $0x40] sm:$0xff]
  %4099 = vrot.lane.b32.xlu0 %v4095, 125
  %v4100 = vpop.permute.xlu0 %4099
  %4101 = vrot.lane.b32.xlu0 %v4096, 125
  %v4102 = vpop.permute.xlu0 %4101
  %4105 = vst.msk [vmem:[#allocation5 + $0x10] sm:$0xff] %vm4080, %v4100
  %4106 = vst.msk [vmem:[#allocation5 + $0x18] sm:$0xff] %vm4080, %v4102
  %v4107 = vld [vmem:[#allocation4] sm:$0xff]
  %v4108 = vld [vmem:[#allocation4 + $0x28] sm:$0xff]
  %4111 = vrot.lane.b32.xlu0 %v4107, 120
  %v4112 = vpop.permute.xlu0 %4111
  %4113 = vrot.lane.b32.xlu0 %v4108, 120
  %v4114 = vpop.permute.xlu0 %4113
  %4117 = vst.msk [vmem:[#allocation5 + $0x20] sm:$0xff] %vm4067, %v4112
  %4118 = vst.msk [vmem:[#allocation5 + $0x28] sm:$0xff] %vm4067, %v4114
  %v4119 = vld [vmem:[#allocation4 + $0x18] sm:$0xff]
  %v4120 = vld [vmem:[#allocation4 + $0x40] sm:$0xff]
  %4123 = vrot.lane.b32.xlu0 %v4119, 121
  %v4124 = vpop.permute.xlu0 %4123
  %4125 = vrot.lane.b32.xlu0 %v4120, 121
  %v4126 = vpop.permute.xlu0 %4125
  %4129 = vst.msk [vmem:[#allocation5 + $0x20] sm:$0xff] %vm4080, %v4124
  %4130 = vst.msk [vmem:[#allocation5 + $0x28] sm:$0xff] %vm4080, %v4126
  %v4131 = vld [vmem:[#allocation4] sm:$0xff]
  %v4132 = vld [vmem:[#allocation4 + $0x28] sm:$0xff]
  %4135 = vrot.lane.b32.xlu0 %v4131, 116
  %v4136 = vpop.permute.xlu0 %4135
  %4137 = vrot.lane.b32.xlu0 %v4132, 116
  %v4138 = vpop.permute.xlu0 %4137
  %4141 = vst.msk [vmem:[#allocation5 + $0x30] sm:$0xff] %vm4067, %v4136
  %4142 = vst.msk [vmem:[#allocation5 + $0x38] sm:$0xff] %vm4067, %v4138
  %v4143 = vld [vmem:[#allocation4 + $0x18] sm:$0xff]
  %v4144 = vld [vmem:[#allocation4 + $0x40] sm:$0xff]
  %4147 = vrot.lane.b32.xlu0 %v4143, 117
  %v4148 = vpop.permute.xlu0 %4147
  %4149 = vrot.lane.b32.xlu0 %v4144, 117
  %v4150 = vpop.permute.xlu0 %4149
  %4153 = vst.msk [vmem:[#allocation5 + $0x30] sm:$0xff] %vm4080, %v4148
  %4154 = vst.msk [vmem:[#allocation5 + $0x38] sm:$0xff] %vm4080, %v4150
  %v4155 = vld [vmem:[#allocation4] sm:$0xff]
  %v4156 = vld [vmem:[#allocation4 + $0x28] sm:$0xff]
  %4159 = vrot.lane.b32.xlu0 %v4155, 64
  %v4160 = vpop.permute.xlu0 %4159
  %4161 = vrot.lane.b32.xlu0 %v4156, 64
  %v4162 = vpop.permute.xlu0 %4161
  %4165 = vst.msk [vmem:[#allocation5 + $0x40] sm:$0xff] %vm4067, %v4160
  %4166 = vst.msk [vmem:[#allocation5 + $0x48] sm:$0xff] %vm4067, %v4162
  %v4167 = vld [vmem:[#allocation4 + $0x18] sm:$0xff]
  %v4168 = vld [vmem:[#allocation4 + $0x40] sm:$0xff]
  %4171 = vrot.lane.b32.xlu0 %v4167, 65
  %v4172 = vpop.permute.xlu0 %4171
  %4173 = vrot.lane.b32.xlu0 %v4168, 65
  %v4174 = vpop.permute.xlu0 %4173
  %4177 = vst.msk [vmem:[#allocation5 + $0x40] sm:$0xff] %vm4080, %v4172
  %4178 = vst.msk [vmem:[#allocation5 + $0x48] sm:$0xff] %vm4080, %v4174
  %v4179 = vld [vmem:[#allocation4] sm:$0xff]
  %v4180 = vld [vmem:[#allocation4 + $0x28] sm:$0xff]
  %4183 = vrot.lane.b32.xlu0 %v4179, 60
  %v4184 = vpop.permute.xlu0 %4183
  %4185 = vrot.lane.b32.xlu0 %v4180, 60
  %v4186 = vpop.permute.xlu0 %4185
  %4189 = vst.msk [vmem:[#allocation5 + $0x50] sm:$0xff] %vm4067, %v4184
  %4190 = vst.msk [vmem:[#allocation5 + $0x58] sm:$0xff] %vm4067, %v4186
  %v4191 = vld [vmem:[#allocation4 + $0x18] sm:$0xff]
  %v4192 = vld [vmem:[#allocation4 + $0x40] sm:$0xff]
  %4195 = vrot.lane.b32.xlu0 %v4191, 61
  %v4196 = vpop.permute.xlu0 %4195
  %4197 = vrot.lane.b32.xlu0 %v4192, 61
  %v4198 = vpop.permute.xlu0 %4197
  %4201 = vst.msk [vmem:[#allocation5 + $0x50] sm:$0xff] %vm4080, %v4196
  %4202 = vst.msk [vmem:[#allocation5 + $0x58] sm:$0xff] %vm4080, %v4198
  %v4203 = vld [vmem:[#allocation4] sm:$0xff]
  %v4204 = vld [vmem:[#allocation4 + $0x28] sm:$0xff]
  %4207 = vrot.lane.b32.xlu0 %v4203, 56
  %v4208 = vpop.permute.xlu0 %4207
  %4209 = vrot.lane.b32.xlu0 %v4204, 56
  %v4210 = vpop.permute.xlu0 %4209
  %4213 = vst.msk [vmem:[#allocation5 + $0x60] sm:$0xff] %vm4067, %v4208
  %4214 = vst.msk [vmem:[#allocation5 + $0x68] sm:$0xff] %vm4067, %v4210
  %v4215 = vld [vmem:[#allocation4 + $0x18] sm:$0xff]
  %v4216 = vld [vmem:[#allocation4 + $0x40] sm:$0xff]
  %4219 = vrot.lane.b32.xlu0 %v4215, 57
  %v4220 = vpop.permute.xlu0 %4219
  %4221 = vrot.lane.b32.xlu0 %v4216, 57
  %v4222 = vpop.permute.xlu0 %4221
  %4225 = vst.msk [vmem:[#allocation5 + $0x60] sm:$0xff] %vm4080, %v4220
  %4226 = vst.msk [vmem:[#allocation5 + $0x68] sm:$0xff] %vm4080, %v4222
  %v4227 = vld [vmem:[#allocation4] sm:$0xff]
  %v4228 = vld [vmem:[#allocation4 + $0x28] sm:$0xff]
  %4231 = vrot.lane.b32.xlu0 %v4227, 52
  %v4232 = vpop.permute.xlu0 %4231
  %4233 = vrot.lane.b32.xlu0 %v4228, 52
  %v4234 = vpop.permute.xlu0 %4233
  %4237 = vst.msk [vmem:[#allocation5 + $0x70] sm:$0xff] %vm4067, %v4232
  %4238 = vst.msk [vmem:[#allocation5 + $0x78] sm:$0xff] %vm4067, %v4234
  %v4239 = vld [vmem:[#allocation4 + $0x18] sm:$0xff]
  %v4240 = vld [vmem:[#allocation4 + $0x40] sm:$0xff]
  %4243 = vrot.lane.b32.xlu0 %v4239, 53
  %v4244 = vpop.permute.xlu0 %4243
  %4245 = vrot.lane.b32.xlu0 %v4240, 53
  %v4246 = vpop.permute.xlu0 %4245
  %4249 = vst.msk [vmem:[#allocation5 + $0x70] sm:$0xff] %vm4080, %v4244
  %4250 = vst.msk [vmem:[#allocation5 + $0x78] sm:$0xff] %vm4080, %v4246
  %v4251 = vld [vmem:[#allocation4 + $0x8] sm:$0xff]
  %v4252 = vld [vmem:[#allocation4 + $0x30] sm:$0xff]
  %4253 = vst.msk [vmem:[#allocation5 + $0x80] sm:$0xff] %vm4067, %v4251
  %4254 = vst.msk [vmem:[#allocation5 + $0x88] sm:$0xff] %vm4067, %v4252
  %v4255 = vld [vmem:[#allocation4 + $0x20] sm:$0xff]
  %v4256 = vld [vmem:[#allocation4 + $0x48] sm:$0xff]
  %4259 = vrot.lane.b32.xlu0 %v4255, 1
  %v4260 = vpop.permute.xlu0 %4259
  %4261 = vrot.lane.b32.xlu0 %v4256, 1
  %v4262 = vpop.permute.xlu0 %4261
  %4265 = vst.msk [vmem:[#allocation5 + $0x80] sm:$0xff] %vm4080, %v4260
  %4266 = vst.msk [vmem:[#allocation5 + $0x88] sm:$0xff] %vm4080, %v4262
  %v4267 = vld [vmem:[#allocation4 + $0x8] sm:$0xff]
  %v4268 = vld [vmem:[#allocation4 + $0x30] sm:$0xff]
  %4271 = vrot.lane.b32.xlu0 %v4267, 124
  %v4272 = vpop.permute.xlu0 %4271
  %4273 = vrot.lane.b32.xlu0 %v4268, 124
  %v4274 = vpop.permute.xlu0 %4273
  %4277 = vst.msk [vmem:[#allocation5 + $0x90] sm:$0xff] %vm4067, %v4272
  %4278 = vst.msk [vmem:[#allocation5 + $0x98] sm:$0xff] %vm4067, %v4274
  %v4279 = vld [vmem:[#allocation4 + $0x20] sm:$0xff]
  %v4280 = vld [vmem:[#allocation4 + $0x48] sm:$0xff]
  %4283 = vrot.lane.b32.xlu0 %v4279, 125
  %v4284 = vpop.permute.xlu0 %4283
  %4285 = vrot.lane.b32.xlu0 %v4280, 125
  %v4286 = vpop.permute.xlu0 %4285
  %4289 = vst.msk [vmem:[#allocation5 + $0x90] sm:$0xff] %vm4080, %v4284
  %4290 = vst.msk [vmem:[#allocation5 + $0x98] sm:$0xff] %vm4080, %v4286
  %v4291 = vld [vmem:[#allocation4 + $0x8] sm:$0xff]
  %v4292 = vld [vmem:[#allocation4 + $0x30] sm:$0xff]
  %4295 = vrot.lane.b32.xlu0 %v4291, 120
  %v4296 = vpop.permute.xlu0 %4295
  %4297 = vrot.lane.b32.xlu0 %v4292, 120
  %v4298 = vpop.permute.xlu0 %4297
  %4301 = vst.msk [vmem:[#allocation5 + $0xa0] sm:$0xff] %vm4067, %v4296
  %4302 = vst.msk [vmem:[#allocation5 + $0xa8] sm:$0xff] %vm4067, %v4298
  %v4303 = vld [vmem:[#allocation4 + $0x20] sm:$0xff]
  %v4304 = vld [vmem:[#allocation4 + $0x48] sm:$0xff]
  %4307 = vrot.lane.b32.xlu0 %v4303, 121
  %v4308 = vpop.permute.xlu0 %4307
  %4309 = vrot.lane.b32.xlu0 %v4304, 121
  %v4310 = vpop.permute.xlu0 %4309
  %4313 = vst.msk [vmem:[#allocation5 + $0xa0] sm:$0xff] %vm4080, %v4308
  %4314 = vst.msk [vmem:[#allocation5 + $0xa8] sm:$0xff] %vm4080, %v4310
  %v4315 = vld [vmem:[#allocation4 + $0x8] sm:$0xff]
  %v4316 = vld [vmem:[#allocation4 + $0x30] sm:$0xff]
  %4319 = vrot.lane.b32.xlu0 %v4315, 116
  %v4320 = vpop.permute.xlu0 %4319
  %4321 = vrot.lane.b32.xlu0 %v4316, 116
  %v4322 = vpop.permute.xlu0 %4321
  %4325 = vst.msk [vmem:[#allocation5 + $0xb0] sm:$0xff] %vm4067, %v4320
  %4326 = vst.msk [vmem:[#allocation5 + $0xb8] sm:$0xff] %vm4067, %v4322
  %v4327 = vld [vmem:[#allocation4 + $0x20] sm:$0xff]
  %v4328 = vld [vmem:[#allocation4 + $0x48] sm:$0xff]
  %4331 = vrot.lane.b32.xlu0 %v4327, 117
  %v4332 = vpop.permute.xlu0 %4331
  %4333 = vrot.lane.b32.xlu0 %v4328, 117
  %v4334 = vpop.permute.xlu0 %4333
  %4337 = vst.msk [vmem:[#allocation5 + $0xb0] sm:$0xff] %vm4080, %v4332
  %4338 = vst.msk [vmem:[#allocation5 + $0xb8] sm:$0xff] %vm4080, %v4334
  %v4339 = vld [vmem:[#allocation4 + $0x8] sm:$0xff]
  %v4340 = vld [vmem:[#allocation4 + $0x30] sm:$0xff]
  %4343 = vrot.lane.b32.xlu0 %v4339, 64
  %v4344 = vpop.permute.xlu0 %4343
  %4345 = vrot.lane.b32.xlu0 %v4340, 64
  %v4346 = vpop.permute.xlu0 %4345
  %4349 = vst.msk [vmem:[#allocation5 + $0xc0] sm:$0xff] %vm4067, %v4344
  %4350 = vst.msk [vmem:[#allocation5 + $0xc8] sm:$0xff] %vm4067, %v4346
  %v4351 = vld [vmem:[#allocation4 + $0x20] sm:$0xff]
  %v4352 = vld [vmem:[#allocation4 + $0x48] sm:$0xff]
  %4355 = vrot.lane.b32.xlu0 %v4351, 65
  %v4356 = vpop.permute.xlu0 %4355
  %4357 = vrot.lane.b32.xlu0 %v4352, 65
  %v4358 = vpop.permute.xlu0 %4357
  %4361 = vst.msk [vmem:[#allocation5 + $0xc0] sm:$0xff] %vm4080, %v4356
  %4362 = vst.msk [vmem:[#allocation5 + $0xc8] sm:$0xff] %vm4080, %v4358
  %v4363 = vld [vmem:[#allocation4 + $0x8] sm:$0xff]
  %v4364 = vld [vmem:[#allocation4 + $0x30] sm:$0xff]
  %4367 = vrot.lane.b32.xlu0 %v4363, 60
  %v4368 = vpop.permute.xlu0 %4367
  %4369 = vrot.lane.b32.xlu0 %v4364, 60
  %v4370 = vpop.permute.xlu0 %4369
  %4373 = vst.msk [vmem:[#allocation5 + $0xd0] sm:$0xff] %vm4067, %v4368
  %4374 = vst.msk [vmem:[#allocation5 + $0xd8] sm:$0xff] %vm4067, %v4370
  %v4375 = vld [vmem:[#allocation4 + $0x20] sm:$0xff]
  %v4376 = vld [vmem:[#allocation4 + $0x48] sm:$0xff]
  %4379 = vrot.lane.b32.xlu0 %v4375, 61
  %v4380 = vpop.permute.xlu0 %4379
  %4381 = vrot.lane.b32.xlu0 %v4376, 61
  %v4382 = vpop.permute.xlu0 %4381
  %4385 = vst.msk [vmem:[#allocation5 + $0xd0] sm:$0xff] %vm4080, %v4380
  %4386 = vst.msk [vmem:[#allocation5 + $0xd8] sm:$0xff] %vm4080, %v4382
  %v4387 = vld [vmem:[#allocation4 + $0x8] sm:$0xff]
  %v4388 = vld [vmem:[#allocation4 + $0x30] sm:$0xff]
  %4391 = vrot.lane.b32.xlu0 %v4387, 56
  %v4392 = vpop.permute.xlu0 %4391
  %4393 = vrot.lane.b32.xlu0 %v4388, 56
  %v4394 = vpop.permute.xlu0 %4393
  %4397 = vst.msk [vmem:[#allocation5 + $0xe0] sm:$0xff] %vm4067, %v4392
  %4398 = vst.msk [vmem:[#allocation5 + $0xe8] sm:$0xff] %vm4067, %v4394
  %v4399 = vld [vmem:[#allocation4 + $0x20] sm:$0xff]
  %v4400 = vld [vmem:[#allocation4 + $0x48] sm:$0xff]
  %4403 = vrot.lane.b32.xlu0 %v4399, 57
  %v4404 = vpop.permute.xlu0 %4403
  %4405 = vrot.lane.b32.xlu0 %v4400, 57
  %v4406 = vpop.permute.xlu0 %4405
  %4409 = vst.msk [vmem:[#allocation5 + $0xe0] sm:$0xff] %vm4080, %v4404
  %4410 = vst.msk [vmem:[#allocation5 + $0xe8] sm:$0xff] %vm4080, %v4406
  %v4411 = vld [vmem:[#allocation4 + $0x8] sm:$0xff]
  %v4412 = vld [vmem:[#allocation4 + $0x30] sm:$0xff]
  %4415 = vrot.lane.b32.xlu0 %v4411, 52
  %v4416 = vpop.permute.xlu0 %4415
  %4417 = vrot.lane.b32.xlu0 %v4412, 52
  %v4418 = vpop.permute.xlu0 %4417
  %4421 = vst.msk [vmem:[#allocation5 + $0xf0] sm:$0xff] %vm4067, %v4416
  %4422 = vst.msk [vmem:[#allocation5 + $0xf8] sm:$0xff] %vm4067, %v4418
  %v4423 = vld [vmem:[#allocation4 + $0x20] sm:$0xff]
  %v4424 = vld [vmem:[#allocation4 + $0x48] sm:$0xff]
  %4427 = vrot.lane.b32.xlu0 %v4423, 53
  %v4428 = vpop.permute.xlu0 %4427
  %4429 = vrot.lane.b32.xlu0 %v4424, 53
  %v4430 = vpop.permute.xlu0 %4429
  %4433 = vst.msk [vmem:[#allocation5 + $0xf0] sm:$0xff] %vm4080, %v4428
  %4434 = vst.msk [vmem:[#allocation5 + $0xf8] sm:$0xff] %vm4080, %v4430
  %v4435 = vld [vmem:[%s3] sm:$0xff]
  %v4436 = vld [vmem:[%s3 + $0x8] sm:$0xff]
  %v4437 = vld [vmem:[%s3 + $0x10] sm:$0xff]
  %v4438 = vld [vmem:[%s3 + $0x18] sm:$0xff]
  %v4439 = vld [vmem:[%s3 + $0x20] sm:$0xff]
  %v4440 = vld [vmem:[%s3 + $0x28] sm:$0xff]
  %v4441 = vld [vmem:[%s3 + $0x30] sm:$0xff]
  %v4442 = vld [vmem:[%s3 + $0x38] sm:$0xff]
  %v4443 = vld [vmem:[%s3 + $0x40] sm:$0xff]
  %v4444 = vld [vmem:[%s3 + $0x48] sm:$0xff]
  %v4445 = vld [vmem:[%s3 + $0x50] sm:$0xff]
  %v4446 = vld [vmem:[%s3 + $0x58] sm:$0xff]
  %v4447 = vld [vmem:[%s3 + $0x60] sm:$0xff]
  %v4448 = vld [vmem:[%s3 + $0x68] sm:$0xff]
  %v4449 = vld [vmem:[%s3 + $0x70] sm:$0xff]
  %v4450 = vld [vmem:[%s3 + $0x78] sm:$0xff]
  %v4451 = vld [vmem:[%s3 + $0x80] sm:$0xff]
  %v4452 = vld [vmem:[%s3 + $0x88] sm:$0xff]
  %v4453 = vld [vmem:[%s3 + $0x90] sm:$0xff]
  %v4454 = vld [vmem:[%s3 + $0x98] sm:$0xff]
  %v4455 = vld [vmem:[%s3 + $0xa0] sm:$0xff]
  %v4456 = vld [vmem:[%s3 + $0xa8] sm:$0xff]
  %v4457 = vld [vmem:[%s3 + $0xb0] sm:$0xff]
  %v4458 = vld [vmem:[%s3 + $0xb8] sm:$0xff]
  %v4459 = vld [vmem:[%s3 + $0xc0] sm:$0xff]
  %v4460 = vld [vmem:[%s3 + $0xc8] sm:$0xff]
  %v4461 = vld [vmem:[%s3 + $0xd0] sm:$0xff]
  %v4462 = vld [vmem:[%s3 + $0xd8] sm:$0xff]
  %v4463 = vld [vmem:[%s3 + $0xe0] sm:$0xff]
  %v4464 = vld [vmem:[%s3 + $0xe8] sm:$0xff]
  %v4465 = vld [vmem:[#allocation5] sm:$0xff]
  %v4466 = vld [vmem:[#allocation5 + $0x8] sm:$0xff]
  %v4467 = vld [vmem:[#allocation5 + $0x10] sm:$0xff]
  %v4468 = vld [vmem:[#allocation5 + $0x18] sm:$0xff]
  %v4469 = vld [vmem:[#allocation5 + $0x20] sm:$0xff]
  %v4470 = vld [vmem:[#allocation5 + $0x28] sm:$0xff]
  %v4471 = vld [vmem:[#allocation5 + $0x30] sm:$0xff]
  %v4472 = vld [vmem:[#allocation5 + $0x38] sm:$0xff]
  %v4473 = vld [vmem:[#allocation5 + $0x40] sm:$0xff]
  %v4474 = vld [vmem:[#allocation5 + $0x48] sm:$0xff]
  %v4475 = vld [vmem:[#allocation5 + $0x50] sm:$0xff]
  %v4476 = vld [vmem:[#allocation5 + $0x58] sm:$0xff]
  %v4477 = vld [vmem:[#allocation5 + $0x60] sm:$0xff]
  %v4478 = vld [vmem:[#allocation5 + $0x68] sm:$0xff]
  %v4479 = vld [vmem:[#allocation5 + $0x70] sm:$0xff]
  %v4480 = vld [vmem:[#allocation5 + $0x78] sm:$0xff]
  %v4481 = vld [vmem:[#allocation5 + $0x80] sm:$0xff]
  %v4482 = vld [vmem:[#allocation5 + $0x88] sm:$0xff]
  %v4483 = vld [vmem:[#allocation5 + $0x90] sm:$0xff]
  %v4484 = vld [vmem:[#allocation5 + $0x98] sm:$0xff]
  %v4485 = vld [vmem:[#allocation5 + $0xa0] sm:$0xff]
  %v4486 = vld [vmem:[#allocation5 + $0xa8] sm:$0xff]
  %v4487 = vld [vmem:[#allocation5 + $0xb0] sm:$0xff]
  %v4488 = vld [vmem:[#allocation5 + $0xb8] sm:$0xff]
  %v4489 = vld [vmem:[#allocation5 + $0xc0] sm:$0xff]
  %v4490 = vld [vmem:[#allocation5 + $0xc8] sm:$0xff]
  %v4491 = vld [vmem:[#allocation5 + $0xd0] sm:$0xff]
  %v4492 = vld [vmem:[#allocation5 + $0xd8] sm:$0xff]
  %v4493 = vld [vmem:[#allocation5 + $0xe0] sm:$0xff]
  %v4494 = vld [vmem:[#allocation5 + $0xe8] sm:$0xff]
  %v4495 = vld [vmem:[#allocation5 + $0xf0] sm:$0xff]
  %v4496 = vld [vmem:[#allocation5 + $0xf8] sm:$0xff]
  %4497 = vset.pattern.permute.xlu0 2
  %4498 = vperm.xlu0 %4497, %v27
  %v4499 = vpop.permute.xlu0 %4498
  %4501 = vset.pattern.permute.xlu0 2
  %4502 = vperm.xlu0 %4501, %v28
  %v4503 = vpop.permute.xlu0 %4502
  %4506 = vset.pattern.permute.xlu0 2
  %4507 = vperm.xlu0 %4506, %v29
  %v4508 = vpop.permute.xlu0 %4507
  %4511 = vset.pattern.permute.xlu0 2
  %4512 = vperm.xlu0 %4511, %v30
  %v4513 = vpop.permute.xlu0 %4512
  %4516 = vset.pattern.permute.xlu0 2
  %4517 = vperm.xlu0 %4516, %v31
  %v4518 = vpop.permute.xlu0 %4517
  %4521 = vset.pattern.permute.xlu0 2
  %4522 = vperm.xlu0 %4521, %v32
  %v4523 = vpop.permute.xlu0 %4522
  %4526 = vset.pattern.permute.xlu0 2
  %4527 = vperm.xlu0 %4526, %v33
  %v4528 = vpop.permute.xlu0 %4527
  %4531 = vset.pattern.permute.xlu0 2
  %4532 = vperm.xlu0 %4531, %v34
  %v4533 = vpop.permute.xlu0 %4532
  %4536 = vset.pattern.permute.xlu0 2
  %4537 = vperm.xlu0 %4536, %v35
  %v4538 = vpop.permute.xlu0 %4537
  %4541 = vset.pattern.permute.xlu0 2
  %4542 = vperm.xlu0 %4541, %v36
  %v4543 = vpop.permute.xlu0 %4542
  %4546 = vset.pattern.permute.xlu0 2
  %4547 = vperm.xlu0 %4546, %v37
  %v4548 = vpop.permute.xlu0 %4547
  %4551 = vset.pattern.permute.xlu0 2
  %4552 = vperm.xlu0 %4551, %v38
  %v4553 = vpop.permute.xlu0 %4552
  %4556 = vset.pattern.permute.xlu0 2
  %4557 = vperm.xlu0 %4556, %v39
  %v4558 = vpop.permute.xlu0 %4557
  %4561 = vset.pattern.permute.xlu0 2
  %4562 = vperm.xlu0 %4561, %v40
  %v4563 = vpop.permute.xlu0 %4562
  %4566 = vset.pattern.permute.xlu0 2
  %4567 = vperm.xlu0 %4566, %v41
  %v4568 = vpop.permute.xlu0 %4567
  %4570 = vmatprep.subr.mxu0 0.0
  %4571 = vmatpush1.msra.mxu0 %v4480
  %4572 = vmatprep.subr.mxu0 0.0
  %4573 = vmatpush1.msra.mxu0 %v4479
  %4574 = vmatprep.subr.mxu0 0.0
  %4575 = vmatpush1.msra.mxu0 %v4478
  %4576 = vmatprep.subr.mxu0 0.0
  %4577 = vmatpush1.msra.mxu0 %v4477
  %4578 = vmatprep.subr.mxu0 0.0
  %4579 = vmatpush1.msra.mxu0 %v4476
  %4580 = vmatprep.subr.mxu0 0.0
  %4581 = vmatpush1.msra.mxu0 %v4475
  %4582 = vmatprep.subr.mxu0 0.0
  %4583 = vmatpush1.msra.mxu0 %v4474
  %4584 = vmatprep.subr.mxu0 0.0
  %4585 = vmatpush1.msra.mxu0 %v4473
  %4586 = vmatprep.subr.mxu0 0.0
  %4587 = vmatpush1.msra.mxu0 %v4472
  %4588 = vmatprep.subr.mxu0 0.0
  %4589 = vmatpush1.msra.mxu0 %v4471
  %4590 = vmatprep.subr.mxu0 0.0
  %4591 = vmatpush1.msra.mxu0 %v4470
  %4592 = vmatprep.subr.mxu0 0.0
  %4593 = vmatpush1.msra.mxu0 %v4469
  %4594 = vmatprep.subr.mxu0 0.0
  %4595 = vmatpush1.msra.mxu0 %v4468
  %4596 = vmatprep.subr.mxu0 0.0
  %4597 = vmatpush1.msra.mxu0 %v4467
  %4598 = vmatprep.subr.mxu0 0.0
  %4599 = vmatpush1.msra.mxu0 %v4466
  %4600 = vmatprep.subr.mxu0 0.0
  %4601 = vmatpush1.msra.mxu0 %v4465
  %4602 = vmatprep.subr.mxu0 0.0
  %4603 = vmatpush2.msra.mxu0 %v4496
  %4604 = vmatprep.subr.mxu0 0.0
  %4605 = vmatpush2.msra.mxu0 %v4495
  %4606 = vmatprep.subr.mxu0 0.0
  %4607 = vmatpush2.msra.mxu0 %v4494
  %4608 = vmatprep.subr.mxu0 0.0
  %4609 = vmatpush2.msra.mxu0 %v4493
  %4610 = vmatprep.subr.mxu0 0.0
  %4611 = vmatpush2.msra.mxu0 %v4492
  %4612 = vmatprep.subr.mxu0 0.0
  %4613 = vmatpush2.msra.mxu0 %v4491
  %4614 = vmatprep.subr.mxu0 0.0
  %4615 = vmatpush2.msra.mxu0 %v4490
  %4616 = vmatprep.subr.mxu0 0.0
  %4617 = vmatpush2.msra.mxu0 %v4489
  %4618 = vmatprep.subr.mxu0 0.0
  %4619 = vmatpush2.msra.mxu0 %v4488
  %4620 = vmatprep.subr.mxu0 0.0
  %4621 = vmatpush2.msra.mxu0 %v4487
  %4622 = vmatprep.subr.mxu0 0.0
  %4623 = vmatpush2.msra.mxu0 %v4486
  %4624 = vmatprep.subr.mxu0 0.0
  %4625 = vmatpush2.msra.mxu0 %v4485
  %4626 = vmatprep.subr.mxu0 0.0
  %4627 = vmatpush2.msra.mxu0 %v4484
  %4628 = vmatprep.subr.mxu0 0.0
  %4629 = vmatpush2.msra.mxu0 %v4483
  %4630 = vmatprep.subr.mxu0 0.0
  %4631 = vmatpush2.msra.mxu0 %v4482
  %4632 = vmatprep.subr.mxu0 0.0
  %4633 = vmatpush2.msra.mxu0 %v4481
  %4634 = vmatprep.mubr.f32.mxu0 %v4436
  %4635 = vmatmul.mubr.f32.gmra.mxu0 %v4435
  %v4636 = vpop.f32.mrf.mxu0
  %v4637 = vadd.f32 %v4499, %v4636
  %v4638 = vpop.f32.mrf.mxu0
  %4639 = vmatprep.mubr.f32.mxu0 %v4438
  %4640 = vmatmul.mubr.f32.gmra.mxu0 %v4437
  %v4641 = vpop.f32.mrf.mxu0
  %v4642 = vadd.f32 %v4503, %v4641
  %v4643 = vpop.f32.mrf.mxu0
  %4644 = vmatprep.mubr.f32.mxu0 %v4440
  %4645 = vmatmul.mubr.f32.gmra.mxu0 %v4439
  %v4646 = vpop.f32.mrf.mxu0
  %v4647 = vadd.f32 %v4508, %v4646
  %v4648 = vpop.f32.mrf.mxu0
  %4649 = vmatprep.mubr.f32.mxu0 %v4442
  %4650 = vmatmul.mubr.f32.gmra.mxu0 %v4441
  %v4651 = vpop.f32.mrf.mxu0
  %v4652 = vadd.f32 %v4513, %v4651
  %v4653 = vpop.f32.mrf.mxu0
  %4654 = vmatprep.mubr.f32.mxu0 %v4444
  %4655 = vmatmul.mubr.f32.gmra.mxu0 %v4443
  %v4656 = vpop.f32.mrf.mxu0
  %v4657 = vadd.f32 %v4518, %v4656
  %v4658 = vpop.f32.mrf.mxu0
  %4659 = vmatprep.mubr.f32.mxu0 %v4446
  %4660 = vmatmul.mubr.f32.gmra.mxu0 %v4445
  %v4661 = vpop.f32.mrf.mxu0
  %v4662 = vadd.f32 %v4523, %v4661
  %v4663 = vpop.f32.mrf.mxu0
  %4664 = vmatprep.mubr.f32.mxu0 %v4448
  %4665 = vmatmul.mubr.f32.gmra.mxu0 %v4447
  %v4666 = vpop.f32.mrf.mxu0
  %v4667 = vadd.f32 %v4528, %v4666
  %v4668 = vpop.f32.mrf.mxu0
  %4669 = vmatprep.mubr.f32.mxu0 %v4450
  %4670 = vmatmul.mubr.f32.gmra.mxu0 %v4449
  %v4671 = vpop.f32.mrf.mxu0
  %v4672 = vadd.f32 %v4533, %v4671
  %v4673 = vpop.f32.mrf.mxu0
  %4674 = vmatprep.mubr.f32.mxu0 %v4452
  %4675 = vmatmul.mubr.f32.gmra.mxu0 %v4451
  %v4676 = vpop.f32.mrf.mxu0
  %v4677 = vadd.f32 %v4538, %v4676
  %v4678 = vpop.f32.mrf.mxu0
  %4679 = vmatprep.mubr.f32.mxu0 %v4454
  %4680 = vmatmul.mubr.f32.gmra.mxu0 %v4453
  %v4681 = vpop.f32.mrf.mxu0
  %v4682 = vadd.f32 %v4543, %v4681
  %v4683 = vpop.f32.mrf.mxu0
  %4684 = vmatprep.mubr.f32.mxu0 %v4456
  %4685 = vmatmul.mubr.f32.gmra.mxu0 %v4455
  %v4686 = vpop.f32.mrf.mxu0
  %v4687 = vadd.f32 %v4548, %v4686
  %v4688 = vpop.f32.mrf.mxu0
  %4689 = vmatprep.mubr.f32.mxu0 %v4458
  %4690 = vmatmul.mubr.f32.gmra.mxu0 %v4457
  %v4691 = vpop.f32.mrf.mxu0
  %v4692 = vadd.f32 %v4553, %v4691
  %v4693 = vpop.f32.mrf.mxu0
  %4694 = vmatprep.mubr.f32.mxu0 %v4460
  %4695 = vmatmul.mubr.f32.gmra.mxu0 %v4459
  %v4696 = vpop.f32.mrf.mxu0
  %v4697 = vadd.f32 %v4558, %v4696
  %v4698 = vpop.f32.mrf.mxu0
  %4699 = vmatprep.mubr.f32.mxu0 %v4462
  %4700 = vmatmul.mubr.f32.gmra.mxu0 %v4461
  %v4701 = vpop.f32.mrf.mxu0
  %v4702 = vadd.f32 %v4563, %v4701
  %v4703 = vpop.f32.mrf.mxu0
  %4704 = vmatprep.mubr.f32.mxu0 %v4464
  %4705 = vmatmul.mubr.f32.gmra.mxu0 %v4463
  %v4706 = vpop.f32.mrf.mxu0
  %v4707 = vadd.f32 %v4568, %v4706
  %v4708 = vpop.f32.mrf.mxu0
  %4709 = vdwg.mxu0
  %v4710 = vtanh.pop %v4637
  %v4711 = vtanh.pop %v4642
  %v4712 = vtanh.pop %v4647
  %v4713 = vtanh.pop %v4652
  %v4714 = vtanh.pop %v4657
  %v4715 = vtanh.pop %v4662
  %v4716 = vtanh.pop %v4667
  %v4717 = vtanh.pop %v4672
  %v4718 = vtanh.pop %v4677
  %v4719 = vtanh.pop %v4682
  %v4720 = vtanh.pop %v4687
  %v4721 = vtanh.pop %v4692
  %v4722 = vtanh.pop %v4697
  %v4723 = vtanh.pop %v4702
  %v4724 = vtanh.pop %v4707
  %v4725 = vld [vmem:[%s4] sm:$0xff]
  %v4726 = vld [vmem:[%s4 + $0x8] sm:$0xff]
  %v4727 = vld [vmem:[%s4 + $0x10] sm:$0xff]
  %v4728 = vld [vmem:[%s4 + $0x18] sm:$0xff]
  %v4729 = vld [vmem:[%s4 + $0x20] sm:$0xff]
  %v4730 = vld [vmem:[%s4 + $0x28] sm:$0xff]
  %v4731 = vld [vmem:[%s4 + $0x30] sm:$0xff]
  %v4732 = vld [vmem:[%s4 + $0x38] sm:$0xff]
  %v4733 = vld [vmem:[%s4 + $0x40] sm:$0xff]
  %v4734 = vld [vmem:[%s4 + $0x48] sm:$0xff]
  %v4735 = vld [vmem:[%s4 + $0x50] sm:$0xf]
  %4736 = vset.pattern.permute.xlu0 3
  %4737 = vperm.xlu0 %4736, %v27
  %v4738 = vpop.permute.xlu0 %4737
  %4740 = vset.pattern.permute.xlu0 3
  %4741 = vperm.xlu0 %4740, %v28
  %v4742 = vpop.permute.xlu0 %4741
  %4744 = vset.pattern.permute.xlu0 3
  %4745 = vperm.xlu0 %4744, %v29
  %v4746 = vpop.permute.xlu0 %4745
  %4748 = vset.pattern.permute.xlu0 3
  %4749 = vperm.xlu0 %4748, %v30
  %v4750 = vpop.permute.xlu0 %4749
  %4752 = vset.pattern.permute.xlu0 3
  %4753 = vperm.xlu0 %4752, %v31
  %v4754 = vpop.permute.xlu0 %4753
  %4756 = vset.pattern.permute.xlu0 3
  %4757 = vperm.xlu0 %4756, %v32
  %v4758 = vpop.permute.xlu0 %4757
  %4760 = vset.pattern.permute.xlu0 3
  %4761 = vperm.xlu0 %4760, %v33
  %v4762 = vpop.permute.xlu0 %4761
  %4764 = vset.pattern.permute.xlu0 3
  %4765 = vperm.xlu0 %4764, %v34
  %v4766 = vpop.permute.xlu0 %4765
  %4768 = vset.pattern.permute.xlu0 3
  %4769 = vperm.xlu0 %4768, %v35
  %v4770 = vpop.permute.xlu0 %4769
  %4772 = vset.pattern.permute.xlu0 3
  %4773 = vperm.xlu0 %4772, %v36
  %v4774 = vpop.permute.xlu0 %4773
  %4777 = vset.pattern.permute.xlu0 3
  %4778 = vperm.xlu0 %4777, %v42
  %v4779 = vpop.permute.xlu0 %4778
  %v4782 = vsel %vm2756, %v4725, 0
  %v4785 = vsel %vm2756, %v4726, 0
  %v4788 = vsel %vm2756, %v4727, 0
  %v4791 = vsel %vm2756, %v4728, 0
  %v4794 = vsel %vm2756, %v4729, 0
  %v4797 = vsel %vm2756, %v4730, 0
  %v4800 = vsel %vm2756, %v4731, 0
  %v4803 = vsel %vm2756, %v4732, 0
  %v4806 = vsel %vm2756, %v4733, 0
  %v4809 = vsel %vm2756, %v4734, 0
  %v4812 = vsel %vm2756, %v4735, 0
  %4814 = vmatprep.subr.mxu0 0.0
  %4815 = vmatpush1.msra.mxu0 0.0
  %4816 = vmatprep.subr.mxu0 0.0
  %4817 = vmatpush1.msra.mxu0 %v4724
  %4818 = vmatprep.subr.mxu0 0.0
  %4819 = vmatpush1.msra.mxu0 %v4723
  %4820 = vmatprep.subr.mxu0 0.0
  %4821 = vmatpush1.msra.mxu0 %v4722
  %4822 = vmatprep.subr.mxu0 0.0
  %4823 = vmatpush1.msra.mxu0 %v4721
  %4824 = vmatprep.subr.mxu0 0.0
  %4825 = vmatpush1.msra.mxu0 %v4720
  %4826 = vmatprep.subr.mxu0 0.0
  %4827 = vmatpush1.msra.mxu0 %v4719
  %4828 = vmatprep.subr.mxu0 0.0
  %4829 = vmatpush1.msra.mxu0 %v4718
  %4830 = vmatprep.subr.mxu0 0.0
  %4831 = vmatpush1.msra.mxu0 %v4717
  %4832 = vmatprep.subr.mxu0 0.0
  %4833 = vmatpush1.msra.mxu0 %v4716
  %4834 = vmatprep.subr.mxu0 0.0
  %4835 = vmatpush1.msra.mxu0 %v4715
  %4836 = vmatprep.subr.mxu0 0.0
  %4837 = vmatpush1.msra.mxu0 %v4714
  %4838 = vmatprep.subr.mxu0 0.0
  %4839 = vmatpush1.msra.mxu0 %v4713
  %4840 = vmatprep.subr.mxu0 0.0
  %4841 = vmatpush1.msra.mxu0 %v4712
  %4842 = vmatprep.subr.mxu0 0.0
  %4843 = vmatpush1.msra.mxu0 %v4711
  %4844 = vmatprep.subr.mxu0 0.0
  %4845 = vmatpush1.msra.mxu0 %v4710
  %4846 = vmatprep.subr.mxu0 0.0
  %4847 = vmatpush2.msra.mxu0 0.0
  %4848 = vmatprep.subr.mxu0 0.0
  %4849 = vmatpush2.msra.mxu0 0.0
  %4850 = vmatprep.subr.mxu0 0.0
  %4851 = vmatpush2.msra.mxu0 0.0
  %4852 = vmatprep.subr.mxu0 0.0
  %4853 = vmatpush2.msra.mxu0 0.0
  %4854 = vmatprep.subr.mxu0 0.0
  %4855 = vmatpush2.msra.mxu0 0.0
  %4856 = vmatprep.subr.mxu0 0.0
  %4857 = vmatpush2.msra.mxu0 0.0
  %4858 = vmatprep.subr.mxu0 0.0
  %4859 = vmatpush2.msra.mxu0 0.0
  %4860 = vmatprep.subr.mxu0 0.0
  %4861 = vmatpush2.msra.mxu0 0.0
  %4862 = vmatprep.subr.mxu0 0.0
  %4863 = vmatpush2.msra.mxu0 0.0
  %4864 = vmatprep.subr.mxu0 0.0
  %4865 = vmatpush2.msra.mxu0 0.0
  %4866 = vmatprep.subr.mxu0 0.0
  %4867 = vmatpush2.msra.mxu0 0.0
  %4868 = vmatprep.subr.mxu0 0.0
  %4869 = vmatpush2.msra.mxu0 0.0
  %4870 = vmatprep.subr.mxu0 0.0
  %4871 = vmatpush2.msra.mxu0 0.0
  %4872 = vmatprep.subr.mxu0 0.0
  %4873 = vmatpush2.msra.mxu0 0.0
  %4874 = vmatprep.subr.mxu0 0.0
  %4875 = vmatpush2.msra.mxu0 0.0
  %4876 = vmatprep.subr.mxu0 0.0
  %4877 = vmatpush2.msra.mxu0 0.0
  %4878 = vmatprep.mubr.f32.mxu0 0.0
  %4879 = vmatmul.mubr.f32.gmra.mxu0 %v4782
  %v4880 = vpop.f32.mrf.mxu0
  %v4881 = vadd.f32 %v4738, %v4880
  %v4882 = vpop.f32.mrf.mxu0
  %4883 = vmatprep.mubr.f32.mxu0 0.0
  %4884 = vmatmul.mubr.f32.gmra.mxu0 %v4785
  %v4885 = vpop.f32.mrf.mxu0
  %v4886 = vadd.f32 %v4742, %v4885
  %v4887 = vpop.f32.mrf.mxu0
  %4888 = vmatprep.mubr.f32.mxu0 0.0
  %4889 = vmatmul.mubr.f32.gmra.mxu0 %v4788
  %v4890 = vpop.f32.mrf.mxu0
  %v4891 = vadd.f32 %v4746, %v4890
  %v4892 = vpop.f32.mrf.mxu0
  %4893 = vmatprep.mubr.f32.mxu0 0.0
  %4894 = vmatmul.mubr.f32.gmra.mxu0 %v4791
  %v4895 = vpop.f32.mrf.mxu0
  %v4896 = vadd.f32 %v4750, %v4895
  %v4897 = vpop.f32.mrf.mxu0
  %4898 = vmatprep.mubr.f32.mxu0 0.0
  %4899 = vmatmul.mubr.f32.gmra.mxu0 %v4794
  %v4900 = vpop.f32.mrf.mxu0
  %v4901 = vadd.f32 %v4754, %v4900
  %v4902 = vpop.f32.mrf.mxu0
  %4903 = vmatprep.mubr.f32.mxu0 0.0
  %4904 = vmatmul.mubr.f32.gmra.mxu0 %v4797
  %v4905 = vpop.f32.mrf.mxu0
  %v4906 = vadd.f32 %v4758, %v4905
  %v4907 = vpop.f32.mrf.mxu0
  %4908 = vmatprep.mubr.f32.mxu0 0.0
  %4909 = vmatmul.mubr.f32.gmra.mxu0 %v4800
  %v4910 = vpop.f32.mrf.mxu0
  %v4911 = vadd.f32 %v4762, %v4910
  %v4912 = vpop.f32.mrf.mxu0
  %4913 = vmatprep.mubr.f32.mxu0 0.0
  %4914 = vmatmul.mubr.f32.gmra.mxu0 %v4803
  %v4915 = vpop.f32.mrf.mxu0
  %v4916 = vadd.f32 %v4766, %v4915
  %v4917 = vpop.f32.mrf.mxu0
  %4918 = vmatprep.mubr.f32.mxu0 0.0
  %4919 = vmatmul.mubr.f32.gmra.mxu0 %v4806
  %v4920 = vpop.f32.mrf.mxu0
  %v4921 = vadd.f32 %v4770, %v4920
  %v4922 = vpop.f32.mrf.mxu0
  %4923 = vmatprep.mubr.f32.mxu0 0.0
  %4924 = vmatmul.mubr.f32.gmra.mxu0 %v4809
  %v4925 = vpop.f32.mrf.mxu0
  %v4926 = vadd.f32 %v4774, %v4925
  %v4927 = vpop.f32.mrf.mxu0
  %4928 = vmatprep.mubr.f32.mxu0 0.0
  %4929 = vmatmul.mubr.f32.gmra.mxu0 %v4812
  %v4930 = vpop.f32.mrf.mxu0
  %v4931 = vadd.f32 %v4779, %v4930
  %v4932 = vpop.f32.mrf.mxu0
  %4933 = vdwg.mxu0
  %v4934 = vtanh.pop %v4881
  %v4935 = vtanh.pop %v4886
  %v4936 = vtanh.pop %v4891
  %v4937 = vtanh.pop %v4896
  %v4938 = vtanh.pop %v4901
  %v4939 = vtanh.pop %v4906
  %v4940 = vtanh.pop %v4911
  %v4941 = vtanh.pop %v4916
  %v4942 = vtanh.pop %v4921
  %v4943 = vtanh.pop %v4926
  %v4944 = vtanh.pop %v4931
  %v4945 = vld [vmem:[%s5] sm:$0x1]
  %4947 = vset.pattern.permute.xlu0 4
  %4948 = vperm.xlu0 %4947, %v43
  %v4949 = vpop.permute.xlu0 %4948
  %vm4951 = vcmask 687104
  %v4953 = vsel %vm4951, %v4945, 0
  %vm4955 = vcmask 1043456
  %v4957 = vsel %vm4955, %v4944, 0
  %4959 = vmatprep.subr.mxu0 0.0
  %4960 = vmatpush1.msra.mxu0 0.0
  %4961 = vmatprep.subr.mxu0 0.0
  %4962 = vmatpush1.msra.mxu0 0.0
  %4963 = vmatprep.subr.mxu0 0.0
  %4964 = vmatpush1.msra.mxu0 0.0
  %4965 = vmatprep.subr.mxu0 0.0
  %4966 = vmatpush1.msra.mxu0 0.0
  %4967 = vmatprep.subr.mxu0 0.0
  %4968 = vmatpush1.msra.mxu0 0.0
  %4969 = vmatprep.subr.mxu0 0.0
  %4970 = vmatpush1.msra.mxu0 %v4957
  %4971 = vmatprep.subr.mxu0 0.0
  %4972 = vmatpush1.msra.mxu0 %v4943
  %4973 = vmatprep.subr.mxu0 0.0
  %4974 = vmatpush1.msra.mxu0 %v4942
  %4975 = vmatprep.subr.mxu0 0.0
  %4976 = vmatpush1.msra.mxu0 %v4941
  %4977 = vmatprep.subr.mxu0 0.0
  %4978 = vmatpush1.msra.mxu0 %v4940
  %4979 = vmatprep.subr.mxu0 0.0
  %4980 = vmatpush1.msra.mxu0 %v4939
  %4981 = vmatprep.subr.mxu0 0.0
  %4982 = vmatpush1.msra.mxu0 %v4938
  %4983 = vmatprep.subr.mxu0 0.0
  %4984 = vmatpush1.msra.mxu0 %v4937
  %4985 = vmatprep.subr.mxu0 0.0
  %4986 = vmatpush1.msra.mxu0 %v4936
  %4987 = vmatprep.subr.mxu0 0.0
  %4988 = vmatpush1.msra.mxu0 %v4935
  %4989 = vmatprep.subr.mxu0 0.0
  %4990 = vmatpush1.msra.mxu0 %v4934
  %4991 = vmatprep.subr.mxu0 0.0
  %4992 = vmatpush2.msra.mxu0 0.0
  %4993 = vmatprep.subr.mxu0 0.0
  %4994 = vmatpush2.msra.mxu0 0.0
  %4995 = vmatprep.subr.mxu0 0.0
  %4996 = vmatpush2.msra.mxu0 0.0
  %4997 = vmatprep.subr.mxu0 0.0
  %4998 = vmatpush2.msra.mxu0 0.0
  %4999 = vmatprep.subr.mxu0 0.0
  %5000 = vmatpush2.msra.mxu0 0.0
  %5001 = vmatprep.subr.mxu0 0.0
  %5002 = vmatpush2.msra.mxu0 0.0
  %5003 = vmatprep.subr.mxu0 0.0
  %5004 = vmatpush2.msra.mxu0 0.0
  %5005 = vmatprep.subr.mxu0 0.0
  %5006 = vmatpush2.msra.mxu0 0.0
  %5007 = vmatprep.subr.mxu0 0.0
  %5008 = vmatpush2.msra.mxu0 0.0
  %5009 = vmatprep.subr.mxu0 0.0
  %5010 = vmatpush2.msra.mxu0 0.0
  %5011 = vmatprep.subr.mxu0 0.0
  %5012 = vmatpush2.msra.mxu0 0.0
  %5013 = vmatprep.subr.mxu0 0.0
  %5014 = vmatpush2.msra.mxu0 0.0
  %5015 = vmatprep.subr.mxu0 0.0
  %5016 = vmatpush2.msra.mxu0 0.0
  %5017 = vmatprep.subr.mxu0 0.0
  %5018 = vmatpush2.msra.mxu0 0.0
  %5019 = vmatprep.subr.mxu0 0.0
  %5020 = vmatpush2.msra.mxu0 0.0
  %5021 = vmatprep.subr.mxu0 0.0
  %5022 = vmatpush2.msra.mxu0 0.0
  %5023 = vmatprep.mubr.f32.mxu0 0.0
  %5024 = vmatmul.mubr.f32.gmra.mxu0 %v4953
  %v5025 = vpop.f32.mrf.mxu0
  %v5026 = vadd.f32 %v4949, %v5025
  %v5027 = vpop.f32.mrf.mxu0
  %5028 = vdwg.mxu0
  %v5029 = vxor.u32 %v5026, 2147483648
  %v5030 = vmul.f32 %v5029, 1.442695
  %v5031 = vpow.pop %v5030
  %v5032 = vadd.f32 %v5031, 1.0
  %v5033 = vrcp.pop %v5032
  %v5034 = vmul.f32 1.0, %v5033
  %5035 = vst [vmem:[%s7] sm:$0xff] 0.0
  %vm5036 = vcmask 8192
  %5037 = vst.msk [vmem:[%s7] sm:$0x1] %vm5036, %v5034
  // Predicated region
  $region30: #{lenet5_forward.1} parent=0 // pred_check
    _
  $region31: #{lenet5_forward.1} parent=0 // pred_check_branch
    %5039 = sbr.rel (0) target = $region33
  $region32: #{lenet5_forward.1} parent=0 // pred_region
    _
  $region33: #{lenet5_forward.1} parent=0 // pred_fallthru
    _
  // Predicated region
  $region34: #{lenet5_forward.1} parent=0 // pred_check
    _
  $region35: #{lenet5_forward.1} parent=0 // pred_check_branch
    %5041 = sbr.rel (0) target = $region37
  $region36: #{lenet5_forward.1} parent=0 // pred_region
    _
  $region37: #{lenet5_forward.1} parent=0 // pred_fallthru
    _

</llo_original>
